<compile_context>
chip_gen: v6e
topology: v6e:2x2x1
jax: 0.10.0
libtpu: 0.0.40
codegen_flags: <defaults>
</compile_context>

<pallas_src>
import math

import jax
import jax.numpy as jnp
from jax import lax
from jax.experimental import pallas as pl
from jax.experimental.pallas import tpu as pltpu

# ----------------------- small, TPU-friendly config -----------------------
D_MODEL = 32
NHEAD = 4
D_K = D_MODEL // NHEAD
DIM_FF = 64
NUM_LAYERS = 2
MAX_SEQ = 8            # seq length must equal max_seq_length (see note above)
SRC_VOCAB = 64
TGT_VOCAB = 64
BATCH = 2
NEG_SLOPE = 0.01
LN_EPS = 1e-5
NEG_INF = -1e9

VEC_W = 3 * D_MODEL        # width of the packed per-layer vector slab
ENC_VEC_ROWS = 8           # bqkv, bo, g1, b1, bf1, bf2, g2, b2
DEC_VEC_ROWS = 16          # 13 used rows, padded to 16


# ========================== in-kernel helpers =============================
def _layernorm(x, g, b):
    mean = jnp.mean(x, axis=-1, keepdims=True)
    var = jnp.mean((x - mean) ** 2, axis=-1, keepdims=True)
    return (x - mean) * lax.rsqrt(var + LN_EPS) * g + b


def _leaky_relu(x):
    return jnp.where(x > 0, x, NEG_SLOPE * x)


def _dot(x, w):
    """MXU matmul: bf16 operands (native on v5e/v6e/v7x MXU), f32 accumulate."""
    return jnp.dot(x.astype(jnp.bfloat16), w, preferred_element_type=jnp.float32)


def _mha(q, k, v, bias):
    """Multi-head attention for ONE batch element on (S, D) slabs.

    Heads are static lane slices of the packed projections.  All per-head
    score matrices are stacked along sublanes into one (H*s_q, s_k) slab so
    the softmax (max / exp / sum / reciprocal) runs once.  `bias` is additive
    and broadcastable to (H*s_q, s_k); 1/sqrt(d_k) is already folded into q.
    """
    s_q = q.shape[0]
    scores = jnp.concatenate(
        [jnp.dot(q[:, h * D_K:(h + 1) * D_K].astype(jnp.bfloat16),
                 k[:, h * D_K:(h + 1) * D_K].T.astype(jnp.bfloat16),
                 preferred_element_type=jnp.float32)
         for h in range(NHEAD)], axis=0) + bias                  # (H*s_q, s_k)

    scores = scores - jnp.max(scores, axis=-1, keepdims=True)
    p = jnp.exp(scores)
    p = p * pl.reciprocal(jnp.sum(p, axis=-1, keepdims=True), approx=True)

    return jnp.concatenate(
        [jnp.dot(p[h * s_q:(h + 1) * s_q, :].astype(jnp.bfloat16),
                 v[:, h * D_K:(h + 1) * D_K].astype(jnp.bfloat16),
                 preferred_element_type=jnp.float32)
         for h in range(NHEAD)], axis=-1)                        # (s_q, D)


# ============================ fused kernels ================================
def _encoder_stack_kernel(pad_ref, emb_ref,
                          wqkv_ref, wo_ref, w1_ref, w2_ref, vec_ref,
                          out_ref, act_ref):
    """One grid step = (batch element b, encoder layer l); layers sequential."""
    l = pl.program_id(1)

    @pl.when(l == 0)
    def _init():
        act_ref[...] = emb_ref[...]

    x = act_ref[...]                                   # (S, D) f32, VMEM-resident

    vec = vec_ref[0]                                   # (8, 96) packed vectors
    bqkv = vec[0:1, :]
    bo = vec[1:2, :D_MODEL]
    g1 = vec[2:3, :D_MODEL]
    b1 = vec[3:4, :D_MODEL]
    bf1 = vec[4:5, :DIM_FF]
    bf2 = vec[5:6, :D_MODEL]
    g2 = vec[6:7, :D_MODEL]
    b2 = vec[7:8, :D_MODEL]

    # additive key-padding bias, built once per step (hoisted out of head loop)
    key_bias = jnp.where(pad_ref[0] > 0.5, 0.0, NEG_INF)          # (1, S)

    # self-attention: packed QKV projection, heads as static lane slices
    qkv = _dot(x, wqkv_ref[0]) + bqkv                              # (S, 3D)
    attn = _mha(qkv[:, :D_MODEL], qkv[:, D_MODEL:2 * D_MODEL],
                qkv[:, 2 * D_MODEL:], key_bias)
    x = _layernorm(x + _dot(attn, wo_ref[0]) + bo, g1, b1)

    # feed-forward
    h = _leaky_relu(_dot(x, w1_ref[0]) + bf1)
    x = _layernorm(x + _dot(h, w2_ref[0]) + bf2, g2, b2)

    act_ref[...] = x

    @pl.when(l == pl.num_programs(1) - 1)
    def _finalize():
        out_ref[...] = x


def _decoder_stack_kernel(tpad_ref, spad_ref, emb_ref, enc_ref,
                          s_wqkv_ref, s_wo_ref,
                          c_wq_ref, c_wkv_ref, c_wo_ref,
                          w1_ref, w2_ref, vec_ref,
                          wc_ref, bc_ref,
                          out_ref, act_ref):
    """One grid step = (batch element b, decoder layer l); classifier fused
    into the last layer step."""
    l = pl.program_id(1)

    @pl.when(l == 0)
    def _init():
        act_ref[...] = emb_ref[...]

    x = act_ref[...]                                   # (S_t, D)
    enc = enc_ref[...]                                 # (S_s, D)
    s_t = x.shape[0]

    vec = vec_ref[0]                                   # (16, 96) packed vectors
    s_bqkv = vec[0:1, :]
    s_bo = vec[1:2, :D_MODEL]
    g1 = vec[2:3, :D_MODEL]
    b1 = vec[3:4, :D_MODEL]
    c_bq = vec[4:5, :D_MODEL]
    c_bkv = vec[5:6, :2 * D_MODEL]
    c_bo = vec[6:7, :D_MODEL]
    g2 = vec[7:8, :D_MODEL]
    b2 = vec[8:9, :D_MODEL]
    bf1 = vec[9:10, :DIM_FF]
    bf2 = vec[10:11, :D_MODEL]
    g3 = vec[11:12, :D_MODEL]
    b3 = vec[12:13, :D_MODEL]

    # masks, built once per step (hoisted out of the head loop)
    tgt_keep = tpad_ref[0] > 0.5                                   # (1, S_t)
    row = lax.broadcasted_iota(jnp.int32, (s_t, s_t), 0)
    col = lax.broadcasted_iota(jnp.int32, (s_t, s_t), 1)
    self_bias = jnp.where(jnp.logical_and(row >= col, tgt_keep), 0.0, NEG_INF)
    self_bias = jnp.concatenate([self_bias] * NHEAD, axis=0)       # (H*S_t, S_t)
    cross_bias = jnp.where(spad_ref[0] > 0.5, 0.0, NEG_INF)        # (1, S_s)

    # masked self-attention (causal + tgt padding), packed QKV
    qkv = _dot(x, s_wqkv_ref[0]) + s_bqkv
    attn = _mha(qkv[:, :D_MODEL], qkv[:, D_MODEL:2 * D_MODEL],
                qkv[:, 2 * D_MODEL:], self_bias)
    x = _layernorm(x + _dot(attn, s_wo_ref[0]) + s_bo, g1, b1)

    # cross-attention over encoder output (src padding), packed KV
    q = _dot(x, c_wq_ref[0]) + c_bq
    kv = _dot(enc, c_wkv_ref[0]) + c_bkv
    attn = _mha(q, kv[:, :D_MODEL], kv[:, D_MODEL:], cross_bias)
    x = _layernorm(x + _dot(attn, c_wo_ref[0]) + c_bo, g2, b2)

    # feed-forward
    h = _leaky_relu(_dot(x, w1_ref[0]) + bf1)
    x = _layernorm(x + _dot(h, w2_ref[0]) + bf2, g3, b3)

    act_ref[...] = x

    # classifier folded into the final layer step; wrapper keeps row 0 per batch
    @pl.when(l == pl.num_programs(1) - 1)
    def _finalize():
        out_ref[...] = _dot(x, wc_ref[...]) + bc_ref[...]


# ============================ kernel wrappers ==============================
def encoder_forward(enc_pack, src_emb2d, src_pad3d, batch, seq):
    return pl.pallas_call(
        _encoder_stack_kernel,
        out_shape=jax.ShapeDtypeStruct((batch * seq, D_MODEL), jnp.float32),
        grid_spec=pltpu.PrefetchScalarGridSpec(
            num_scalar_prefetch=0,
            grid=(batch, NUM_LAYERS),
            in_specs=[
                pl.BlockSpec((1, 1, seq), lambda b, l: (b, 0, 0)),              # src pad
                pl.BlockSpec((seq, D_MODEL), lambda b, l: (b, 0)),              # embeddings
                pl.BlockSpec((1, D_MODEL, 3 * D_MODEL), lambda b, l: (l, 0, 0)),  # Wqkv
                pl.BlockSpec((1, D_MODEL, D_MODEL), lambda b, l: (l, 0, 0)),      # Wo
                pl.BlockSpec((1, D_MODEL, DIM_FF), lambda b, l: (l, 0, 0)),       # W1
                pl.BlockSpec((1, DIM_FF, D_MODEL), lambda b, l: (l, 0, 0)),       # W2
                pl.BlockSpec((1, ENC_VEC_ROWS, VEC_W), lambda b, l: (l, 0, 0)),   # vec slab
            ],
            out_specs=pl.BlockSpec((seq, D_MODEL), lambda b, l: (b, 0)),
            scratch_shapes=[pltpu.VMEM((seq, D_MODEL), jnp.float32)],
        ),
        compiler_params=pltpu.CompilerParams(
            dimension_semantics=("parallel", "arbitrary")),
    )(src_pad3d, src_emb2d, *enc_pack)


def decoder_forward(dec_pack, cls_w, cls_b, tgt_emb2d, enc2d,
                    tgt_pad3d, src_pad3d, batch, s_tgt, s_src):
    return pl.pallas_call(
        _decoder_stack_kernel,
        out_shape=jax.ShapeDtypeStruct((batch * s_tgt, TGT_VOCAB), jnp.float32),
        grid_spec=pltpu.PrefetchScalarGridSpec(
            num_scalar_prefetch=0,
            grid=(batch, NUM_LAYERS),
            in_specs=[
                pl.BlockSpec((1, 1, s_tgt), lambda b, l: (b, 0, 0)),             # tgt pad
                pl.BlockSpec((1, 1, s_src), lambda b, l: (b, 0, 0)),             # src pad
                pl.BlockSpec((s_tgt, D_MODEL), lambda b, l: (b, 0)),             # embeddings
                pl.BlockSpec((s_src, D_MODEL), lambda b, l: (b, 0)),             # encoder out
                pl.BlockSpec((1, D_MODEL, 3 * D_MODEL), lambda b, l: (l, 0, 0)),  # self Wqkv
                pl.BlockSpec((1, D_MODEL, D_MODEL), lambda b, l: (l, 0, 0)),      # self Wo
                pl.BlockSpec((1, D_MODEL, D_MODEL), lambda b, l: (l, 0, 0)),      # cross Wq
                pl.BlockSpec((1, D_MODEL, 2 * D_MODEL), lambda b, l: (l, 0, 0)),  # cross Wkv
                pl.BlockSpec((1, D_MODEL, D_MODEL), lambda b, l: (l, 0, 0)),      # cross Wo
                pl.BlockSpec((1, D_MODEL, DIM_FF), lambda b, l: (l, 0, 0)),       # W1
                pl.BlockSpec((1, DIM_FF, D_MODEL), lambda b, l: (l, 0, 0)),       # W2
                pl.BlockSpec((1, DEC_VEC_ROWS, VEC_W), lambda b, l: (l, 0, 0)),   # vec slab
                pl.BlockSpec((D_MODEL, TGT_VOCAB), lambda b, l: (0, 0)),          # classifier W
                pl.BlockSpec((1, TGT_VOCAB), lambda b, l: (0, 0)),                # classifier b
            ],
            out_specs=pl.BlockSpec((s_tgt, TGT_VOCAB), lambda b, l: (b, 0)),
            scratch_shapes=[pltpu.VMEM((s_tgt, D_MODEL), jnp.float32)],
        ),
        compiler_params=pltpu.CompilerParams(
            dimension_semantics=("parallel", "arbitrary")),
    )(tgt_pad3d, src_pad3d, tgt_emb2d, enc2d, *dec_pack, cls_w, cls_b)


# ============================== model pieces ==============================
def positional_encoding_table(max_len, d_model):
    pos = jnp.arange(max_len, dtype=jnp.float32)[:, None]
    div = jnp.exp(
        jnp.arange(0, d_model, 2, dtype=jnp.float32) * (-math.log(10000.0) / d_model))
    pe = jnp.zeros((max_len, d_model), dtype=jnp.float32)
    pe = pe.at[:, 0::2].set(jnp.sin(pos * div))
    pe = pe.at[:, 1::2].set(jnp.cos(pos * div))
    return pe


def init_linear(key, fan_in, fan_out):
    kw, _ = jax.random.split(key)
    return {"w": 0.02 * jax.random.normal(kw, (fan_in, fan_out), jnp.float32),
            "b": jnp.zeros((fan_out,), jnp.float32)}


def init_mha(key):
    ks = jax.random.split(key, 4)
    return {"wq": init_linear(ks[0], D_MODEL, D_MODEL),
            "wk": init_linear(ks[1], D_MODEL, D_MODEL),
            "wv": init_linear(ks[2], D_MODEL, D_MODEL),
            "wo": init_linear(ks[3], D_MODEL, D_MODEL)}


def init_ln():
    return {"g": jnp.ones((D_MODEL,), jnp.float32), "b": jnp.zeros((D_MODEL,), jnp.float32)}


def init_ffn(key):
    k1, k2 = jax.random.split(key)
    return {"l1": init_linear(k1, D_MODEL, DIM_FF), "l2": init_linear(k2, DIM_FF, D_MODEL)}


def init_encoder_layer(key):
    k1, k2 = jax.random.split(key)
    return {"attn": init_mha(k1), "ffn": init_ffn(k2), "ln1": init_ln(), "ln2": init_ln()}


def init_decoder_layer(key):
    k1, k2, k3 = jax.random.split(key, 3)
    return {"self_attn": init_mha(k1), "cross_attn": init_mha(k2), "ffn": init_ffn(k3),
            "ln1": init_ln(), "ln2": init_ln(), "ln3": init_ln()}


def init_params(key):
    keys = jax.random.split(key, 4 + 2 * NUM_LAYERS)
    return {
        "enc_emb": 0.02 * jax.random.normal(keys[0], (SRC_VOCAB, D_MODEL), jnp.float32),
        "dec_emb": 0.02 * jax.random.normal(keys[1], (TGT_VOCAB, D_MODEL), jnp.float32),
        "classifier": init_linear(keys[2], D_MODEL, TGT_VOCAB),
        "enc_layers": [init_encoder_layer(keys[4 + i]) for i in range(NUM_LAYERS)],
        "dec_layers": [init_decoder_layer(keys[4 + NUM_LAYERS + i]) for i in range(NUM_LAYERS)],
    }


def _vec_slab(vectors, rows):
    slab = jnp.zeros((rows, VEC_W), jnp.float32)
    for i, v in enumerate(vectors):
        slab = slab.at[i, :v.shape[0]].set(v)
    return slab


def prepack(params):
    """One-time weight packing (done at init, NOT per forward):
    packed QKV / KV, 1/sqrt(d_k) folded into Wq, per-layer vectors in one slab,
    weights stored bf16, everything stacked over the layer axis."""
    scale = 1.0 / math.sqrt(D_K)

    enc_wqkv, enc_wo, enc_w1, enc_w2, enc_vec = [], [], [], [], []
    for p in params["enc_layers"]:
        a = p["attn"]
        enc_wqkv.append(jnp.concatenate(
            [a["wq"]["w"] * scale, a["wk"]["w"], a["wv"]["w"]], axis=1))
        enc_wo.append(a["wo"]["w"])
        enc_w1.append(p["ffn"]["l1"]["w"])
        enc_w2.append(p["ffn"]["l2"]["w"])
        bqkv = jnp.concatenate([a["wq"]["b"] * scale, a["wk"]["b"], a["wv"]["b"]])
        enc_vec.append(_vec_slab(
            [bqkv, a["wo"]["b"], p["ln1"]["g"], p["ln1"]["b"],
             p["ffn"]["l1"]["b"], p["ffn"]["l2"]["b"], p["ln2"]["g"], p["ln2"]["b"]],
            ENC_VEC_ROWS))
    enc_pack = (jnp.stack(enc_wqkv).astype(jnp.bfloat16),
                jnp.stack(enc_wo).astype(jnp.bfloat16),
                jnp.stack(enc_w1).astype(jnp.bfloat16),
                jnp.stack(enc_w2).astype(jnp.bfloat16),
                jnp.stack(enc_vec))

    d_wqkv, d_wo, d_cwq, d_cwkv, d_cwo, d_w1, d_w2, d_vec = ([] for _ in range(8))
    for p in params["dec_layers"]:
        sa, ca = p["self_attn"], p["cross_attn"]
        d_wqkv.append(jnp.concatenate(
            [sa["wq"]["w"] * scale, sa["wk"]["w"], sa["wv"]["w"]], axis=1))
        d_wo.append(sa["wo"]["w"])
        d_cwq.append(ca["wq"]["w"] * scale)
        d_cwkv.append(jnp.concatenate([ca["wk"]["w"], ca["wv"]["w"]], axis=1))
        d_cwo.append(ca["wo"]["w"])
        d_w1.append(p["ffn"]["l1"]["w"])
        d_w2.append(p["ffn"]["l2"]["w"])
        s_bqkv = jnp.concatenate([sa["wq"]["b"] * scale, sa["wk"]["b"], sa["wv"]["b"]])
        c_bkv = jnp.concatenate([ca["wk"]["b"], ca["wv"]["b"]])
        d_vec.append(_vec_slab(
            [s_bqkv, sa["wo"]["b"], p["ln1"]["g"], p["ln1"]["b"],
             ca["wq"]["b"] * scale, c_bkv, ca["wo"]["b"], p["ln2"]["g"], p["ln2"]["b"],
             p["ffn"]["l1"]["b"], p["ffn"]["l2"]["b"], p["ln3"]["g"], p["ln3"]["b"]],
            DEC_VEC_ROWS))
    dec_pack = (jnp.stack(d_wqkv).astype(jnp.bfloat16),
                jnp.stack(d_wo).astype(jnp.bfloat16),
                jnp.stack(d_cwq).astype(jnp.bfloat16),
                jnp.stack(d_cwkv).astype(jnp.bfloat16),
                jnp.stack(d_cwo).astype(jnp.bfloat16),
                jnp.stack(d_w1).astype(jnp.bfloat16),
                jnp.stack(d_w2).astype(jnp.bfloat16),
                jnp.stack(d_vec))

    return {
        "enc_emb": params["enc_emb"],
        "dec_emb": params["dec_emb"],
        "pe": positional_encoding_table(MAX_SEQ, D_MODEL),
        "enc": enc_pack,
        "dec": dec_pack,
        "cls_w": params["classifier"]["w"].astype(jnp.bfloat16),
        "cls_b": params["classifier"]["b"].reshape(1, TGT_VOCAB),
    }


def transformer_forward(packed, src, tgt):
    B, S_src = src.shape
    _, S_tgt = tgt.shape

    # tiny (B, 1, S) pad masks (1.0 = keep); additive biases built in-kernel
    src_pad = (src != 0).astype(jnp.float32)[:, None, :]
    tgt_pad = (tgt != 0).astype(jnp.float32)[:, None, :]

    # embeddings + positional encoding (glue, plain JAX gather)
    pe = packed["pe"]
    src_emb = jnp.take(packed["enc_emb"], src, axis=0) + pe[None, :S_src, :]
    tgt_emb = jnp.take(packed["dec_emb"], tgt, axis=0) + pe[None, :S_tgt, :]

    # encoder stack: ONE fused pallas_call over grid (B, NUM_LAYERS)
    enc = encoder_forward(packed["enc"], src_emb.reshape(B * S_src, D_MODEL),
                          src_pad, B, S_src)

    # decoder stack + classifier: ONE fused pallas_call over grid (B, NUM_LAYERS)
    logits_all = decoder_forward(packed["dec"], packed["cls_w"], packed["cls_b"],
                                 tgt_emb.reshape(B * S_tgt, D_MODEL), enc,
                                 tgt_pad, src_pad, B, S_tgt, S_src)

    # reference classifies dec_output[:, 0, :]
    return logits_all.reshape(B, S_tgt, TGT_VOCAB)[:, 0, :]


# ================================== main ==================================
if __name__ == "__main__":
    key = jax.random.PRNGKey(0)
    kp, ks, kt = jax.random.split(key, 3)

    params = init_params(kp)
    packed = prepack(params)        # one-time weight packing (outside jit)

    src = jax.random.randint(ks, (BATCH, MAX_SEQ), 0, SRC_VOCAB, dtype=jnp.int32)
    tgt = jax.random.randint(kt, (BATCH, MAX_SEQ), 0, TGT_VOCAB, dtype=jnp.int32)

    fwd = jax.jit(transformer_forward)
    out = fwd(packed, src, tgt)
    jax.block_until_ready(out)

    assert out.shape == (BATCH, TGT_VOCAB), out.shape
    assert bool(jnp.all(jnp.isfinite(out)))
    print("KERNEL_OK")
</pallas_src>

<mosaic_0001>
module attributes {stable_mosaic.version = 11 : i64} {
  func.func @_decoder_stack_kernel(%arg0: i32, %arg1: i32, %arg2: memref<1x1x8xf32, #tpu.memory_space<vmem>>, %arg3: memref<1x1x8xf32, #tpu.memory_space<vmem>>, %arg4: memref<8x32xf32, #tpu.memory_space<vmem>>, %arg5: memref<8x32xf32, #tpu.memory_space<vmem>>, %arg6: memref<1x32x96xbf16, #tpu.memory_space<vmem>>, %arg7: memref<1x32x32xbf16, #tpu.memory_space<vmem>>, %arg8: memref<1x32x32xbf16, #tpu.memory_space<vmem>>, %arg9: memref<1x32x64xbf16, #tpu.memory_space<vmem>>, %arg10: memref<1x32x32xbf16, #tpu.memory_space<vmem>>, %arg11: memref<1x32x64xbf16, #tpu.memory_space<vmem>>, %arg12: memref<1x64x32xbf16, #tpu.memory_space<vmem>>, %arg13: memref<1x16x96xf32, #tpu.memory_space<vmem>>, %arg14: memref<32x64xbf16, #tpu.memory_space<vmem>>, %arg15: memref<1x64xf32, #tpu.memory_space<vmem>>, %arg16: memref<8x64xf32, #tpu.memory_space<vmem>>, %arg17: memref<8x32xf32, #tpu.memory_space<vmem>>) attributes {dimension_semantics = [#tpu.dimension_semantics<parallel>, #tpu.dimension_semantics<arbitrary>], iteration_bounds = array<i64: 2, 2>, scalar_prefetch = 0 : i64, scratch_operands = 1 : i64, tpu.core_type = #tpu.core_type<tc>, window_params = [{transform_indices = @transform_0, window_bounds = array<i64: 1, 1, 8>}, {transform_indices = @transform_1, window_bounds = array<i64: 1, 1, 8>}, {transform_indices = @transform_2, window_bounds = array<i64: 8, 32>}, {transform_indices = @transform_3, window_bounds = array<i64: 8, 32>}, {transform_indices = @transform_4, window_bounds = array<i64: 1, 32, 96>}, {transform_indices = @transform_5, window_bounds = array<i64: 1, 32, 32>}, {transform_indices = @transform_6, window_bounds = array<i64: 1, 32, 32>}, {transform_indices = @transform_7, window_bounds = array<i64: 1, 32, 64>}, {transform_indices = @transform_8, window_bounds = array<i64: 1, 32, 32>}, {transform_indices = @transform_9, window_bounds = array<i64: 1, 32, 64>}, {transform_indices = @transform_10, window_bounds = array<i64: 1, 64, 32>}, {transform_indices = @transform_11, window_bounds = array<i64: 1, 16, 96>}, {pipeline_mode = #tpu.pipeline_mode<synchronous>, transform_indices = @transform_12, window_bounds = array<i64: 32, 64>}, {pipeline_mode = #tpu.pipeline_mode<synchronous>, transform_indices = @transform_13, window_bounds = array<i64: 1, 64>}, {transform_indices = @transform_14, window_bounds = array<i64: 8, 64>}]} {
    %c0_i32 = arith.constant 0 : i32
    %0 = arith.cmpi eq, %arg1, %c0_i32 : i32
    %1 = arith.extui %0 : i1 to i32
    %c0_i32_0 = arith.constant 0 : i32
    %2 = arith.cmpi ne, %1, %c0_i32_0 : i32
    scf.if %2 {
      %c0_86 = arith.constant 0 : index
      %c0_87 = arith.constant 0 : index
      %280 = vector.load %arg4[%c0_86, %c0_87] : memref<8x32xf32, #tpu.memory_space<vmem>>, vector<8x32xf32>
      %c0_88 = arith.constant 0 : index
      %c0_89 = arith.constant 0 : index
      %281 = vector.load %arg17[%c0_88, %c0_89] : memref<8x32xf32, #tpu.memory_space<vmem>>, vector<8x32xf32>
      tpu.vector_store %arg17[%c0_88, %c0_89], %280 {strides = array<i32>} : memref<8x32xf32, #tpu.memory_space<vmem>>, vector<8x32xf32>,
    } else {
    }
    %c0 = arith.constant 0 : index
    %c0_1 = arith.constant 0 : index
    %3 = vector.load %arg17[%c0, %c0_1] : memref<8x32xf32, #tpu.memory_space<vmem>>, vector<8x32xf32>
    %c0_2 = arith.constant 0 : index
    %c0_3 = arith.constant 0 : index
    %4 = vector.load %arg5[%c0_2, %c0_3] : memref<8x32xf32, #tpu.memory_space<vmem>>, vector<8x32xf32>
    %c0_4 = arith.constant 0 : index
    %c0_5 = arith.constant 0 : index
    %c0_6 = arith.constant 0 : index
    %5 = vector.load %arg13[%c0_4, %c0_5, %c0_6] : memref<1x16x96xf32, #tpu.memory_space<vmem>>, vector<1x16x96xf32>
    %6 = vector.shape_cast %5 : vector<1x16x96xf32> to vector<16x96xf32>
    %7 = vector.extract_strided_slice %6 {offsets = [0, 0], sizes = [1, 96], strides = [1, 1]} : vector<16x96xf32> to vector<1x96xf32>
    %8 = vector.extract_strided_slice %6 {offsets = [1, 0], sizes = [1, 32], strides = [1, 1]} : vector<16x96xf32> to vector<1x32xf32>
    %9 = vector.extract_strided_slice %6 {offsets = [2, 0], sizes = [1, 32], strides = [1, 1]} : vector<16x96xf32> to vector<1x32xf32>
    %10 = vector.extract_strided_slice %6 {offsets = [3, 0], sizes = [1, 32], strides = [1, 1]} : vector<16x96xf32> to vector<1x32xf32>
    %11 = vector.extract_strided_slice %6 {offsets = [4, 0], sizes = [1, 32], strides = [1, 1]} : vector<16x96xf32> to vector<1x32xf32>
    %12 = vector.extract_strided_slice %6 {offsets = [5, 0], sizes = [1, 64], strides = [1, 1]} : vector<16x96xf32> to vector<1x64xf32>
    %13 = vector.extract_strided_slice %6 {offsets = [6, 0], sizes = [1, 32], strides = [1, 1]} : vector<16x96xf32> to vector<1x32xf32>
    %14 = vector.extract_strided_slice %6 {offsets = [7, 0], sizes = [1, 32], strides = [1, 1]} : vector<16x96xf32> to vector<1x32xf32>
    %15 = vector.extract_strided_slice %6 {offsets = [8, 0], sizes = [1, 32], strides = [1, 1]} : vector<16x96xf32> to vector<1x32xf32>
    %16 = vector.extract_strided_slice %6 {offsets = [9, 0], sizes = [1, 64], strides = [1, 1]} : vector<16x96xf32> to vector<1x64xf32>
    %17 = vector.extract_strided_slice %6 {offsets = [10, 0], sizes = [1, 32], strides = [1, 1]} : vector<16x96xf32> to vector<1x32xf32>
    %18 = vector.extract_strided_slice %6 {offsets = [11, 0], sizes = [1, 32], strides = [1, 1]} : vector<16x96xf32> to vector<1x32xf32>
    %19 = vector.extract_strided_slice %6 {offsets = [12, 0], sizes = [1, 32], strides = [1, 1]} : vector<16x96xf32> to vector<1x32xf32>
    %c0_7 = arith.constant 0 : index
    %c0_8 = arith.constant 0 : index
    %c0_9 = arith.constant 0 : index
    %20 = vector.load %arg2[%c0_7, %c0_8, %c0_9] : memref<1x1x8xf32, #tpu.memory_space<vmem>>, vector<1x1x8xf32>
    %21 = vector.shape_cast %20 : vector<1x1x8xf32> to vector<1x8xf32>
    %cst = arith.constant 5.000000e-01 : f32
    %22 = vector.broadcast %cst : f32 to vector<1x8xf32>
    %23 = arith.cmpf ogt, %21, %22 : vector<1x8xf32>
    %24 = tpu.iota {dimensions = array<i32: 0>} : vector<8x8xi32>
    %25 = tpu.iota {dimensions = array<i32: 1>} : vector<8x8xi32>
    %26 = arith.cmpi sge, %24, %25 : vector<8x8xi32>
    %27 = vector.broadcast %23 : vector<1x8xi1> to vector<8x8xi1>
    %28 = arith.andi %26, %27 : vector<8x8xi1>
    %cst_10 = arith.constant 0.000000e+00 : f32
    %cst_11 = arith.constant -1.000000e+09 : f32
    %29 = vector.broadcast %cst_10 : f32 to vector<8x8xf32>
    %30 = vector.broadcast %cst_11 : f32 to vector<8x8xf32>
    %31 = arith.select %28, %29, %30 : vector<8x8xi1>, vector<8x8xf32>
    %32 = tpu.concatenate %31, %31, %31, %31 in 0 : vector<8x8xf32>, vector<8x8xf32>, vector<8x8xf32>, vector<8x8xf32> -> vector<32x8xf32>
    %c0_12 = arith.constant 0 : index
    %c0_13 = arith.constant 0 : index
    %c0_14 = arith.constant 0 : index
    %33 = vector.load %arg3[%c0_12, %c0_13, %c0_14] : memref<1x1x8xf32, #tpu.memory_space<vmem>>, vector<1x1x8xf32>
    %34 = vector.shape_cast %33 : vector<1x1x8xf32> to vector<1x8xf32>
    %cst_15 = arith.constant 5.000000e-01 : f32
    %35 = vector.broadcast %cst_15 : f32 to vector<1x8xf32>
    %36 = arith.cmpf ogt, %34, %35 : vector<1x8xf32>
    %cst_16 = arith.constant 0.000000e+00 : f32
    %cst_17 = arith.constant -1.000000e+09 : f32
    %37 = vector.broadcast %cst_16 : f32 to vector<1x8xf32>
    %38 = vector.broadcast %cst_17 : f32 to vector<1x8xf32>
    %39 = arith.select %36, %37, %38 : vector<1x8xi1>, vector<1x8xf32>
    %c0_18 = arith.constant 0 : index
    %c0_19 = arith.constant 0 : index
    %c0_20 = arith.constant 0 : index
    %40 = vector.load %arg6[%c0_18, %c0_19, %c0_20] : memref<1x32x96xbf16, #tpu.memory_space<vmem>>, vector<1x32x96xbf16>
    %41 = vector.shape_cast %40 : vector<1x32x96xbf16> to vector<32x96xbf16>
    %42 = arith.truncf %3 : vector<8x32xf32> to vector<8x32xbf16>
    %cst_21 = arith.constant dense<0.000000e+00> : vector<8x96xf32>
    %43 = tpu.matmul %42, %41, %cst_21 {dimension_numbers = #tpu.dot_dimension_numbers<[1], [0], [0], [1], [0, 0, 1, 1], [], []>} : vector<8x32xbf16>, vector<32x96xbf16>, vector<8x96xf32> -> vector<8x96xf32>
    %44 = vector.broadcast %7 : vector<1x96xf32> to vector<8x96xf32>
    %45 = arith.addf %43, %44 : vector<8x96xf32>
    %46 = vector.extract_strided_slice %45 {offsets = [0, 0], sizes = [8, 32], strides = [1, 1]} : vector<8x96xf32> to vector<8x32xf32>
    %47 = vector.extract_strided_slice %45 {offsets = [0, 32], sizes = [8, 32], strides = [1, 1]} : vector<8x96xf32> to vector<8x32xf32>
    %48 = vector.extract_strided_slice %45 {offsets = [0, 64], sizes = [8, 32], strides = [1, 1]} : vector<8x96xf32> to vector<8x32xf32>
    %49 = vector.extract_strided_slice %46 {offsets = [0, 0], sizes = [8, 8], strides = [1, 1]} : vector<8x32xf32> to vector<8x8xf32>
    %50 = arith.truncf %49 : vector<8x8xf32> to vector<8x8xbf16>
    %51 = vector.extract_strided_slice %47 {offsets = [0, 0], sizes = [8, 8], strides = [1, 1]} : vector<8x32xf32> to vector<8x8xf32>
    %52 = tpu.transpose %51, [1, 0] : vector<8x8xf32> -> vector<8x8xf32>
    %53 = arith.truncf %52 : vector<8x8xf32> to vector<8x8xbf16>
    %cst_22 = arith.constant dense<0.000000e+00> : vector<8x8xf32>
    %54 = tpu.matmul %50, %53, %cst_22 {dimension_numbers = #tpu.dot_dimension_numbers<[1], [0], [0], [1], [0, 0, 1, 1], [], []>} : vector<8x8xbf16>, vector<8x8xbf16>, vector<8x8xf32> -> vector<8x8xf32>
    %55 = vector.extract_strided_slice %46 {offsets = [0, 8], sizes = [8, 8], strides = [1, 1]} : vector<8x32xf32> to vector<8x8xf32>
    %56 = arith.truncf %55 : vector<8x8xf32> to vector<8x8xbf16>
    %57 = vector.extract_strided_slice %47 {offsets = [0, 8], sizes = [8, 8], strides = [1, 1]} : vector<8x32xf32> to vector<8x8xf32>
    %58 = tpu.transpose %57, [1, 0] : vector<8x8xf32> -> vector<8x8xf32>
    %59 = arith.truncf %58 : vector<8x8xf32> to vector<8x8xbf16>
    %cst_23 = arith.constant dense<0.000000e+00> : vector<8x8xf32>
    %60 = tpu.matmul %56, %59, %cst_23 {dimension_numbers = #tpu.dot_dimension_numbers<[1], [0], [0], [1], [0, 0, 1, 1], [], []>} : vector<8x8xbf16>, vector<8x8xbf16>, vector<8x8xf32> -> vector<8x8xf32>
    %61 = vector.extract_strided_slice %46 {offsets = [0, 16], sizes = [8, 8], strides = [1, 1]} : vector<8x32xf32> to vector<8x8xf32>
    %62 = arith.truncf %61 : vector<8x8xf32> to vector<8x8xbf16>
    %63 = vector.extract_strided_slice %47 {offsets = [0, 16], sizes = [8, 8], strides = [1, 1]} : vector<8x32xf32> to vector<8x8xf32>
    %64 = tpu.transpose %63, [1, 0] : vector<8x8xf32> -> vector<8x8xf32>
    %65 = arith.truncf %64 : vector<8x8xf32> to vector<8x8xbf16>
    %cst_24 = arith.constant dense<0.000000e+00> : vector<8x8xf32>
    %66 = tpu.matmul %62, %65, %cst_24 {dimension_numbers = #tpu.dot_dimension_numbers<[1], [0], [0], [1], [0, 0, 1, 1], [], []>} : vector<8x8xbf16>, vector<8x8xbf16>, vector<8x8xf32> -> vector<8x8xf32>
    %67 = vector.extract_strided_slice %46 {offsets = [0, 24], sizes = [8, 8], strides = [1, 1]} : vector<8x32xf32> to vector<8x8xf32>
    %68 = arith.truncf %67 : vector<8x8xf32> to vector<8x8xbf16>
    %69 = vector.extract_strided_slice %47 {offsets = [0, 24], sizes = [8, 8], strides = [1, 1]} : vector<8x32xf32> to vector<8x8xf32>
    %70 = tpu.transpose %69, [1, 0] : vector<8x8xf32> -> vector<8x8xf32>
    %71 = arith.truncf %70 : vector<8x8xf32> to vector<8x8xbf16>
    %cst_25 = arith.constant dense<0.000000e+00> : vector<8x8xf32>
    %72 = tpu.matmul %68, %71, %cst_25 {dimension_numbers = #tpu.dot_dimension_numbers<[1], [0], [0], [1], [0, 0, 1, 1], [], []>} : vector<8x8xbf16>, vector<8x8xbf16>, vector<8x8xf32> -> vector<8x8xf32>
    %73 = tpu.concatenate %54, %60, %66, %72 in 0 : vector<8x8xf32>, vector<8x8xf32>, vector<8x8xf32>, vector<8x8xf32> -> vector<32x8xf32>
    %74 = arith.addf %73, %32 : vector<32x8xf32>
    %cst_26 = arith.constant dense<0xFF800000> : vector<32xf32>
    %75 = vector.multi_reduction <maximumf>, %74, %cst_26 [1] : vector<32x8xf32> to vector<32xf32>
    %76 = vector.shape_cast %75 : vector<32xf32> to vector<32x1xf32>
    %77 = vector.broadcast %76 : vector<32x1xf32> to vector<32x8xf32>
    %78 = arith.subf %74, %77 : vector<32x8xf32>
    %79 = math.exp %78 : vector<32x8xf32>
    %cst_27 = arith.constant dense<0.000000e+00> : vector<32xf32>
    %80 = vector.multi_reduction <add>, %79, %cst_27 [1] : vector<32x8xf32> to vector<32xf32>
    %81 = vector.shape_cast %80 : vector<32xf32> to vector<32x1xf32>
    %82 = tpu.reciprocal %81 {approx = true} : vector<32x1xf32> -> vector<32x1xf32>
    %83 = vector.broadcast %82 : vector<32x1xf32> to vector<32x8xf32>
    %84 = arith.mulf %79, %83 : vector<32x8xf32>
    %85 = vector.extract_strided_slice %84 {offsets = [0, 0], sizes = [8, 8], strides = [1, 1]} : vector<32x8xf32> to vector<8x8xf32>
    %86 = arith.truncf %85 : vector<8x8xf32> to vector<8x8xbf16>
    %87 = vector.extract_strided_slice %48 {offsets = [0, 0], sizes = [8, 8], strides = [1, 1]} : vector<8x32xf32> to vector<8x8xf32>
    %88 = arith.truncf %87 : vector<8x8xf32> to vector<8x8xbf16>
    %cst_28 = arith.constant dense<0.000000e+00> : vector<8x8xf32>
    %89 = tpu.matmul %86, %88, %cst_28 {dimension_numbers = #tpu.dot_dimension_numbers<[1], [0], [0], [1], [0, 0, 1, 1], [], []>} : vector<8x8xbf16>, vector<8x8xbf16>, vector<8x8xf32> -> vector<8x8xf32>
    %90 = vector.extract_strided_slice %84 {offsets = [8, 0], sizes = [8, 8], strides = [1, 1]} : vector<32x8xf32> to vector<8x8xf32>
    %91 = arith.truncf %90 : vector<8x8xf32> to vector<8x8xbf16>
    %92 = vector.extract_strided_slice %48 {offsets = [0, 8], sizes = [8, 8], strides = [1, 1]} : vector<8x32xf32> to vector<8x8xf32>
    %93 = arith.truncf %92 : vector<8x8xf32> to vector<8x8xbf16>
    %cst_29 = arith.constant dense<0.000000e+00> : vector<8x8xf32>
    %94 = tpu.matmul %91, %93, %cst_29 {dimension_numbers = #tpu.dot_dimension_numbers<[1], [0], [0], [1], [0, 0, 1, 1], [], []>} : vector<8x8xbf16>, vector<8x8xbf16>, vector<8x8xf32> -> vector<8x8xf32>
    %95 = vector.extract_strided_slice %84 {offsets = [16, 0], sizes = [8, 8], strides = [1, 1]} : vector<32x8xf32> to vector<8x8xf32>
    %96 = arith.truncf %95 : vector<8x8xf32> to vector<8x8xbf16>
    %97 = vector.extract_strided_slice %48 {offsets = [0, 16], sizes = [8, 8], strides = [1, 1]} : vector<8x32xf32> to vector<8x8xf32>
    %98 = arith.truncf %97 : vector<8x8xf32> to vector<8x8xbf16>
    %cst_30 = arith.constant dense<0.000000e+00> : vector<8x8xf32>
    %99 = tpu.matmul %96, %98, %cst_30 {dimension_numbers = #tpu.dot_dimension_numbers<[1], [0], [0], [1], [0, 0, 1, 1], [], []>} : vector<8x8xbf16>, vector<8x8xbf16>, vector<8x8xf32> -> vector<8x8xf32>
    %100 = vector.extract_strided_slice %84 {offsets = [24, 0], sizes = [8, 8], strides = [1, 1]} : vector<32x8xf32> to vector<8x8xf32>
    %101 = arith.truncf %100 : vector<8x8xf32> to vector<8x8xbf16>
    %102 = vector.extract_strided_slice %48 {offsets = [0, 24], sizes = [8, 8], strides = [1, 1]} : vector<8x32xf32> to vector<8x8xf32>
    %103 = arith.truncf %102 : vector<8x8xf32> to vector<8x8xbf16>
    %cst_31 = arith.constant dense<0.000000e+00> : vector<8x8xf32>
    %104 = tpu.matmul %101, %103, %cst_31 {dimension_numbers = #tpu.dot_dimension_numbers<[1], [0], [0], [1], [0, 0, 1, 1], [], []>} : vector<8x8xbf16>, vector<8x8xbf16>, vector<8x8xf32> -> vector<8x8xf32>
    %105 = tpu.concatenate %89, %94, %99, %104 in 1 : vector<8x8xf32>, vector<8x8xf32>, vector<8x8xf32>, vector<8x8xf32> -> vector<8x32xf32>
    %c0_32 = arith.constant 0 : index
    %c0_33 = arith.constant 0 : index
    %c0_34 = arith.constant 0 : index
    %106 = vector.load %arg7[%c0_32, %c0_33, %c0_34] : memref<1x32x32xbf16, #tpu.memory_space<vmem>>, vector<1x32x32xbf16>
    %107 = vector.shape_cast %106 : vector<1x32x32xbf16> to vector<32x32xbf16>
    %108 = arith.truncf %105 : vector<8x32xf32> to vector<8x32xbf16>
    %cst_35 = arith.constant dense<0.000000e+00> : vector<8x32xf32>
    %109 = tpu.matmul %108, %107, %cst_35 {dimension_numbers = #tpu.dot_dimension_numbers<[1], [0], [0], [1], [0, 0, 1, 1], [], []>} : vector<8x32xbf16>, vector<32x32xbf16>, vector<8x32xf32> -> vector<8x32xf32>
    %110 = arith.addf %3, %109 : vector<8x32xf32>
    %111 = vector.broadcast %8 : vector<1x32xf32> to vector<8x32xf32>
    %112 = arith.addf %110, %111 : vector<8x32xf32>
    %cst_36 = arith.constant dense<0.000000e+00> : vector<8xf32>
    %113 = vector.multi_reduction <add>, %112, %cst_36 [1] : vector<8x32xf32> to vector<8xf32>
    %114 = vector.shape_cast %113 : vector<8xf32> to vector<8x1xf32>
    %cst_37 = arith.constant 3.200000e+01 : f32
    %115 = vector.broadcast %cst_37 : f32 to vector<8x1xf32>
    %116 = arith.divf %114, %115 : vector<8x1xf32>
    %117 = vector.broadcast %116 : vector<8x1xf32> to vector<8x32xf32>
    %118 = arith.subf %112, %117 : vector<8x32xf32>
    %119 = arith.mulf %118, %118 : vector<8x32xf32>
    %cst_38 = arith.constant dense<0.000000e+00> : vector<8xf32>
    %120 = vector.multi_reduction <add>, %119, %cst_38 [1] : vector<8x32xf32> to vector<8xf32>
    %121 = vector.shape_cast %120 : vector<8xf32> to vector<8x1xf32>
    %cst_39 = arith.constant 3.200000e+01 : f32
    %122 = vector.broadcast %cst_39 : f32 to vector<8x1xf32>
    %123 = arith.divf %121, %122 : vector<8x1xf32>
    %124 = vector.broadcast %116 : vector<8x1xf32> to vector<8x32xf32>
    %125 = arith.subf %112, %124 : vector<8x32xf32>
    %cst_40 = arith.constant 9.99999974E-6 : f32
    %126 = vector.broadcast %cst_40 : f32 to vector<8x1xf32>
    %127 = arith.addf %123, %126 : vector<8x1xf32>
    %128 = math.rsqrt %127 : vector<8x1xf32>
    %129 = vector.broadcast %128 : vector<8x1xf32> to vector<8x32xf32>
    %130 = arith.mulf %125, %129 : vector<8x32xf32>
    %131 = vector.broadcast %9 : vector<1x32xf32> to vector<8x32xf32>
    %132 = arith.mulf %130, %131 : vector<8x32xf32>
    %133 = vector.broadcast %10 : vector<1x32xf32> to vector<8x32xf32>
    %134 = arith.addf %132, %133 : vector<8x32xf32>
    %c0_41 = arith.constant 0 : index
    %c0_42 = arith.constant 0 : index
    %c0_43 = arith.constant 0 : index
    %135 = vector.load %arg8[%c0_41, %c0_42, %c0_43] : memref<1x32x32xbf16, #tpu.memory_space<vmem>>, vector<1x32x32xbf16>
    %136 = vector.shape_cast %135 : vector<1x32x32xbf16> to vector<32x32xbf16>
    %137 = arith.truncf %134 : vector<8x32xf32> to vector<8x32xbf16>
    %cst_44 = arith.constant dense<0.000000e+00> : vector<8x32xf32>
    %138 = tpu.matmul %137, %136, %cst_44 {dimension_numbers = #tpu.dot_dimension_numbers<[1], [0], [0], [1], [0, 0, 1, 1], [], []>} : vector<8x32xbf16>, vector<32x32xbf16>, vector<8x32xf32> -> vector<8x32xf32>
    %139 = vector.broadcast %11 : vector<1x32xf32> to vector<8x32xf32>
    %140 = arith.addf %138, %139 : vector<8x32xf32>
    %c0_45 = arith.constant 0 : index
    %c0_46 = arith.constant 0 : index
    %c0_47 = arith.constant 0 : index
    %141 = vector.load %arg9[%c0_45, %c0_46, %c0_47] : memref<1x32x64xbf16, #tpu.memory_space<vmem>>, vector<1x32x64xbf16>
    %142 = vector.shape_cast %141 : vector<1x32x64xbf16> to vector<32x64xbf16>
    %143 = arith.truncf %4 : vector<8x32xf32> to vector<8x32xbf16>
    %cst_48 = arith.constant dense<0.000000e+00> : vector<8x64xf32>
    %144 = tpu.matmul %143, %142, %cst_48 {dimension_numbers = #tpu.dot_dimension_numbers<[1], [0], [0], [1], [0, 0, 1, 1], [], []>} : vector<8x32xbf16>, vector<32x64xbf16>, vector<8x64xf32> -> vector<8x64xf32>
    %145 = vector.broadcast %12 : vector<1x64xf32> to vector<8x64xf32>
    %146 = arith.addf %144, %145 : vector<8x64xf32>
    %147 = vector.extract_strided_slice %146 {offsets = [0, 0], sizes = [8, 32], strides = [1, 1]} : vector<8x64xf32> to vector<8x32xf32>
    %148 = vector.extract_strided_slice %146 {offsets = [0, 32], sizes = [8, 32], strides = [1, 1]} : vector<8x64xf32> to vector<8x32xf32>
    %149 = vector.extract_strided_slice %140 {offsets = [0, 0], sizes = [8, 8], strides = [1, 1]} : vector<8x32xf32> to vector<8x8xf32>
    %150 = arith.truncf %149 : vector<8x8xf32> to vector<8x8xbf16>
    %151 = vector.extract_strided_slice %147 {offsets = [0, 0], sizes = [8, 8], strides = [1, 1]} : vector<8x32xf32> to vector<8x8xf32>
    %152 = tpu.transpose %151, [1, 0] : vector<8x8xf32> -> vector<8x8xf32>
    %153 = arith.truncf %152 : vector<8x8xf32> to vector<8x8xbf16>
    %cst_49 = arith.constant dense<0.000000e+00> : vector<8x8xf32>
    %154 = tpu.matmul %150, %153, %cst_49 {dimension_numbers = #tpu.dot_dimension_numbers<[1], [0], [0], [1], [0, 0, 1, 1], [], []>} : vector<8x8xbf16>, vector<8x8xbf16>, vector<8x8xf32> -> vector<8x8xf32>
    %155 = vector.extract_strided_slice %140 {offsets = [0, 8], sizes = [8, 8], strides = [1, 1]} : vector<8x32xf32> to vector<8x8xf32>
    %156 = arith.truncf %155 : vector<8x8xf32> to vector<8x8xbf16>
    %157 = vector.extract_strided_slice %147 {offsets = [0, 8], sizes = [8, 8], strides = [1, 1]} : vector<8x32xf32> to vector<8x8xf32>
    %158 = tpu.transpose %157, [1, 0] : vector<8x8xf32> -> vector<8x8xf32>
    %159 = arith.truncf %158 : vector<8x8xf32> to vector<8x8xbf16>
    %cst_50 = arith.constant dense<0.000000e+00> : vector<8x8xf32>
    %160 = tpu.matmul %156, %159, %cst_50 {dimension_numbers = #tpu.dot_dimension_numbers<[1], [0], [0], [1], [0, 0, 1, 1], [], []>} : vector<8x8xbf16>, vector<8x8xbf16>, vector<8x8xf32> -> vector<8x8xf32>
    %161 = vector.extract_strided_slice %140 {offsets = [0, 16], sizes = [8, 8], strides = [1, 1]} : vector<8x32xf32> to vector<8x8xf32>
    %162 = arith.truncf %161 : vector<8x8xf32> to vector<8x8xbf16>
    %163 = vector.extract_strided_slice %147 {offsets = [0, 16], sizes = [8, 8], strides = [1, 1]} : vector<8x32xf32> to vector<8x8xf32>
    %164 = tpu.transpose %163, [1, 0] : vector<8x8xf32> -> vector<8x8xf32>
    %165 = arith.truncf %164 : vector<8x8xf32> to vector<8x8xbf16>
    %cst_51 = arith.constant dense<0.000000e+00> : vector<8x8xf32>
    %166 = tpu.matmul %162, %165, %cst_51 {dimension_numbers = #tpu.dot_dimension_numbers<[1], [0], [0], [1], [0, 0, 1, 1], [], []>} : vector<8x8xbf16>, vector<8x8xbf16>, vector<8x8xf32> -> vector<8x8xf32>
    %167 = vector.extract_strided_slice %140 {offsets = [0, 24], sizes = [8, 8], strides = [1, 1]} : vector<8x32xf32> to vector<8x8xf32>
    %168 = arith.truncf %167 : vector<8x8xf32> to vector<8x8xbf16>
    %169 = vector.extract_strided_slice %147 {offsets = [0, 24], sizes = [8, 8], strides = [1, 1]} : vector<8x32xf32> to vector<8x8xf32>
    %170 = tpu.transpose %169, [1, 0] : vector<8x8xf32> -> vector<8x8xf32>
    %171 = arith.truncf %170 : vector<8x8xf32> to vector<8x8xbf16>
    %cst_52 = arith.constant dense<0.000000e+00> : vector<8x8xf32>
    %172 = tpu.matmul %168, %171, %cst_52 {dimension_numbers = #tpu.dot_dimension_numbers<[1], [0], [0], [1], [0, 0, 1, 1], [], []>} : vector<8x8xbf16>, vector<8x8xbf16>, vector<8x8xf32> -> vector<8x8xf32>
    %173 = tpu.concatenate %154, %160, %166, %172 in 0 : vector<8x8xf32>, vector<8x8xf32>, vector<8x8xf32>, vector<8x8xf32> -> vector<32x8xf32>
    %174 = vector.broadcast %39 : vector<1x8xf32> to vector<32x8xf32>
    %175 = arith.addf %173, %174 : vector<32x8xf32>
    %cst_53 = arith.constant dense<0xFF800000> : vector<32xf32>
    %176 = vector.multi_reduction <maximumf>, %175, %cst_53 [1] : vector<32x8xf32> to vector<32xf32>
    %177 = vector.shape_cast %176 : vector<32xf32> to vector<32x1xf32>
    %178 = vector.broadcast %177 : vector<32x1xf32> to vector<32x8xf32>
    %179 = arith.subf %175, %178 : vector<32x8xf32>
    %180 = math.exp %179 : vector<32x8xf32>
    %cst_54 = arith.constant dense<0.000000e+00> : vector<32xf32>
    %181 = vector.multi_reduction <add>, %180, %cst_54 [1] : vector<32x8xf32> to vector<32xf32>
    %182 = vector.shape_cast %181 : vector<32xf32> to vector<32x1xf32>
    %183 = tpu.reciprocal %182 {approx = true} : vector<32x1xf32> -> vector<32x1xf32>
    %184 = vector.broadcast %183 : vector<32x1xf32> to vector<32x8xf32>
    %185 = arith.mulf %180, %184 : vector<32x8xf32>
    %186 = vector.extract_strided_slice %185 {offsets = [0, 0], sizes = [8, 8], strides = [1, 1]} : vector<32x8xf32> to vector<8x8xf32>
    %187 = arith.truncf %186 : vector<8x8xf32> to vector<8x8xbf16>
    %188 = vector.extract_strided_slice %148 {offsets = [0, 0], sizes = [8, 8], strides = [1, 1]} : vector<8x32xf32> to vector<8x8xf32>
    %189 = arith.truncf %188 : vector<8x8xf32> to vector<8x8xbf16>
    %cst_55 = arith.constant dense<0.000000e+00> : vector<8x8xf32>
    %190 = tpu.matmul %187, %189, %cst_55 {dimension_numbers = #tpu.dot_dimension_numbers<[1], [0], [0], [1], [0, 0, 1, 1], [], []>} : vector<8x8xbf16>, vector<8x8xbf16>, vector<8x8xf32> -> vector<8x8xf32>
    %191 = vector.extract_strided_slice %185 {offsets = [8, 0], sizes = [8, 8], strides = [1, 1]} : vector<32x8xf32> to vector<8x8xf32>
    %192 = arith.truncf %191 : vector<8x8xf32> to vector<8x8xbf16>
    %193 = vector.extract_strided_slice %148 {offsets = [0, 8], sizes = [8, 8], strides = [1, 1]} : vector<8x32xf32> to vector<8x8xf32>
    %194 = arith.truncf %193 : vector<8x8xf32> to vector<8x8xbf16>
    %cst_56 = arith.constant dense<0.000000e+00> : vector<8x8xf32>
    %195 = tpu.matmul %192, %194, %cst_56 {dimension_numbers = #tpu.dot_dimension_numbers<[1], [0], [0], [1], [0, 0, 1, 1], [], []>} : vector<8x8xbf16>, vector<8x8xbf16>, vector<8x8xf32> -> vector<8x8xf32>
    %196 = vector.extract_strided_slice %185 {offsets = [16, 0], sizes = [8, 8], strides = [1, 1]} : vector<32x8xf32> to vector<8x8xf32>
    %197 = arith.truncf %196 : vector<8x8xf32> to vector<8x8xbf16>
    %198 = vector.extract_strided_slice %148 {offsets = [0, 16], sizes = [8, 8], strides = [1, 1]} : vector<8x32xf32> to vector<8x8xf32>
    %199 = arith.truncf %198 : vector<8x8xf32> to vector<8x8xbf16>
    %cst_57 = arith.constant dense<0.000000e+00> : vector<8x8xf32>
    %200 = tpu.matmul %197, %199, %cst_57 {dimension_numbers = #tpu.dot_dimension_numbers<[1], [0], [0], [1], [0, 0, 1, 1], [], []>} : vector<8x8xbf16>, vector<8x8xbf16>, vector<8x8xf32> -> vector<8x8xf32>
    %201 = vector.extract_strided_slice %185 {offsets = [24, 0], sizes = [8, 8], strides = [1, 1]} : vector<32x8xf32> to vector<8x8xf32>
    %202 = arith.truncf %201 : vector<8x8xf32> to vector<8x8xbf16>
    %203 = vector.extract_strided_slice %148 {offsets = [0, 24], sizes = [8, 8], strides = [1, 1]} : vector<8x32xf32> to vector<8x8xf32>
    %204 = arith.truncf %203 : vector<8x8xf32> to vector<8x8xbf16>
    %cst_58 = arith.constant dense<0.000000e+00> : vector<8x8xf32>
    %205 = tpu.matmul %202, %204, %cst_58 {dimension_numbers = #tpu.dot_dimension_numbers<[1], [0], [0], [1], [0, 0, 1, 1], [], []>} : vector<8x8xbf16>, vector<8x8xbf16>, vector<8x8xf32> -> vector<8x8xf32>
    %206 = tpu.concatenate %190, %195, %200, %205 in 1 : vector<8x8xf32>, vector<8x8xf32>, vector<8x8xf32>, vector<8x8xf32> -> vector<8x32xf32>
    %c0_59 = arith.constant 0 : index
    %c0_60 = arith.constant 0 : index
    %c0_61 = arith.constant 0 : index
    %207 = vector.load %arg10[%c0_59, %c0_60, %c0_61] : memref<1x32x32xbf16, #tpu.memory_space<vmem>>, vector<1x32x32xbf16>
    %208 = vector.shape_cast %207 : vector<1x32x32xbf16> to vector<32x32xbf16>
    %209 = arith.truncf %206 : vector<8x32xf32> to vector<8x32xbf16>
    %cst_62 = arith.constant dense<0.000000e+00> : vector<8x32xf32>
    %210 = tpu.matmul %209, %208, %cst_62 {dimension_numbers = #tpu.dot_dimension_numbers<[1], [0], [0], [1], [0, 0, 1, 1], [], []>} : vector<8x32xbf16>, vector<32x32xbf16>, vector<8x32xf32> -> vector<8x32xf32>
    %211 = arith.addf %134, %210 : vector<8x32xf32>
    %212 = vector.broadcast %13 : vector<1x32xf32> to vector<8x32xf32>
    %213 = arith.addf %211, %212 : vector<8x32xf32>
    %cst_63 = arith.constant dense<0.000000e+00> : vector<8xf32>
    %214 = vector.multi_reduction <add>, %213, %cst_63 [1] : vector<8x32xf32> to vector<8xf32>
    %215 = vector.shape_cast %214 : vector<8xf32> to vector<8x1xf32>
    %cst_64 = arith.constant 3.200000e+01 : f32
    %216 = vector.broadcast %cst_64 : f32 to vector<8x1xf32>
    %217 = arith.divf %215, %216 : vector<8x1xf32>
    %218 = vector.broadcast %217 : vector<8x1xf32> to vector<8x32xf32>
    %219 = arith.subf %213, %218 : vector<8x32xf32>
    %220 = arith.mulf %219, %219 : vector<8x32xf32>
    %cst_65 = arith.constant dense<0.000000e+00> : vector<8xf32>
    %221 = vector.multi_reduction <add>, %220, %cst_65 [1] : vector<8x32xf32> to vector<8xf32>
    %222 = vector.shape_cast %221 : vector<8xf32> to vector<8x1xf32>
    %cst_66 = arith.constant 3.200000e+01 : f32
    %223 = vector.broadcast %cst_66 : f32 to vector<8x1xf32>
    %224 = arith.divf %222, %223 : vector<8x1xf32>
    %225 = vector.broadcast %217 : vector<8x1xf32> to vector<8x32xf32>
    %226 = arith.subf %213, %225 : vector<8x32xf32>
    %cst_67 = arith.constant 9.99999974E-6 : f32
    %227 = vector.broadcast %cst_67 : f32 to vector<8x1xf32>
    %228 = arith.addf %224, %227 : vector<8x1xf32>
    %229 = math.rsqrt %228 : vector<8x1xf32>
    %230 = vector.broadcast %229 : vector<8x1xf32> to vector<8x32xf32>
    %231 = arith.mulf %226, %230 : vector<8x32xf32>
    %232 = vector.broadcast %14 : vector<1x32xf32> to vector<8x32xf32>
    %233 = arith.mulf %231, %232 : vector<8x32xf32>
    %234 = vector.broadcast %15 : vector<1x32xf32> to vector<8x32xf32>
    %235 = arith.addf %233, %234 : vector<8x32xf32>
    %c0_68 = arith.constant 0 : index
    %c0_69 = arith.constant 0 : index
    %c0_70 = arith.constant 0 : index
    %236 = vector.load %arg11[%c0_68, %c0_69, %c0_70] : memref<1x32x64xbf16, #tpu.memory_space<vmem>>, vector<1x32x64xbf16>
    %237 = vector.shape_cast %236 : vector<1x32x64xbf16> to vector<32x64xbf16>
    %238 = arith.truncf %235 : vector<8x32xf32> to vector<8x32xbf16>
    %cst_71 = arith.constant dense<0.000000e+00> : vector<8x64xf32>
    %239 = tpu.matmul %238, %237, %cst_71 {dimension_numbers = #tpu.dot_dimension_numbers<[1], [0], [0], [1], [0, 0, 1, 1], [], []>} : vector<8x32xbf16>, vector<32x64xbf16>, vector<8x64xf32> -> vector<8x64xf32>
    %240 = vector.broadcast %16 : vector<1x64xf32> to vector<8x64xf32>
    %241 = arith.addf %239, %240 : vector<8x64xf32>
    %cst_72 = arith.constant 0.000000e+00 : f32
    %242 = vector.broadcast %cst_72 : f32 to vector<8x64xf32>
    %243 = arith.cmpf ogt, %241, %242 : vector<8x64xf32>
    %cst_73 = arith.constant 0.00999999977 : f32
    %244 = vector.broadcast %cst_73 : f32 to vector<8x64xf32>
    %245 = arith.mulf %244, %241 : vector<8x64xf32>
    %246 = arith.select %243, %241, %245 : vector<8x64xi1>, vector<8x64xf32>
    %c0_74 = arith.constant 0 : index
    %c0_75 = arith.constant 0 : index
    %c0_76 = arith.constant 0 : index
    %247 = vector.load %arg12[%c0_74, %c0_75, %c0_76] : memref<1x64x32xbf16, #tpu.memory_space<vmem>>, vector<1x64x32xbf16>
    %248 = vector.shape_cast %247 : vector<1x64x32xbf16> to vector<64x32xbf16>
    %249 = arith.truncf %246 : vector<8x64xf32> to vector<8x64xbf16>
    %cst_77 = arith.constant dense<0.000000e+00> : vector<8x32xf32>
    %250 = tpu.matmul %249, %248, %cst_77 {dimension_numbers = #tpu.dot_dimension_numbers<[1], [0], [0], [1], [0, 0, 1, 1], [], []>} : vector<8x64xbf16>, vector<64x32xbf16>, vector<8x32xf32> -> vector<8x32xf32>
    %251 = arith.addf %235, %250 : vector<8x32xf32>
    %252 = vector.broadcast %17 : vector<1x32xf32> to vector<8x32xf32>
    %253 = arith.addf %251, %252 : vector<8x32xf32>
    %cst_78 = arith.constant dense<0.000000e+00> : vector<8xf32>
    %254 = vector.multi_reduction <add>, %253, %cst_78 [1] : vector<8x32xf32> to vector<8xf32>
    %255 = vector.shape_cast %254 : vector<8xf32> to vector<8x1xf32>
    %cst_79 = arith.constant 3.200000e+01 : f32
    %256 = vector.broadcast %cst_79 : f32 to vector<8x1xf32>
    %257 = arith.divf %255, %256 : vector<8x1xf32>
    %258 = vector.broadcast %257 : vector<8x1xf32> to vector<8x32xf32>
    %259 = arith.subf %253, %258 : vector<8x32xf32>
    %260 = arith.mulf %259, %259 : vector<8x32xf32>
    %cst_80 = arith.constant dense<0.000000e+00> : vector<8xf32>
    %261 = vector.multi_reduction <add>, %260, %cst_80 [1] : vector<8x32xf32> to vector<8xf32>
    %262 = vector.shape_cast %261 : vector<8xf32> to vector<8x1xf32>
    %cst_81 = arith.constant 3.200000e+01 : f32
    %263 = vector.broadcast %cst_81 : f32 to vector<8x1xf32>
    %264 = arith.divf %262, %263 : vector<8x1xf32>
    %265 = vector.broadcast %257 : vector<8x1xf32> to vector<8x32xf32>
    %266 = arith.subf %253, %265 : vector<8x32xf32>
    %cst_82 = arith.constant 9.99999974E-6 : f32
    %267 = vector.broadcast %cst_82 : f32 to vector<8x1xf32>
    %268 = arith.addf %264, %267 : vector<8x1xf32>
    %269 = math.rsqrt %268 : vector<8x1xf32>
    %270 = vector.broadcast %269 : vector<8x1xf32> to vector<8x32xf32>
    %271 = arith.mulf %266, %270 : vector<8x32xf32>
    %272 = vector.broadcast %18 : vector<1x32xf32> to vector<8x32xf32>
    %273 = arith.mulf %271, %272 : vector<8x32xf32>
    %274 = vector.broadcast %19 : vector<1x32xf32> to vector<8x32xf32>
    %275 = arith.addf %273, %274 : vector<8x32xf32>
    %c0_83 = arith.constant 0 : index
    %c0_84 = arith.constant 0 : index
    %276 = vector.load %arg17[%c0_83, %c0_84] : memref<8x32xf32, #tpu.memory_space<vmem>>, vector<8x32xf32>
    tpu.vector_store %arg17[%c0_83, %c0_84], %275 {strides = array<i32>} : memref<8x32xf32, #tpu.memory_space<vmem>>, vector<8x32xf32>,
    %c1_i32 = arith.constant 1 : i32
    %277 = arith.cmpi eq, %arg1, %c1_i32 : i32
    %278 = arith.extui %277 : i1 to i32
    %c0_i32_85 = arith.constant 0 : i32
    %279 = arith.cmpi ne, %278, %c0_i32_85 : i32
    scf.if %279 {
      %c0_86 = arith.constant 0 : index
      %c0_87 = arith.constant 0 : index
      %280 = vector.load %arg14[%c0_86, %c0_87] : memref<32x64xbf16, #tpu.memory_space<vmem>>, vector<32x64xbf16>
      %281 = arith.truncf %275 : vector<8x32xf32> to vector<8x32xbf16>
      %cst_88 = arith.constant dense<0.000000e+00> : vector<8x64xf32>
      %282 = tpu.matmul %281, %280, %cst_88 {dimension_numbers = #tpu.dot_dimension_numbers<[1], [0], [0], [1], [0, 0, 1, 1], [], []>} : vector<8x32xbf16>, vector<32x64xbf16>, vector<8x64xf32> -> vector<8x64xf32>
      %c0_89 = arith.constant 0 : index
      %c0_90 = arith.constant 0 : index
      %283 = vector.load %arg15[%c0_89, %c0_90] : memref<1x64xf32, #tpu.memory_space<vmem>>, vector<1x64xf32>
      %284 = vector.broadcast %283 : vector<1x64xf32> to vector<8x64xf32>
      %285 = arith.addf %282, %284 : vector<8x64xf32>
      %c0_91 = arith.constant 0 : index
      %c0_92 = arith.constant 0 : index
      %286 = vector.load %arg16[%c0_91, %c0_92] : memref<8x64xf32, #tpu.memory_space<vmem>>, vector<8x64xf32>
      tpu.vector_store %arg16[%c0_91, %c0_92], %285 {strides = array<i32>} : memref<8x64xf32, #tpu.memory_space<vmem>>, vector<8x64xf32>,
    } else {
    }
    return
  }
  func.func @transform_0(%arg0: i32, %arg1: i32) -> (i32, i32, i32) {
    %c0_i32 = arith.constant 0 : i32
    %c0_i32_0 = arith.constant 0 : i32
    %c0_i32_1 = arith.constant 0 : i32
    return %arg0, %c0_i32, %c0_i32_0 : i32, i32, i32
  }
  func.func @transform_1(%arg0: i32, %arg1: i32) -> (i32, i32, i32) {
    %c0_i32 = arith.constant 0 : i32
    %c0_i32_0 = arith.constant 0 : i32
    %c0_i32_1 = arith.constant 0 : i32
    return %arg0, %c0_i32, %c0_i32_0 : i32, i32, i32
  }
  func.func @transform_2(%arg0: i32, %arg1: i32) -> (i32, i32) {
    %c0_i32 = arith.constant 0 : i32
    %c0_i32_0 = arith.constant 0 : i32
    return %arg0, %c0_i32 : i32, i32
  }
  func.func @transform_3(%arg0: i32, %arg1: i32) -> (i32, i32) {
    %c0_i32 = arith.constant 0 : i32
    %c0_i32_0 = arith.constant 0 : i32
    return %arg0, %c0_i32 : i32, i32
  }
  func.func @transform_4(%arg0: i32, %arg1: i32) -> (i32, i32, i32) {
    %c0_i32 = arith.constant 0 : i32
    %c0_i32_0 = arith.constant 0 : i32
    %c0_i32_1 = arith.constant 0 : i32
    return %arg1, %c0_i32, %c0_i32_0 : i32, i32, i32
  }
  func.func @transform_5(%arg0: i32, %arg1: i32) -> (i32, i32, i32) {
    %c0_i32 = arith.constant 0 : i32
    %c0_i32_0 = arith.constant 0 : i32
    %c0_i32_1 = arith.constant 0 : i32
    return %arg1, %c0_i32, %c0_i32_0 : i32, i32, i32
  }
  func.func @transform_6(%arg0: i32, %arg1: i32) -> (i32, i32, i32) {
    %c0_i32 = arith.constant 0 : i32
    %c0_i32_0 = arith.constant 0 : i32
    %c0_i32_1 = arith.constant 0 : i32
    return %arg1, %c0_i32, %c0_i32_0 : i32, i32, i32
  }
  func.func @transform_7(%arg0: i32, %arg1: i32) -> (i32, i32, i32) {
    %c0_i32 = arith.constant 0 : i32
    %c0_i32_0 = arith.constant 0 : i32
    %c0_i32_1 = arith.constant 0 : i32
    return %arg1, %c0_i32, %c0_i32_0 : i32, i32, i32
  }
  func.func @transform_8(%arg0: i32, %arg1: i32) -> (i32, i32, i32) {
    %c0_i32 = arith.constant 0 : i32
    %c0_i32_0 = arith.constant 0 : i32
    %c0_i32_1 = arith.constant 0 : i32
    return %arg1, %c0_i32, %c0_i32_0 : i32, i32, i32
  }
  func.func @transform_9(%arg0: i32, %arg1: i32) -> (i32, i32, i32) {
    %c0_i32 = arith.constant 0 : i32
    %c0_i32_0 = arith.constant 0 : i32
    %c0_i32_1 = arith.constant 0 : i32
    return %arg1, %c0_i32, %c0_i32_0 : i32, i32, i32
  }
  func.func @transform_10(%arg0: i32, %arg1: i32) -> (i32, i32, i32) {
    %c0_i32 = arith.constant 0 : i32
    %c0_i32_0 = arith.constant 0 : i32
    %c0_i32_1 = arith.constant 0 : i32
    return %arg1, %c0_i32, %c0_i32_0 : i32, i32, i32
  }
  func.func @transform_11(%arg0: i32, %arg1: i32) -> (i32, i32, i32) {
    %c0_i32 = arith.constant 0 : i32
    %c0_i32_0 = arith.constant 0 : i32
    %c0_i32_1 = arith.constant 0 : i32
    return %arg1, %c0_i32, %c0_i32_0 : i32, i32, i32
  }
  func.func @transform_12(%arg0: i32, %arg1: i32) -> (i32, i32) {
    %c0_i32 = arith.constant 0 : i32
    %c0_i32_0 = arith.constant 0 : i32
    %c0_i32_1 = arith.constant 0 : i32
    return %c0_i32, %c0_i32_0 : i32, i32
  }
  func.func @transform_13(%arg0: i32, %arg1: i32) -> (i32, i32) {
    %c0_i32 = arith.constant 0 : i32
    %c0_i32_0 = arith.constant 0 : i32
    %c0_i32_1 = arith.constant 0 : i32
    return %c0_i32, %c0_i32_0 : i32, i32
  }
  func.func @transform_14(%arg0: i32, %arg1: i32) -> (i32, i32) {
    %c0_i32 = arith.constant 0 : i32
    %c0_i32_0 = arith.constant 0 : i32
    return %arg0, %c0_i32 : i32, i32
  }
}

module attributes {stable_mosaic.version = 11 : i64} {
  func.func @_encoder_stack_kernel(%arg0: i32, %arg1: i32, %arg2: memref<1x1x8xf32, #tpu.memory_space<vmem>>, %arg3: memref<8x32xf32, #tpu.memory_space<vmem>>, %arg4: memref<1x32x96xbf16, #tpu.memory_space<vmem>>, %arg5: memref<1x32x32xbf16, #tpu.memory_space<vmem>>, %arg6: memref<1x32x64xbf16, #tpu.memory_space<vmem>>, %arg7: memref<1x64x32xbf16, #tpu.memory_space<vmem>>, %arg8: memref<1x8x96xf32, #tpu.memory_space<vmem>>, %arg9: memref<8x32xf32, #tpu.memory_space<vmem>>, %arg10: memref<8x32xf32, #tpu.memory_space<vmem>>) attributes {dimension_semantics = [#tpu.dimension_semantics<parallel>, #tpu.dimension_semantics<arbitrary>], iteration_bounds = array<i64: 2, 2>, scalar_prefetch = 0 : i64, scratch_operands = 1 : i64, tpu.core_type = #tpu.core_type<tc>, window_params = [{transform_indices = @transform_0, window_bounds = array<i64: 1, 1, 8>}, {transform_indices = @transform_1, window_bounds = array<i64: 8, 32>}, {transform_indices = @transform_2, window_bounds = array<i64: 1, 32, 96>}, {transform_indices = @transform_3, window_bounds = array<i64: 1, 32, 32>}, {transform_indices = @transform_4, window_bounds = array<i64: 1, 32, 64>}, {transform_indices = @transform_5, window_bounds = array<i64: 1, 64, 32>}, {transform_indices = @transform_6, window_bounds = array<i64: 1, 8, 96>}, {transform_indices = @transform_7, window_bounds = array<i64: 8, 32>}]} {
    %c0_i32 = arith.constant 0 : i32
    %0 = arith.cmpi eq, %arg1, %c0_i32 : i32
    %1 = arith.extui %0 : i1 to i32
    %c0_i32_0 = arith.constant 0 : i32
    %2 = arith.cmpi ne, %1, %c0_i32_0 : i32
    scf.if %2 {
      %c0_51 = arith.constant 0 : index
      %c0_52 = arith.constant 0 : index
      %161 = vector.load %arg3[%c0_51, %c0_52] : memref<8x32xf32, #tpu.memory_space<vmem>>, vector<8x32xf32>
      %c0_53 = arith.constant 0 : index
      %c0_54 = arith.constant 0 : index
      %162 = vector.load %arg10[%c0_53, %c0_54] : memref<8x32xf32, #tpu.memory_space<vmem>>, vector<8x32xf32>
      tpu.vector_store %arg10[%c0_53, %c0_54], %161 {strides = array<i32>} : memref<8x32xf32, #tpu.memory_space<vmem>>, vector<8x32xf32>,
    } else {
    }
    %c0 = arith.constant 0 : index
    %c0_1 = arith.constant 0 : index
    %3 = vector.load %arg10[%c0, %c0_1] : memref<8x32xf32, #tpu.memory_space<vmem>>, vector<8x32xf32>
    %c0_2 = arith.constant 0 : index
    %c0_3 = arith.constant 0 : index
    %c0_4 = arith.constant 0 : index
    %4 = vector.load %arg8[%c0_2, %c0_3, %c0_4] : memref<1x8x96xf32, #tpu.memory_space<vmem>>, vector<1x8x96xf32>
    %5 = vector.shape_cast %4 : vector<1x8x96xf32> to vector<8x96xf32>
    %6 = vector.extract_strided_slice %5 {offsets = [0, 0], sizes = [1, 96], strides = [1, 1]} : vector<8x96xf32> to vector<1x96xf32>
    %7 = vector.extract_strided_slice %5 {offsets = [1, 0], sizes = [1, 32], strides = [1, 1]} : vector<8x96xf32> to vector<1x32xf32>
    %8 = vector.extract_strided_slice %5 {offsets = [2, 0], sizes = [1, 32], strides = [1, 1]} : vector<8x96xf32> to vector<1x32xf32>
    %9 = vector.extract_strided_slice %5 {offsets = [3, 0], sizes = [1, 32], strides = [1, 1]} : vector<8x96xf32> to vector<1x32xf32>
    %10 = vector.extract_strided_slice %5 {offsets = [4, 0], sizes = [1, 64], strides = [1, 1]} : vector<8x96xf32> to vector<1x64xf32>
    %11 = vector.extract_strided_slice %5 {offsets = [5, 0], sizes = [1, 32], strides = [1, 1]} : vector<8x96xf32> to vector<1x32xf32>
    %12 = vector.extract_strided_slice %5 {offsets = [6, 0], sizes = [1, 32], strides = [1, 1]} : vector<8x96xf32> to vector<1x32xf32>
    %13 = vector.extract_strided_slice %5 {offsets = [7, 0], sizes = [1, 32], strides = [1, 1]} : vector<8x96xf32> to vector<1x32xf32>
    %c0_5 = arith.constant 0 : index
    %c0_6 = arith.constant 0 : index
    %c0_7 = arith.constant 0 : index
    %14 = vector.load %arg2[%c0_5, %c0_6, %c0_7] : memref<1x1x8xf32, #tpu.memory_space<vmem>>, vector<1x1x8xf32>
    %15 = vector.shape_cast %14 : vector<1x1x8xf32> to vector<1x8xf32>
    %cst = arith.constant 5.000000e-01 : f32
    %16 = vector.broadcast %cst : f32 to vector<1x8xf32>
    %17 = arith.cmpf ogt, %15, %16 : vector<1x8xf32>
    %cst_8 = arith.constant 0.000000e+00 : f32
    %cst_9 = arith.constant -1.000000e+09 : f32
    %18 = vector.broadcast %cst_8 : f32 to vector<1x8xf32>
    %19 = vector.broadcast %cst_9 : f32 to vector<1x8xf32>
    %20 = arith.select %17, %18, %19 : vector<1x8xi1>, vector<1x8xf32>
    %c0_10 = arith.constant 0 : index
    %c0_11 = arith.constant 0 : index
    %c0_12 = arith.constant 0 : index
    %21 = vector.load %arg4[%c0_10, %c0_11, %c0_12] : memref<1x32x96xbf16, #tpu.memory_space<vmem>>, vector<1x32x96xbf16>
    %22 = vector.shape_cast %21 : vector<1x32x96xbf16> to vector<32x96xbf16>
    %23 = arith.truncf %3 : vector<8x32xf32> to vector<8x32xbf16>
    %cst_13 = arith.constant dense<0.000000e+00> : vector<8x96xf32>
    %24 = tpu.matmul %23, %22, %cst_13 {dimension_numbers = #tpu.dot_dimension_numbers<[1], [0], [0], [1], [0, 0, 1, 1], [], []>} : vector<8x32xbf16>, vector<32x96xbf16>, vector<8x96xf32> -> vector<8x96xf32>
    %25 = vector.broadcast %6 : vector<1x96xf32> to vector<8x96xf32>
    %26 = arith.addf %24, %25 : vector<8x96xf32>
    %27 = vector.extract_strided_slice %26 {offsets = [0, 0], sizes = [8, 32], strides = [1, 1]} : vector<8x96xf32> to vector<8x32xf32>
    %28 = vector.extract_strided_slice %26 {offsets = [0, 32], sizes = [8, 32], strides = [1, 1]} : vector<8x96xf32> to vector<8x32xf32>
    %29 = vector.extract_strided_slice %26 {offsets = [0, 64], sizes = [8, 32], strides = [1, 1]} : vector<8x96xf32> to vector<8x32xf32>
    %30 = vector.extract_strided_slice %27 {offsets = [0, 0], sizes = [8, 8], strides = [1, 1]} : vector<8x32xf32> to vector<8x8xf32>
    %31 = arith.truncf %30 : vector<8x8xf32> to vector<8x8xbf16>
    %32 = vector.extract_strided_slice %28 {offsets = [0, 0], sizes = [8, 8], strides = [1, 1]} : vector<8x32xf32> to vector<8x8xf32>
    %33 = tpu.transpose %32, [1, 0] : vector<8x8xf32> -> vector<8x8xf32>
    %34 = arith.truncf %33 : vector<8x8xf32> to vector<8x8xbf16>
    %cst_14 = arith.constant dense<0.000000e+00> : vector<8x8xf32>
    %35 = tpu.matmul %31, %34, %cst_14 {dimension_numbers = #tpu.dot_dimension_numbers<[1], [0], [0], [1], [0, 0, 1, 1], [], []>} : vector<8x8xbf16>, vector<8x8xbf16>, vector<8x8xf32> -> vector<8x8xf32>
    %36 = vector.extract_strided_slice %27 {offsets = [0, 8], sizes = [8, 8], strides = [1, 1]} : vector<8x32xf32> to vector<8x8xf32>
    %37 = arith.truncf %36 : vector<8x8xf32> to vector<8x8xbf16>
    %38 = vector.extract_strided_slice %28 {offsets = [0, 8], sizes = [8, 8], strides = [1, 1]} : vector<8x32xf32> to vector<8x8xf32>
    %39 = tpu.transpose %38, [1, 0] : vector<8x8xf32> -> vector<8x8xf32>
    %40 = arith.truncf %39 : vector<8x8xf32> to vector<8x8xbf16>
    %cst_15 = arith.constant dense<0.000000e+00> : vector<8x8xf32>
    %41 = tpu.matmul %37, %40, %cst_15 {dimension_numbers = #tpu.dot_dimension_numbers<[1], [0], [0], [1], [0, 0, 1, 1], [], []>} : vector<8x8xbf16>, vector<8x8xbf16>, vector<8x8xf32> -> vector<8x8xf32>
    %42 = vector.extract_strided_slice %27 {offsets = [0, 16], sizes = [8, 8], strides = [1, 1]} : vector<8x32xf32> to vector<8x8xf32>
    %43 = arith.truncf %42 : vector<8x8xf32> to vector<8x8xbf16>
    %44 = vector.extract_strided_slice %28 {offsets = [0, 16], sizes = [8, 8], strides = [1, 1]} : vector<8x32xf32> to vector<8x8xf32>
    %45 = tpu.transpose %44, [1, 0] : vector<8x8xf32> -> vector<8x8xf32>
    %46 = arith.truncf %45 : vector<8x8xf32> to vector<8x8xbf16>
    %cst_16 = arith.constant dense<0.000000e+00> : vector<8x8xf32>
    %47 = tpu.matmul %43, %46, %cst_16 {dimension_numbers = #tpu.dot_dimension_numbers<[1], [0], [0], [1], [0, 0, 1, 1], [], []>} : vector<8x8xbf16>, vector<8x8xbf16>, vector<8x8xf32> -> vector<8x8xf32>
    %48 = vector.extract_strided_slice %27 {offsets = [0, 24], sizes = [8, 8], strides = [1, 1]} : vector<8x32xf32> to vector<8x8xf32>
    %49 = arith.truncf %48 : vector<8x8xf32> to vector<8x8xbf16>
    %50 = vector.extract_strided_slice %28 {offsets = [0, 24], sizes = [8, 8], strides = [1, 1]} : vector<8x32xf32> to vector<8x8xf32>
    %51 = tpu.transpose %50, [1, 0] : vector<8x8xf32> -> vector<8x8xf32>
    %52 = arith.truncf %51 : vector<8x8xf32> to vector<8x8xbf16>
    %cst_17 = arith.constant dense<0.000000e+00> : vector<8x8xf32>
    %53 = tpu.matmul %49, %52, %cst_17 {dimension_numbers = #tpu.dot_dimension_numbers<[1], [0], [0], [1], [0, 0, 1, 1], [], []>} : vector<8x8xbf16>, vector<8x8xbf16>, vector<8x8xf32> -> vector<8x8xf32>
    %54 = tpu.concatenate %35, %41, %47, %53 in 0 : vector<8x8xf32>, vector<8x8xf32>, vector<8x8xf32>, vector<8x8xf32> -> vector<32x8xf32>
    %55 = vector.broadcast %20 : vector<1x8xf32> to vector<32x8xf32>
    %56 = arith.addf %54, %55 : vector<32x8xf32>
    %cst_18 = arith.constant dense<0xFF800000> : vector<32xf32>
    %57 = vector.multi_reduction <maximumf>, %56, %cst_18 [1] : vector<32x8xf32> to vector<32xf32>
    %58 = vector.shape_cast %57 : vector<32xf32> to vector<32x1xf32>
    %59 = vector.broadcast %58 : vector<32x1xf32> to vector<32x8xf32>
    %60 = arith.subf %56, %59 : vector<32x8xf32>
    %61 = math.exp %60 : vector<32x8xf32>
    %cst_19 = arith.constant dense<0.000000e+00> : vector<32xf32>
    %62 = vector.multi_reduction <add>, %61, %cst_19 [1] : vector<32x8xf32> to vector<32xf32>
    %63 = vector.shape_cast %62 : vector<32xf32> to vector<32x1xf32>
    %64 = tpu.reciprocal %63 {approx = true} : vector<32x1xf32> -> vector<32x1xf32>
    %65 = vector.broadcast %64 : vector<32x1xf32> to vector<32x8xf32>
    %66 = arith.mulf %61, %65 : vector<32x8xf32>
    %67 = vector.extract_strided_slice %66 {offsets = [0, 0], sizes = [8, 8], strides = [1, 1]} : vector<32x8xf32> to vector<8x8xf32>
    %68 = arith.truncf %67 : vector<8x8xf32> to vector<8x8xbf16>
    %69 = vector.extract_strided_slice %29 {offsets = [0, 0], sizes = [8, 8], strides = [1, 1]} : vector<8x32xf32> to vector<8x8xf32>
    %70 = arith.truncf %69 : vector<8x8xf32> to vector<8x8xbf16>
    %cst_20 = arith.constant dense<0.000000e+00> : vector<8x8xf32>
    %71 = tpu.matmul %68, %70, %cst_20 {dimension_numbers = #tpu.dot_dimension_numbers<[1], [0], [0], [1], [0, 0, 1, 1], [], []>} : vector<8x8xbf16>, vector<8x8xbf16>, vector<8x8xf32> -> vector<8x8xf32>
    %72 = vector.extract_strided_slice %66 {offsets = [8, 0], sizes = [8, 8], strides = [1, 1]} : vector<32x8xf32> to vector<8x8xf32>
    %73 = arith.truncf %72 : vector<8x8xf32> to vector<8x8xbf16>
    %74 = vector.extract_strided_slice %29 {offsets = [0, 8], sizes = [8, 8], strides = [1, 1]} : vector<8x32xf32> to vector<8x8xf32>
    %75 = arith.truncf %74 : vector<8x8xf32> to vector<8x8xbf16>
    %cst_21 = arith.constant dense<0.000000e+00> : vector<8x8xf32>
    %76 = tpu.matmul %73, %75, %cst_21 {dimension_numbers = #tpu.dot_dimension_numbers<[1], [0], [0], [1], [0, 0, 1, 1], [], []>} : vector<8x8xbf16>, vector<8x8xbf16>, vector<8x8xf32> -> vector<8x8xf32>
    %77 = vector.extract_strided_slice %66 {offsets = [16, 0], sizes = [8, 8], strides = [1, 1]} : vector<32x8xf32> to vector<8x8xf32>
    %78 = arith.truncf %77 : vector<8x8xf32> to vector<8x8xbf16>
    %79 = vector.extract_strided_slice %29 {offsets = [0, 16], sizes = [8, 8], strides = [1, 1]} : vector<8x32xf32> to vector<8x8xf32>
    %80 = arith.truncf %79 : vector<8x8xf32> to vector<8x8xbf16>
    %cst_22 = arith.constant dense<0.000000e+00> : vector<8x8xf32>
    %81 = tpu.matmul %78, %80, %cst_22 {dimension_numbers = #tpu.dot_dimension_numbers<[1], [0], [0], [1], [0, 0, 1, 1], [], []>} : vector<8x8xbf16>, vector<8x8xbf16>, vector<8x8xf32> -> vector<8x8xf32>
    %82 = vector.extract_strided_slice %66 {offsets = [24, 0], sizes = [8, 8], strides = [1, 1]} : vector<32x8xf32> to vector<8x8xf32>
    %83 = arith.truncf %82 : vector<8x8xf32> to vector<8x8xbf16>
    %84 = vector.extract_strided_slice %29 {offsets = [0, 24], sizes = [8, 8], strides = [1, 1]} : vector<8x32xf32> to vector<8x8xf32>
    %85 = arith.truncf %84 : vector<8x8xf32> to vector<8x8xbf16>
    %cst_23 = arith.constant dense<0.000000e+00> : vector<8x8xf32>
    %86 = tpu.matmul %83, %85, %cst_23 {dimension_numbers = #tpu.dot_dimension_numbers<[1], [0], [0], [1], [0, 0, 1, 1], [], []>} : vector<8x8xbf16>, vector<8x8xbf16>, vector<8x8xf32> -> vector<8x8xf32>
    %87 = tpu.concatenate %71, %76, %81, %86 in 1 : vector<8x8xf32>, vector<8x8xf32>, vector<8x8xf32>, vector<8x8xf32> -> vector<8x32xf32>
    %c0_24 = arith.constant 0 : index
    %c0_25 = arith.constant 0 : index
    %c0_26 = arith.constant 0 : index
    %88 = vector.load %arg5[%c0_24, %c0_25, %c0_26] : memref<1x32x32xbf16, #tpu.memory_space<vmem>>, vector<1x32x32xbf16>
    %89 = vector.shape_cast %88 : vector<1x32x32xbf16> to vector<32x32xbf16>
    %90 = arith.truncf %87 : vector<8x32xf32> to vector<8x32xbf16>
    %cst_27 = arith.constant dense<0.000000e+00> : vector<8x32xf32>
    %91 = tpu.matmul %90, %89, %cst_27 {dimension_numbers = #tpu.dot_dimension_numbers<[1], [0], [0], [1], [0, 0, 1, 1], [], []>} : vector<8x32xbf16>, vector<32x32xbf16>, vector<8x32xf32> -> vector<8x32xf32>
    %92 = arith.addf %3, %91 : vector<8x32xf32>
    %93 = vector.broadcast %7 : vector<1x32xf32> to vector<8x32xf32>
    %94 = arith.addf %92, %93 : vector<8x32xf32>
    %cst_28 = arith.constant dense<0.000000e+00> : vector<8xf32>
    %95 = vector.multi_reduction <add>, %94, %cst_28 [1] : vector<8x32xf32> to vector<8xf32>
    %96 = vector.shape_cast %95 : vector<8xf32> to vector<8x1xf32>
    %cst_29 = arith.constant 3.200000e+01 : f32
    %97 = vector.broadcast %cst_29 : f32 to vector<8x1xf32>
    %98 = arith.divf %96, %97 : vector<8x1xf32>
    %99 = vector.broadcast %98 : vector<8x1xf32> to vector<8x32xf32>
    %100 = arith.subf %94, %99 : vector<8x32xf32>
    %101 = arith.mulf %100, %100 : vector<8x32xf32>
    %cst_30 = arith.constant dense<0.000000e+00> : vector<8xf32>
    %102 = vector.multi_reduction <add>, %101, %cst_30 [1] : vector<8x32xf32> to vector<8xf32>
    %103 = vector.shape_cast %102 : vector<8xf32> to vector<8x1xf32>
    %cst_31 = arith.constant 3.200000e+01 : f32
    %104 = vector.broadcast %cst_31 : f32 to vector<8x1xf32>
    %105 = arith.divf %103, %104 : vector<8x1xf32>
    %106 = vector.broadcast %98 : vector<8x1xf32> to vector<8x32xf32>
    %107 = arith.subf %94, %106 : vector<8x32xf32>
    %cst_32 = arith.constant 9.99999974E-6 : f32
    %108 = vector.broadcast %cst_32 : f32 to vector<8x1xf32>
    %109 = arith.addf %105, %108 : vector<8x1xf32>
    %110 = math.rsqrt %109 : vector<8x1xf32>
    %111 = vector.broadcast %110 : vector<8x1xf32> to vector<8x32xf32>
    %112 = arith.mulf %107, %111 : vector<8x32xf32>
    %113 = vector.broadcast %8 : vector<1x32xf32> to vector<8x32xf32>
    %114 = arith.mulf %112, %113 : vector<8x32xf32>
    %115 = vector.broadcast %9 : vector<1x32xf32> to vector<8x32xf32>
    %116 = arith.addf %114, %115 : vector<8x32xf32>
    %c0_33 = arith.constant 0 : index
    %c0_34 = arith.constant 0 : index
    %c0_35 = arith.constant 0 : index
    %117 = vector.load %arg6[%c0_33, %c0_34, %c0_35] : memref<1x32x64xbf16, #tpu.memory_space<vmem>>, vector<1x32x64xbf16>
    %118 = vector.shape_cast %117 : vector<1x32x64xbf16> to vector<32x64xbf16>
    %119 = arith.truncf %116 : vector<8x32xf32> to vector<8x32xbf16>
    %cst_36 = arith.constant dense<0.000000e+00> : vector<8x64xf32>
    %120 = tpu.matmul %119, %118, %cst_36 {dimension_numbers = #tpu.dot_dimension_numbers<[1], [0], [0], [1], [0, 0, 1, 1], [], []>} : vector<8x32xbf16>, vector<32x64xbf16>, vector<8x64xf32> -> vector<8x64xf32>
    %121 = vector.broadcast %10 : vector<1x64xf32> to vector<8x64xf32>
    %122 = arith.addf %120, %121 : vector<8x64xf32>
    %cst_37 = arith.constant 0.000000e+00 : f32
    %123 = vector.broadcast %cst_37 : f32 to vector<8x64xf32>
    %124 = arith.cmpf ogt, %122, %123 : vector<8x64xf32>
    %cst_38 = arith.constant 0.00999999977 : f32
    %125 = vector.broadcast %cst_38 : f32 to vector<8x64xf32>
    %126 = arith.mulf %125, %122 : vector<8x64xf32>
    %127 = arith.select %124, %122, %126 : vector<8x64xi1>, vector<8x64xf32>
    %c0_39 = arith.constant 0 : index
    %c0_40 = arith.constant 0 : index
    %c0_41 = arith.constant 0 : index
    %128 = vector.load %arg7[%c0_39, %c0_40, %c0_41] : memref<1x64x32xbf16, #tpu.memory_space<vmem>>, vector<1x64x32xbf16>
    %129 = vector.shape_cast %128 : vector<1x64x32xbf16> to vector<64x32xbf16>
    %130 = arith.truncf %127 : vector<8x64xf32> to vector<8x64xbf16>
    %cst_42 = arith.constant dense<0.000000e+00> : vector<8x32xf32>
    %131 = tpu.matmul %130, %129, %cst_42 {dimension_numbers = #tpu.dot_dimension_numbers<[1], [0], [0], [1], [0, 0, 1, 1], [], []>} : vector<8x64xbf16>, vector<64x32xbf16>, vector<8x32xf32> -> vector<8x32xf32>
    %132 = arith.addf %116, %131 : vector<8x32xf32>
    %133 = vector.broadcast %11 : vector<1x32xf32> to vector<8x32xf32>
    %134 = arith.addf %132, %133 : vector<8x32xf32>
    %cst_43 = arith.constant dense<0.000000e+00> : vector<8xf32>
    %135 = vector.multi_reduction <add>, %134, %cst_43 [1] : vector<8x32xf32> to vector<8xf32>
    %136 = vector.shape_cast %135 : vector<8xf32> to vector<8x1xf32>
    %cst_44 = arith.constant 3.200000e+01 : f32
    %137 = vector.broadcast %cst_44 : f32 to vector<8x1xf32>
    %138 = arith.divf %136, %137 : vector<8x1xf32>
    %139 = vector.broadcast %138 : vector<8x1xf32> to vector<8x32xf32>
    %140 = arith.subf %134, %139 : vector<8x32xf32>
    %141 = arith.mulf %140, %140 : vector<8x32xf32>
    %cst_45 = arith.constant dense<0.000000e+00> : vector<8xf32>
    %142 = vector.multi_reduction <add>, %141, %cst_45 [1] : vector<8x32xf32> to vector<8xf32>
    %143 = vector.shape_cast %142 : vector<8xf32> to vector<8x1xf32>
    %cst_46 = arith.constant 3.200000e+01 : f32
    %144 = vector.broadcast %cst_46 : f32 to vector<8x1xf32>
    %145 = arith.divf %143, %144 : vector<8x1xf32>
    %146 = vector.broadcast %138 : vector<8x1xf32> to vector<8x32xf32>
    %147 = arith.subf %134, %146 : vector<8x32xf32>
    %cst_47 = arith.constant 9.99999974E-6 : f32
    %148 = vector.broadcast %cst_47 : f32 to vector<8x1xf32>
    %149 = arith.addf %145, %148 : vector<8x1xf32>
    %150 = math.rsqrt %149 : vector<8x1xf32>
    %151 = vector.broadcast %150 : vector<8x1xf32> to vector<8x32xf32>
    %152 = arith.mulf %147, %151 : vector<8x32xf32>
    %153 = vector.broadcast %12 : vector<1x32xf32> to vector<8x32xf32>
    %154 = arith.mulf %152, %153 : vector<8x32xf32>
    %155 = vector.broadcast %13 : vector<1x32xf32> to vector<8x32xf32>
    %156 = arith.addf %154, %155 : vector<8x32xf32>
    %c0_48 = arith.constant 0 : index
    %c0_49 = arith.constant 0 : index
    %157 = vector.load %arg10[%c0_48, %c0_49] : memref<8x32xf32, #tpu.memory_space<vmem>>, vector<8x32xf32>
    tpu.vector_store %arg10[%c0_48, %c0_49], %156 {strides = array<i32>} : memref<8x32xf32, #tpu.memory_space<vmem>>, vector<8x32xf32>,
    %c1_i32 = arith.constant 1 : i32
    %158 = arith.cmpi eq, %arg1, %c1_i32 : i32
    %159 = arith.extui %158 : i1 to i32
    %c0_i32_50 = arith.constant 0 : i32
    %160 = arith.cmpi ne, %159, %c0_i32_50 : i32
    scf.if %160 {
      %c0_51 = arith.constant 0 : index
      %c0_52 = arith.constant 0 : index
      %161 = vector.load %arg9[%c0_51, %c0_52] : memref<8x32xf32, #tpu.memory_space<vmem>>, vector<8x32xf32>
      tpu.vector_store %arg9[%c0_51, %c0_52], %156 {strides = array<i32>} : memref<8x32xf32, #tpu.memory_space<vmem>>, vector<8x32xf32>,
    } else {
    }
    return
  }
  func.func @transform_0(%arg0: i32, %arg1: i32) -> (i32, i32, i32) {
    %c0_i32 = arith.constant 0 : i32
    %c0_i32_0 = arith.constant 0 : i32
    %c0_i32_1 = arith.constant 0 : i32
    return %arg0, %c0_i32, %c0_i32_0 : i32, i32, i32
  }
  func.func @transform_1(%arg0: i32, %arg1: i32) -> (i32, i32) {
    %c0_i32 = arith.constant 0 : i32
    %c0_i32_0 = arith.constant 0 : i32
    return %arg0, %c0_i32 : i32, i32
  }
  func.func @transform_2(%arg0: i32, %arg1: i32) -> (i32, i32, i32) {
    %c0_i32 = arith.constant 0 : i32
    %c0_i32_0 = arith.constant 0 : i32
    %c0_i32_1 = arith.constant 0 : i32
    return %arg1, %c0_i32, %c0_i32_0 : i32, i32, i32
  }
  func.func @transform_3(%arg0: i32, %arg1: i32) -> (i32, i32, i32) {
    %c0_i32 = arith.constant 0 : i32
    %c0_i32_0 = arith.constant 0 : i32
    %c0_i32_1 = arith.constant 0 : i32
    return %arg1, %c0_i32, %c0_i32_0 : i32, i32, i32
  }
  func.func @transform_4(%arg0: i32, %arg1: i32) -> (i32, i32, i32) {
    %c0_i32 = arith.constant 0 : i32
    %c0_i32_0 = arith.constant 0 : i32
    %c0_i32_1 = arith.constant 0 : i32
    return %arg1, %c0_i32, %c0_i32_0 : i32, i32, i32
  }
  func.func @transform_5(%arg0: i32, %arg1: i32) -> (i32, i32, i32) {
    %c0_i32 = arith.constant 0 : i32
    %c0_i32_0 = arith.constant 0 : i32
    %c0_i32_1 = arith.constant 0 : i32
    return %arg1, %c0_i32, %c0_i32_0 : i32, i32, i32
  }
  func.func @transform_6(%arg0: i32, %arg1: i32) -> (i32, i32, i32) {
    %c0_i32 = arith.constant 0 : i32
    %c0_i32_0 = arith.constant 0 : i32
    %c0_i32_1 = arith.constant 0 : i32
    return %arg1, %c0_i32, %c0_i32_0 : i32, i32, i32
  }
  func.func @transform_7(%arg0: i32, %arg1: i32) -> (i32, i32) {
    %c0_i32 = arith.constant 0 : i32
    %c0_i32_0 = arith.constant 0 : i32
    return %arg0, %c0_i32 : i32, i32
  }
}

</mosaic_0001>

<llo_original>
// kernel: transformer_forward.2
$region0: #{transformer_forward.2}
  #allocation0 [shape = 'u32[]', space=smem, size = 0x4, offset = 0x4, fixed_abs, tag = 'smem constant byte address 0x4 - core index']
  #allocation1 [shape = 'u32[144,128]{1,0:T(1,128)}', space=vmem, size = 0x12000, scoped, tag = 'internal scratch']
  #allocation2 [shape = 'f32[8,32]{1,0:T(8,128)}', space=vmem, size = 0x1000, scoped, tag = 'scratch operand']
  %s0 = inlined_call_operand.vmem [shape: f32[2,1,8], index: 0, kind: input, shape index: {}]
  %s1 = inlined_call_operand.vmem [shape: f32[16,32], index: 1, kind: input, shape index: {}]
  %s2 = inlined_call_operand.vmem [shape: bf16[2,32,96], index: 2, kind: input, shape index: {}]
  %s3 = inlined_call_operand.vmem [shape: bf16[2,32,32], index: 3, kind: input, shape index: {}]
  %s4 = inlined_call_operand.vmem [shape: bf16[2,32,64], index: 4, kind: input, shape index: {}]
  %s5 = inlined_call_operand.vmem [shape: bf16[2,64,32], index: 5, kind: input, shape index: {}]
  %s6 = inlined_call_operand.vmem [shape: f32[2,8,96], index: 6, kind: input, shape index: {}]
  %s7 = inlined_call_operand.vmem [shape: f32[16,32], index: 7, kind: output, shape index: {}]
  %s8 = sld [smem:[#allocation0]]
  $region69: #{transformer_forward.2} parent=0
    _
  %s10 = ssub.s32 1, %s8
  %s11 = scalar_select 0, %s10, %s8
  loop: start=0, step=1, limit=6
  $region2: #{transformer_forward.2} parent=0 // loop_pre_header
    _
  $region3: #{transformer_forward.2} parent=0 // loop_header
    %s13 = sphi 0, %s17
    %p14 = scmp.ge.s32.totalorder %s13, 6
    %s20 = sphi 0, %s32
    %s21 = sphi 0, %s28
    %s22 = sphi 0, %s20
    %s23 = sphi 0, %s21
    %s24 = sphi 0, %s22
    %s25 = sphi 0, %s23
    %s35 = sphi 0, %s37
    %s38 = sphi 0, %s35
    %s39 = sphi 0, %s38
    %s55 = sphi 0, %s39
    %s61 = sphi 0, %s63
    %s64 = sphi 0, %s61
    %s65 = sphi 0, %s64
    %s81 = sphi 0, %s65
    %s87 = sphi 0, %s89
    %s90 = sphi 0, %s87
    %s91 = sphi 0, %s90
    %s107 = sphi 0, %s91
    %s113 = sphi 0, %s115
    %s116 = sphi 0, %s113
    %s117 = sphi 0, %s116
    %s133 = sphi 0, %s117
    %s139 = sphi 0, %s141
    %s142 = sphi 0, %s139
    %s143 = sphi 0, %s142
    %s159 = sphi 0, %s143
    %s165 = sphi 0, %s167
    %s168 = sphi 0, %s165
    %s169 = sphi 0, %s168
    %s185 = sphi 0, %s169
    %s191 = sphi 0, %s193
    %s194 = sphi 0, %s191
    %s195 = sphi 0, %s194
    %s211 = sphi 0, %s195
    %s217 = sphi 0, %s219
    %s220 = sphi 0, %s217
    %s221 = sphi 0, %s220
    %s237 = sphi 0, %s221
  $region4: #{transformer_forward.2} parent=0 // loop_header_branch
    %16 = sbr.rel (%p14) target = $region8
  $region5: #{transformer_forward.2} parent=0 // loop_body
    %s18 = ssub.s32 %s13, 1
    %s19 = ssub.s32 %s13, 2
    %s26 = sadd.s32 1, %s21
    %p27 = scmp.ge.s32.totalorder %s26, 2
    %s28 = scalar_select %p27, 0, %s26
    %s29 = sadd.s32 1, %s20
    %s30 = scalar_select %p27, %s29, %s20
    %p31 = scmp.ge.s32.totalorder %s30, 2
    %s32 = scalar_select %p31, 0, %s30
    %s33 = ssub.s32 %s20, %s32
    %p34 = scmp.eq.s32.totalorder %s33, 0
    %s36 = sadd.s32 %s35, 1
    %s37 = scalar_select %p34, %s35, %s36
    %p40 = pneg %p34
    %p41 = scmp.eq.s32.totalorder %s13, 3
    %p42 = por %p40, %p41
    %p43 = scmp.ne.s32.totalorder %s35, %s38
    %p44 = scmp.eq.s32.totalorder %s13, 0
    %p45 = por %p43, %p44
    %p46 = scmp.ne.s32.totalorder %s35, %s38
    %p47 = scmp.eq.s32.totalorder %s18, 3
    %p48 = por %p46, %p47
    %p49 = scmp.ne.s32.totalorder %s38, %s39
    %p50 = scmp.eq.s32.totalorder %s18, 0
    %p51 = por %p49, %p50
    %p52 = scmp.ne.s32.totalorder %s38, %s39
    %p53 = scmp.eq.s32.totalorder %s19, 3
    %p54 = por %p52, %p53
    %p56 = scmp.ne.s32.totalorder %s39, %s55
    %p57 = scmp.eq.s32.totalorder %s19, 0
    %p58 = por %p56, %p57
    %s59 = ssub.s32 %s20, %s32
    %p60 = scmp.eq.s32.totalorder %s59, 0
    %s62 = sadd.s32 %s61, 1
    %s63 = scalar_select %p60, %s61, %s62
    %p66 = pneg %p60
    %p67 = scmp.eq.s32.totalorder %s13, 3
    %p68 = por %p66, %p67
    %p69 = scmp.ne.s32.totalorder %s61, %s64
    %p70 = scmp.eq.s32.totalorder %s13, 0
    %p71 = por %p69, %p70
    %p72 = scmp.ne.s32.totalorder %s61, %s64
    %p73 = scmp.eq.s32.totalorder %s18, 3
    %p74 = por %p72, %p73
    %p75 = scmp.ne.s32.totalorder %s64, %s65
    %p76 = scmp.eq.s32.totalorder %s18, 0
    %p77 = por %p75, %p76
    %p78 = scmp.ne.s32.totalorder %s64, %s65
    %p79 = scmp.eq.s32.totalorder %s19, 3
    %p80 = por %p78, %p79
    %p82 = scmp.ne.s32.totalorder %s65, %s81
    %p83 = scmp.eq.s32.totalorder %s19, 0
    %p84 = por %p82, %p83
    %s85 = ssub.s32 %s21, %s28
    %p86 = scmp.eq.s32.totalorder %s85, 0
    %s88 = sadd.s32 %s87, 1
    %s89 = scalar_select %p86, %s87, %s88
    %p92 = pneg %p86
    %p93 = scmp.eq.s32.totalorder %s13, 3
    %p94 = por %p92, %p93
    %p95 = scmp.ne.s32.totalorder %s87, %s90
    %p96 = scmp.eq.s32.totalorder %s13, 0
    %p97 = por %p95, %p96
    %p98 = scmp.ne.s32.totalorder %s87, %s90
    %p99 = scmp.eq.s32.totalorder %s18, 3
    %p100 = por %p98, %p99
    %p101 = scmp.ne.s32.totalorder %s90, %s91
    %p102 = scmp.eq.s32.totalorder %s18, 0
    %p103 = por %p101, %p102
    %p104 = scmp.ne.s32.totalorder %s90, %s91
    %p105 = scmp.eq.s32.totalorder %s19, 3
    %p106 = por %p104, %p105
    %p108 = scmp.ne.s32.totalorder %s91, %s107
    %p109 = scmp.eq.s32.totalorder %s19, 0
    %p110 = por %p108, %p109
    %s111 = ssub.s32 %s21, %s28
    %p112 = scmp.eq.s32.totalorder %s111, 0
    %s114 = sadd.s32 %s113, 1
    %s115 = scalar_select %p112, %s113, %s114
    %p118 = pneg %p112
    %p119 = scmp.eq.s32.totalorder %s13, 3
    %p120 = por %p118, %p119
    %p121 = scmp.ne.s32.totalorder %s113, %s116
    %p122 = scmp.eq.s32.totalorder %s13, 0
    %p123 = por %p121, %p122
    %p124 = scmp.ne.s32.totalorder %s113, %s116
    %p125 = scmp.eq.s32.totalorder %s18, 3
    %p126 = por %p124, %p125
    %p127 = scmp.ne.s32.totalorder %s116, %s117
    %p128 = scmp.eq.s32.totalorder %s18, 0
    %p129 = por %p127, %p128
    %p130 = scmp.ne.s32.totalorder %s116, %s117
    %p131 = scmp.eq.s32.totalorder %s19, 3
    %p132 = por %p130, %p131
    %p134 = scmp.ne.s32.totalorder %s117, %s133
    %p135 = scmp.eq.s32.totalorder %s19, 0
    %p136 = por %p134, %p135
    %s137 = ssub.s32 %s21, %s28
    %p138 = scmp.eq.s32.totalorder %s137, 0
    %s140 = sadd.s32 %s139, 1
    %s141 = scalar_select %p138, %s139, %s140
    %p144 = pneg %p138
    %p145 = scmp.eq.s32.totalorder %s13, 3
    %p146 = por %p144, %p145
    %p147 = scmp.ne.s32.totalorder %s139, %s142
    %p148 = scmp.eq.s32.totalorder %s13, 0
    %p149 = por %p147, %p148
    %p150 = scmp.ne.s32.totalorder %s139, %s142
    %p151 = scmp.eq.s32.totalorder %s18, 3
    %p152 = por %p150, %p151
    %p153 = scmp.ne.s32.totalorder %s142, %s143
    %p154 = scmp.eq.s32.totalorder %s18, 0
    %p155 = por %p153, %p154
    %p156 = scmp.ne.s32.totalorder %s142, %s143
    %p157 = scmp.eq.s32.totalorder %s19, 3
    %p158 = por %p156, %p157
    %p160 = scmp.ne.s32.totalorder %s143, %s159
    %p161 = scmp.eq.s32.totalorder %s19, 0
    %p162 = por %p160, %p161
    %s163 = ssub.s32 %s21, %s28
    %p164 = scmp.eq.s32.totalorder %s163, 0
    %s166 = sadd.s32 %s165, 1
    %s167 = scalar_select %p164, %s165, %s166
    %p170 = pneg %p164
    %p171 = scmp.eq.s32.totalorder %s13, 3
    %p172 = por %p170, %p171
    %p173 = scmp.ne.s32.totalorder %s165, %s168
    %p174 = scmp.eq.s32.totalorder %s13, 0
    %p175 = por %p173, %p174
    %p176 = scmp.ne.s32.totalorder %s165, %s168
    %p177 = scmp.eq.s32.totalorder %s18, 3
    %p178 = por %p176, %p177
    %p179 = scmp.ne.s32.totalorder %s168, %s169
    %p180 = scmp.eq.s32.totalorder %s18, 0
    %p181 = por %p179, %p180
    %p182 = scmp.ne.s32.totalorder %s168, %s169
    %p183 = scmp.eq.s32.totalorder %s19, 3
    %p184 = por %p182, %p183
    %p186 = scmp.ne.s32.totalorder %s169, %s185
    %p187 = scmp.eq.s32.totalorder %s19, 0
    %p188 = por %p186, %p187
    %s189 = ssub.s32 %s21, %s28
    %p190 = scmp.eq.s32.totalorder %s189, 0
    %s192 = sadd.s32 %s191, 1
    %s193 = scalar_select %p190, %s191, %s192
    %p196 = pneg %p190
    %p197 = scmp.eq.s32.totalorder %s13, 3
    %p198 = por %p196, %p197
    %p199 = scmp.ne.s32.totalorder %s191, %s194
    %p200 = scmp.eq.s32.totalorder %s13, 0
    %p201 = por %p199, %p200
    %p202 = scmp.ne.s32.totalorder %s191, %s194
    %p203 = scmp.eq.s32.totalorder %s18, 3
    %p204 = por %p202, %p203
    %p205 = scmp.ne.s32.totalorder %s194, %s195
    %p206 = scmp.eq.s32.totalorder %s18, 0
    %p207 = por %p205, %p206
    %p208 = scmp.ne.s32.totalorder %s194, %s195
    %p209 = scmp.eq.s32.totalorder %s19, 3
    %p210 = por %p208, %p209
    %p212 = scmp.ne.s32.totalorder %s195, %s211
    %p213 = scmp.eq.s32.totalorder %s19, 0
    %p214 = por %p212, %p213
    %s215 = ssub.s32 %s20, %s32
    %p216 = scmp.eq.s32.totalorder %s215, 0
    %s218 = sadd.s32 %s217, 1
    %s219 = scalar_select %p216, %s217, %s218
    %p222 = pneg %p216
    %p223 = scmp.eq.s32.totalorder %s13, 3
    %p224 = por %p222, %p223
    %p225 = scmp.ne.s32.totalorder %s217, %s220
    %p226 = scmp.eq.s32.totalorder %s13, 0
    %p227 = por %p225, %p226
    %p228 = scmp.ne.s32.totalorder %s217, %s220
    %p229 = scmp.eq.s32.totalorder %s18, 3
    %p230 = por %p228, %p229
    %p231 = scmp.ne.s32.totalorder %s220, %s221
    %p232 = scmp.eq.s32.totalorder %s18, 0
    %p233 = por %p231, %p232
    %p234 = scmp.ne.s32.totalorder %s220, %s221
    %p235 = scmp.eq.s32.totalorder %s19, 3
    %p236 = por %p234, %p235
    %p238 = scmp.ne.s32.totalorder %s221, %s237
    %p239 = scmp.eq.s32.totalorder %s19, 0
    %p240 = por %p238, %p239
    %p241 = scmp.le.s32.totalorder 1, %s13
    %p242 = scmp.lt.s32.totalorder %s13, 5
    %p243 = pnand %p241, %p242
    %p244 = pneg %p243
    // Predicated region
    $region9: #{transformer_forward.2} parent=5 // pred_check
      _
    $region10: #{transformer_forward.2} parent=5 // pred_check_branch
      %246 = sbr.rel (%p243) target = $region12
    $region11: #{transformer_forward.2} parent=5 // pred_region
      %s247 = ssub.s32 %s13, 1
    $region12: #{transformer_forward.2} parent=5 // pred_fallthru
      _
    %p248 = scmp.lt.s32.totalorder %s13, 4
    // Predicated region
    $region13: #{transformer_forward.2} parent=5 // pred_check
      %p249 = pneg %p248
    $region14: #{transformer_forward.2} parent=5 // pred_check_branch
      %251 = sbr.rel (%p249) target = $region16
    $region15: #{transformer_forward.2} parent=5 // pred_region
      // Predicated region
      $region17: #{transformer_forward.2} parent=15 // pred_check
        %p252 = pneg %p45
      $region18: #{transformer_forward.2} parent=15 // pred_check_branch
        %254 = sbr.rel (%p252) target = $region20
      $region19: #{transformer_forward.2} parent=15 // pred_region
        %p255 = scmp.lt.s32.totalorder %s20, 1
        %s256 = scalar_select %p255, %s20, 1
        %s257 = scalar_lea.vmem %s0, %s256
      $region20: #{transformer_forward.2} parent=15 // pred_fallthru
        _
      // Predicated region
      $region21: #{transformer_forward.2} parent=15 // pred_check
        %p258 = pneg %p71
      $region22: #{transformer_forward.2} parent=15 // pred_check_branch
        %260 = sbr.rel (%p258) target = $region24
      $region23: #{transformer_forward.2} parent=15 // pred_region
        %p261 = scmp.lt.s32.totalorder %s20, 1
        %s262 = scalar_select %p261, %s20, 1
        %s263 = smul.addr %s262, 8
        %s264 = scalar_lea.vmem %s1, %s263
      $region24: #{transformer_forward.2} parent=15 // pred_fallthru
        _
      // Predicated region
      $region25: #{transformer_forward.2} parent=15 // pred_check
        %p265 = pneg %p97
      $region26: #{transformer_forward.2} parent=15 // pred_check_branch
        %267 = sbr.rel (%p265) target = $region28
      $region27: #{transformer_forward.2} parent=15 // pred_region
        %p268 = scmp.lt.s32.totalorder %s21, 1
        %s269 = scalar_select %p268, %s21, 1
        %s270 = smul.addr %s269, 4
        %s271 = smul.addr %s270, 4
        %s272 = scalar_lea.vmem %s2, %s271
      $region28: #{transformer_forward.2} parent=15 // pred_fallthru
        _
      // Predicated region
      $region29: #{transformer_forward.2} parent=15 // pred_check
        %p273 = pneg %p123
      $region30: #{transformer_forward.2} parent=15 // pred_check_branch
        %275 = sbr.rel (%p273) target = $region32
      $region31: #{transformer_forward.2} parent=15 // pred_region
        %p276 = scmp.lt.s32.totalorder %s21, 1
        %s277 = scalar_select %p276, %s21, 1
        %s278 = smul.addr %s277, 4
        %s279 = smul.addr %s278, 4
        %s280 = scalar_lea.vmem %s3, %s279
      $region32: #{transformer_forward.2} parent=15 // pred_fallthru
        _
      // Predicated region
      $region33: #{transformer_forward.2} parent=15 // pred_check
        %p281 = pneg %p149
      $region34: #{transformer_forward.2} parent=15 // pred_check_branch
        %283 = sbr.rel (%p281) target = $region36
      $region35: #{transformer_forward.2} parent=15 // pred_region
        %p284 = scmp.lt.s32.totalorder %s21, 1
        %s285 = scalar_select %p284, %s21, 1
        %s286 = smul.addr %s285, 4
        %s287 = smul.addr %s286, 4
        %s288 = scalar_lea.vmem %s4, %s287
      $region36: #{transformer_forward.2} parent=15 // pred_fallthru
        _
      // Predicated region
      $region37: #{transformer_forward.2} parent=15 // pred_check
        %p289 = pneg %p175
      $region38: #{transformer_forward.2} parent=15 // pred_check_branch
        %291 = sbr.rel (%p289) target = $region40
      $region39: #{transformer_forward.2} parent=15 // pred_region
        %p292 = scmp.lt.s32.totalorder %s21, 1
        %s293 = scalar_select %p292, %s21, 1
        %s294 = smul.addr %s293, 8
        %s295 = smul.addr %s294, 4
        %s296 = scalar_lea.vmem %s5, %s295
      $region40: #{transformer_forward.2} parent=15 // pred_fallthru
        _
      // Predicated region
      $region41: #{transformer_forward.2} parent=15 // pred_check
        %p297 = pneg %p201
      $region42: #{transformer_forward.2} parent=15 // pred_check_branch
        %299 = sbr.rel (%p297) target = $region44
      $region43: #{transformer_forward.2} parent=15 // pred_region
        %p300 = scmp.lt.s32.totalorder %s21, 1
        %s301 = scalar_select %p300, %s21, 1
        %s302 = smul.addr %s301, 8
        %s303 = scalar_lea.vmem %s6, %s302
      $region44: #{transformer_forward.2} parent=15 // pred_fallthru
        _
    $region16: #{transformer_forward.2} parent=5 // pred_fallthru
      _
    %p304 = scmp.le.s32.totalorder 1, %s13
    %p305 = scmp.lt.s32.totalorder %s13, 5
    %p306 = pnand %p304, %p305
    %p307 = pneg %p306
    // Predicated region
    $region45: #{transformer_forward.2} parent=5 // pred_check
      _
    $region46: #{transformer_forward.2} parent=5 // pred_check_branch
      %309 = sbr.rel (%p306) target = $region48
    $region47: #{transformer_forward.2} parent=5 // pred_region
      %s310 = ssub.s32 %s13, 1
      %p311 = scmp.lt.s32.totalorder %s22, 1
      %s312 = scalar_select %p311, %s22, 1
      %s313 = scalar_lea.vmem %s0, %s312
      %p314 = pneg %p51
      %p315 = pneg %p48
      %p316 = scmp.lt.s32.totalorder %s22, 1
      %s317 = scalar_select %p316, %s22, 1
      %s318 = smul.addr %s317, 8
      %s319 = scalar_lea.vmem %s1, %s318
      %p320 = pneg %p77
      %p321 = pneg %p74
      %p322 = scmp.lt.s32.totalorder %s23, 1
      %s323 = scalar_select %p322, %s23, 1
      %s324 = smul.addr %s323, 4
      %s325 = smul.addr %s324, 4
      %s326 = scalar_lea.vmem %s2, %s325
      %p327 = pneg %p103
      %p328 = pneg %p100
      %p329 = scmp.lt.s32.totalorder %s23, 1
      %s330 = scalar_select %p329, %s23, 1
      %s331 = smul.addr %s330, 4
      %s332 = smul.addr %s331, 4
      %s333 = scalar_lea.vmem %s3, %s332
      %p334 = pneg %p129
      %p335 = pneg %p126
      %p336 = scmp.lt.s32.totalorder %s23, 1
      %s337 = scalar_select %p336, %s23, 1
      %s338 = smul.addr %s337, 4
      %s339 = smul.addr %s338, 4
      %s340 = scalar_lea.vmem %s4, %s339
      %p341 = pneg %p155
      %p342 = pneg %p152
      %p343 = scmp.lt.s32.totalorder %s23, 1
      %s344 = scalar_select %p343, %s23, 1
      %s345 = smul.addr %s344, 8
      %s346 = smul.addr %s345, 4
      %s347 = scalar_lea.vmem %s5, %s346
      %p348 = pneg %p181
      %p349 = pneg %p178
      %p350 = scmp.lt.s32.totalorder %s23, 1
      %s351 = scalar_select %p350, %s23, 1
      %s352 = smul.addr %s351, 8
      %s353 = scalar_lea.vmem %s6, %s352
      %p354 = pneg %p207
      %p355 = pneg %p204
      %p356 = pneg %p233
      %p357 = pneg %p230
      %p358 = scmp.lt.s32.totalorder %s22, 1
      %s359 = scalar_select %p358, %s22, 1
      %s360 = smul.addr %s359, 8
      %s361 = scalar_lea.vmem %s7, %s360
      %p362 = scmp.lt.s32.totalorder %s22, 1
      %s363 = scalar_select %p362, %s22, 1
      %s364 = scalar_lea.vmem %s0, %s363
      %p365 = scmp.lt.s32.totalorder %s22, 1
      %s366 = scalar_select %p365, %s22, 1
      %s367 = smul.addr %s366, 8
      %s368 = scalar_lea.vmem %s1, %s367
      %p369 = scmp.lt.s32.totalorder %s23, 1
      %s370 = scalar_select %p369, %s23, 1
      %s371 = smul.addr %s370, 4
      %s372 = smul.addr %s371, 4
      %s373 = scalar_lea.vmem %s2, %s372
      %p374 = scmp.lt.s32.totalorder %s23, 1
      %s375 = scalar_select %p374, %s23, 1
      %s376 = smul.addr %s375, 4
      %s377 = smul.addr %s376, 4
      %s378 = scalar_lea.vmem %s3, %s377
      %p379 = scmp.lt.s32.totalorder %s23, 1
      %s380 = scalar_select %p379, %s23, 1
      %s381 = smul.addr %s380, 4
      %s382 = smul.addr %s381, 4
      %s383 = scalar_lea.vmem %s4, %s382
      %p384 = scmp.lt.s32.totalorder %s23, 1
      %s385 = scalar_select %p384, %s23, 1
      %s386 = smul.addr %s385, 8
      %s387 = smul.addr %s386, 4
      %s388 = scalar_lea.vmem %s5, %s387
      %p389 = scmp.lt.s32.totalorder %s23, 1
      %s390 = scalar_select %p389, %s23, 1
      %s391 = smul.addr %s390, 8
      %s392 = scalar_lea.vmem %s6, %s391
      %p393 = scmp.lt.s32.totalorder %s22, 1
      %s394 = scalar_select %p393, %s22, 1
      %s395 = smul.addr %s394, 8
      %s396 = scalar_lea.vmem %s7, %s395
      %p398 = scmp.eq.s32.totalorder %s23, 0
      // Predicated region
      $region49: #{transformer_forward.2} parent=47 // pred_check
        %p399 = pneg %p398
      $region50: #{transformer_forward.2} parent=47 // pred_check_branch
        %401 = sbr.rel (%p399) target = $region52
      $region51: #{transformer_forward.2} parent=47 // pred_region
        %v402 = vld [vmem:[%s368] sm:$0xff]
        %vm403 = vcmask 261120
        %404 = vst.msk [vmem:[#allocation2] sm:$0xff] %vm403, %v402
      $region52: #{transformer_forward.2} parent=47 // pred_fallthru
        _
      %v405 = vld [vmem:[#allocation2] sm:$0xff]
      %v406 = vld [vmem:[%s392] sm:$0xff]
      %v407 = vld [vmem:[%s364] sm:$0x1]
      %vm408 = vcmp.gt.f32.partialorder %v407, 0.5
      %v409 = vsel %vm408, 0.0, -1e+09
      %v410 = vld [vmem:[%s373] sm:$0xf]
      %v411 = vld [vmem:[%s373 + $0x4] sm:$0xf]
      %v412 = vld [vmem:[%s373 + $0x8] sm:$0xf]
      %v413 = vld [vmem:[%s373 + $0xc] sm:$0xf]
      %v414 = vpack.c.bf16 %v405, %v405
      %v415 = vlaneseq
      %v416 = vshrl.u32 %v415, 7
      %v417 = vsub.s32 0, %v416
      %v418 = vrot.slane %v406, %v417
      %v423 = vunpack.c.l.b16 %v410
      %v424 = vunpack.c.l.b16 %v411
      %v425 = vunpack.c.l.b16 %v412
      %v426 = vunpack.c.l.b16 %v413
      %v427 = vpack.c.b16 %v424, %v423
      %v428 = vpack.c.b16 %v426, %v425
      %vm431 = vcmask 261120
      %v433 = vsel %vm431, %v414, 0
      %435 = vmatprep.subr.bf16.mxu0 0
      %436 = vmatpush1.bf16.msra.mxu0 0
      %437 = vmatprep.subr.bf16.mxu0 0
      %438 = vmatpush1.bf16.msra.mxu0 0
      %439 = vmatprep.subr.bf16.mxu0 0
      %440 = vmatpush1.bf16.msra.mxu0 0
      %441 = vmatprep.subr.bf16.mxu0 0
      %442 = vmatpush1.bf16.msra.mxu0 0
      %443 = vmatprep.subr.bf16.mxu0 0
      %444 = vmatpush1.bf16.msra.mxu0 0
      %445 = vmatprep.subr.bf16.mxu0 0
      %446 = vmatpush1.bf16.msra.mxu0 0
      %447 = vmatprep.subr.bf16.mxu0 0
      %448 = vmatpush1.bf16.msra.mxu0 %v428
      %449 = vmatprep.subr.bf16.mxu0 0
      %450 = vmatpush1.bf16.msra.mxu0 %v427
      %451 = vmatprep.subr.bf16.mxu0 0
      %452 = vmatpush2.bf16.msra.mxu0 0
      %453 = vmatprep.subr.bf16.mxu0 0
      %454 = vmatpush2.bf16.msra.mxu0 0
      %455 = vmatprep.subr.bf16.mxu0 0
      %456 = vmatpush2.bf16.msra.mxu0 0
      %457 = vmatprep.subr.bf16.mxu0 0
      %458 = vmatpush2.bf16.msra.mxu0 0
      %459 = vmatprep.subr.bf16.mxu0 0
      %460 = vmatpush2.bf16.msra.mxu0 0
      %461 = vmatprep.subr.bf16.mxu0 0
      %462 = vmatpush2.bf16.msra.mxu0 0
      %463 = vmatprep.subr.bf16.mxu0 0
      %464 = vmatpush2.bf16.msra.mxu0 0
      %465 = vmatprep.subr.bf16.mxu0 0
      %466 = vmatpush2.bf16.msra.mxu0 0
      %467 = vmatprep.mubr.bf16.mxu0 0
      %468 = vmatmul.mubr.bf16.gmra.mxu0 %v433
      %v469 = vpop.f32.mrf.mxu0
      %v470 = vadd.f32 %v418, %v469
      %v471 = vpop.f32.mrf.mxu0
      %v472 = vpop.f32.mrf.mxu0
      %v473 = vpop.f32.mrf.mxu0
      %474 = vdwg.mxu0
      %v475 = vpack.c.bf16 %v470, %v470
      %477 = vrot.lane.b32.xlu0 %v470, 96
      %v478 = vpop.permute.xlu0 %477
      %480 = vxpose.xlu0.b32.start [1/16] %v478, 128
      %481 = vxpose.xlu0.b32.cont [2/16] 0.0, 128
      %482 = vxpose.xlu0.b32.cont [3/16] 0.0, 128
      %483 = vxpose.xlu0.b32.cont [4/16] 0.0, 128
      %484 = vxpose.xlu0.b32.cont [5/16] 0.0, 128
      %485 = vxpose.xlu0.b32.cont [6/16] 0.0, 128
      %486 = vxpose.xlu0.b32.cont [7/16] 0.0, 128
      %487 = vxpose.xlu0.b32.cont [8/16] 0.0, 128
      %488 = vxpose.xlu0.b32.cont [9/16] 0.0, 128
      %489 = vxpose.xlu0.b32.cont [10/16] 0.0, 128
      %490 = vxpose.xlu0.b32.cont [11/16] 0.0, 128
      %491 = vxpose.xlu0.b32.cont [12/16] 0.0, 128
      %492 = vxpose.xlu0.b32.cont [13/16] 0.0, 128
      %493 = vxpose.xlu0.b32.cont [14/16] 0.0, 128
      %494 = vxpose.xlu0.b32.cont [15/16] 0.0, 128
      %495 = vxpose.xlu0.b32.end [16/16] 0.0, 128
      %v496 = vpop.trf.xlu0
      %v497 = vpop.trf.xlu0
      %v498 = vpop.trf.xlu0
      %v499 = vpop.trf.xlu0
      %v500 = vpop.trf.xlu0
      %v501 = vpop.trf.xlu0
      %v502 = vpop.trf.xlu0
      %v503 = vpop.trf.xlu0
      %v504 = vpop.trf.xlu0
      %v505 = vpop.trf.xlu0
      %v506 = vpop.trf.xlu0
      %v507 = vpop.trf.xlu0
      %v508 = vpop.trf.xlu0
      %v509 = vpop.trf.xlu0
      %v510 = vpop.trf.xlu0
      %v511 = vpop.trf.xlu0
      %v512 = vpack.c.bf16 %v496, %v496
      %vm513 = vcmask 64512
      %v515 = vsel %vm513, %v475, 0
      %vm517 = vcmask 1043456
      %v519 = vsel %vm517, %v512, 0
      %521 = vmatprep.subr.bf16.mxu0 0
      %522 = vmatpush1.bf16.msra.mxu0 0
      %523 = vmatprep.subr.bf16.mxu0 0
      %524 = vmatpush1.bf16.msra.mxu0 0
      %525 = vmatprep.subr.bf16.mxu0 0
      %526 = vmatpush1.bf16.msra.mxu0 0
      %527 = vmatprep.subr.bf16.mxu0 0
      %528 = vmatpush1.bf16.msra.mxu0 0
      %529 = vmatprep.subr.bf16.mxu0 0
      %530 = vmatpush1.bf16.msra.mxu0 0
      %531 = vmatprep.subr.bf16.mxu0 0
      %532 = vmatpush1.bf16.msra.mxu0 0
      %533 = vmatprep.subr.bf16.mxu0 0
      %534 = vmatpush1.bf16.msra.mxu0 0
      %535 = vmatprep.subr.bf16.mxu0 0
      %536 = vmatpush1.bf16.msra.mxu0 %v519
      %537 = vmatprep.subr.bf16.mxu0 0
      %538 = vmatpush2.bf16.msra.mxu0 0
      %539 = vmatprep.subr.bf16.mxu0 0
      %540 = vmatpush2.bf16.msra.mxu0 0
      %541 = vmatprep.subr.bf16.mxu0 0
      %542 = vmatpush2.bf16.msra.mxu0 0
      %543 = vmatprep.subr.bf16.mxu0 0
      %544 = vmatpush2.bf16.msra.mxu0 0
      %545 = vmatprep.subr.bf16.mxu0 0
      %546 = vmatpush2.bf16.msra.mxu0 0
      %547 = vmatprep.subr.bf16.mxu0 0
      %548 = vmatpush2.bf16.msra.mxu0 0
      %549 = vmatprep.subr.bf16.mxu0 0
      %550 = vmatpush2.bf16.msra.mxu0 0
      %551 = vmatprep.subr.bf16.mxu0 0
      %552 = vmatpush2.bf16.msra.mxu0 0
      %553 = vmatprep.mubr.bf16.mxu0 0
      %554 = vmatmul.mubr.bf16.gmra.mxu0 %v515
      %v555 = vpop.f32.mrf.mxu0
      %v556 = vadd.f32 0.0, %v555
      %v557 = vpop.f32.mrf.mxu0
      %v558 = vpop.f32.mrf.mxu0
      %v559 = vpop.f32.mrf.mxu0
      %560 = vdwg.mxu0
      %561 = vrot.lane.b32.xlu0 %v470, 88
      %v562 = vpop.permute.xlu0 %561
      %564 = vxpose.xlu0.b32.start [1/16] %v562, 128
      %565 = vxpose.xlu0.b32.cont [2/16] 0.0, 128
      %566 = vxpose.xlu0.b32.cont [3/16] 0.0, 128
      %567 = vxpose.xlu0.b32.cont [4/16] 0.0, 128
      %568 = vxpose.xlu0.b32.cont [5/16] 0.0, 128
      %569 = vxpose.xlu0.b32.cont [6/16] 0.0, 128
      %570 = vxpose.xlu0.b32.cont [7/16] 0.0, 128
      %571 = vxpose.xlu0.b32.cont [8/16] 0.0, 128
      %572 = vxpose.xlu0.b32.cont [9/16] 0.0, 128
      %573 = vxpose.xlu0.b32.cont [10/16] 0.0, 128
      %574 = vxpose.xlu0.b32.cont [11/16] 0.0, 128
      %575 = vxpose.xlu0.b32.cont [12/16] 0.0, 128
      %576 = vxpose.xlu0.b32.cont [13/16] 0.0, 128
      %577 = vxpose.xlu0.b32.cont [14/16] 0.0, 128
      %578 = vxpose.xlu0.b32.cont [15/16] 0.0, 128
      %579 = vxpose.xlu0.b32.end [16/16] 0.0, 128
      %v580 = vpop.trf.xlu0
      %v581 = vpop.trf.xlu0
      %v582 = vpop.trf.xlu0
      %v583 = vpop.trf.xlu0
      %v584 = vpop.trf.xlu0
      %v585 = vpop.trf.xlu0
      %v586 = vpop.trf.xlu0
      %v587 = vpop.trf.xlu0
      %v588 = vpop.trf.xlu0
      %v589 = vpop.trf.xlu0
      %v590 = vpop.trf.xlu0
      %v591 = vpop.trf.xlu0
      %v592 = vpop.trf.xlu0
      %v593 = vpop.trf.xlu0
      %v594 = vpop.trf.xlu0
      %v595 = vpop.trf.xlu0
      %v596 = vpack.c.bf16 %v580, %v580
      %598 = vrot.lane.b32.xlu0 %v475, 120
      %v599 = vpop.permute.xlu0 %598
      %v601 = vsel %vm513, %v599, 0
      %v604 = vsel %vm517, %v596, 0
      %606 = vmatprep.subr.bf16.mxu0 0
      %607 = vmatpush1.bf16.msra.mxu0 0
      %608 = vmatprep.subr.bf16.mxu0 0
      %609 = vmatpush1.bf16.msra.mxu0 0
      %610 = vmatprep.subr.bf16.mxu0 0
      %611 = vmatpush1.bf16.msra.mxu0 0
      %612 = vmatprep.subr.bf16.mxu0 0
      %613 = vmatpush1.bf16.msra.mxu0 0
      %614 = vmatprep.subr.bf16.mxu0 0
      %615 = vmatpush1.bf16.msra.mxu0 0
      %616 = vmatprep.subr.bf16.mxu0 0
      %617 = vmatpush1.bf16.msra.mxu0 0
      %618 = vmatprep.subr.bf16.mxu0 0
      %619 = vmatpush1.bf16.msra.mxu0 0
      %620 = vmatprep.subr.bf16.mxu0 0
      %621 = vmatpush1.bf16.msra.mxu0 %v604
      %622 = vmatprep.subr.bf16.mxu0 0
      %623 = vmatpush2.bf16.msra.mxu0 0
      %624 = vmatprep.subr.bf16.mxu0 0
      %625 = vmatpush2.bf16.msra.mxu0 0
      %626 = vmatprep.subr.bf16.mxu0 0
      %627 = vmatpush2.bf16.msra.mxu0 0
      %628 = vmatprep.subr.bf16.mxu0 0
      %629 = vmatpush2.bf16.msra.mxu0 0
      %630 = vmatprep.subr.bf16.mxu0 0
      %631 = vmatpush2.bf16.msra.mxu0 0
      %632 = vmatprep.subr.bf16.mxu0 0
      %633 = vmatpush2.bf16.msra.mxu0 0
      %634 = vmatprep.subr.bf16.mxu0 0
      %635 = vmatpush2.bf16.msra.mxu0 0
      %636 = vmatprep.subr.bf16.mxu0 0
      %637 = vmatpush2.bf16.msra.mxu0 0
      %638 = vmatprep.mubr.bf16.mxu0 0
      %639 = vmatmul.mubr.bf16.gmra.mxu0 %v601
      %v640 = vpop.f32.mrf.mxu0
      %v641 = vadd.f32 0.0, %v640
      %v642 = vpop.f32.mrf.mxu0
      %v643 = vpop.f32.mrf.mxu0
      %v644 = vpop.f32.mrf.mxu0
      %645 = vdwg.mxu0
      %646 = vrot.lane.b32.xlu0 %v470, 80
      %v647 = vpop.permute.xlu0 %646
      %649 = vxpose.xlu0.b32.start [1/16] %v647, 128
      %650 = vxpose.xlu0.b32.cont [2/16] 0.0, 128
      %651 = vxpose.xlu0.b32.cont [3/16] 0.0, 128
      %652 = vxpose.xlu0.b32.cont [4/16] 0.0, 128
      %653 = vxpose.xlu0.b32.cont [5/16] 0.0, 128
      %654 = vxpose.xlu0.b32.cont [6/16] 0.0, 128
      %655 = vxpose.xlu0.b32.cont [7/16] 0.0, 128
      %656 = vxpose.xlu0.b32.cont [8/16] 0.0, 128
      %657 = vxpose.xlu0.b32.cont [9/16] 0.0, 128
      %658 = vxpose.xlu0.b32.cont [10/16] 0.0, 128
      %659 = vxpose.xlu0.b32.cont [11/16] 0.0, 128
      %660 = vxpose.xlu0.b32.cont [12/16] 0.0, 128
      %661 = vxpose.xlu0.b32.cont [13/16] 0.0, 128
      %662 = vxpose.xlu0.b32.cont [14/16] 0.0, 128
      %663 = vxpose.xlu0.b32.cont [15/16] 0.0, 128
      %664 = vxpose.xlu0.b32.end [16/16] 0.0, 128
      %v665 = vpop.trf.xlu0
      %v666 = vpop.trf.xlu0
      %v667 = vpop.trf.xlu0
      %v668 = vpop.trf.xlu0
      %v669 = vpop.trf.xlu0
      %v670 = vpop.trf.xlu0
      %v671 = vpop.trf.xlu0
      %v672 = vpop.trf.xlu0
      %v673 = vpop.trf.xlu0
      %v674 = vpop.trf.xlu0
      %v675 = vpop.trf.xlu0
      %v676 = vpop.trf.xlu0
      %v677 = vpop.trf.xlu0
      %v678 = vpop.trf.xlu0
      %v679 = vpop.trf.xlu0
      %v680 = vpop.trf.xlu0
      %v681 = vpack.c.bf16 %v665, %v665
      %682 = vrot.lane.b32.xlu0 %v475, 112
      %v683 = vpop.permute.xlu0 %682
      %v685 = vsel %vm513, %v683, 0
      %v688 = vsel %vm517, %v681, 0
      %690 = vmatprep.subr.bf16.mxu0 0
      %691 = vmatpush1.bf16.msra.mxu0 0
      %692 = vmatprep.subr.bf16.mxu0 0
      %693 = vmatpush1.bf16.msra.mxu0 0
      %694 = vmatprep.subr.bf16.mxu0 0
      %695 = vmatpush1.bf16.msra.mxu0 0
      %696 = vmatprep.subr.bf16.mxu0 0
      %697 = vmatpush1.bf16.msra.mxu0 0
      %698 = vmatprep.subr.bf16.mxu0 0
      %699 = vmatpush1.bf16.msra.mxu0 0
      %700 = vmatprep.subr.bf16.mxu0 0
      %701 = vmatpush1.bf16.msra.mxu0 0
      %702 = vmatprep.subr.bf16.mxu0 0
      %703 = vmatpush1.bf16.msra.mxu0 0
      %704 = vmatprep.subr.bf16.mxu0 0
      %705 = vmatpush1.bf16.msra.mxu0 %v688
      %706 = vmatprep.subr.bf16.mxu0 0
      %707 = vmatpush2.bf16.msra.mxu0 0
      %708 = vmatprep.subr.bf16.mxu0 0
      %709 = vmatpush2.bf16.msra.mxu0 0
      %710 = vmatprep.subr.bf16.mxu0 0
      %711 = vmatpush2.bf16.msra.mxu0 0
      %712 = vmatprep.subr.bf16.mxu0 0
      %713 = vmatpush2.bf16.msra.mxu0 0
      %714 = vmatprep.subr.bf16.mxu0 0
      %715 = vmatpush2.bf16.msra.mxu0 0
      %716 = vmatprep.subr.bf16.mxu0 0
      %717 = vmatpush2.bf16.msra.mxu0 0
      %718 = vmatprep.subr.bf16.mxu0 0
      %719 = vmatpush2.bf16.msra.mxu0 0
      %720 = vmatprep.subr.bf16.mxu0 0
      %721 = vmatpush2.bf16.msra.mxu0 0
      %722 = vmatprep.mubr.bf16.mxu0 0
      %723 = vmatmul.mubr.bf16.gmra.mxu0 %v685
      %v724 = vpop.f32.mrf.mxu0
      %v725 = vadd.f32 0.0, %v724
      %v726 = vpop.f32.mrf.mxu0
      %v727 = vpop.f32.mrf.mxu0
      %v728 = vpop.f32.mrf.mxu0
      %729 = vdwg.mxu0
      %730 = vrot.lane.b32.xlu0 %v470, 72
      %v731 = vpop.permute.xlu0 %730
      %733 = vxpose.xlu0.b32.start [1/16] %v731, 128
      %734 = vxpose.xlu0.b32.cont [2/16] 0.0, 128
      %735 = vxpose.xlu0.b32.cont [3/16] 0.0, 128
      %736 = vxpose.xlu0.b32.cont [4/16] 0.0, 128
      %737 = vxpose.xlu0.b32.cont [5/16] 0.0, 128
      %738 = vxpose.xlu0.b32.cont [6/16] 0.0, 128
      %739 = vxpose.xlu0.b32.cont [7/16] 0.0, 128
      %740 = vxpose.xlu0.b32.cont [8/16] 0.0, 128
      %741 = vxpose.xlu0.b32.cont [9/16] 0.0, 128
      %742 = vxpose.xlu0.b32.cont [10/16] 0.0, 128
      %743 = vxpose.xlu0.b32.cont [11/16] 0.0, 128
      %744 = vxpose.xlu0.b32.cont [12/16] 0.0, 128
      %745 = vxpose.xlu0.b32.cont [13/16] 0.0, 128
      %746 = vxpose.xlu0.b32.cont [14/16] 0.0, 128
      %747 = vxpose.xlu0.b32.cont [15/16] 0.0, 128
      %748 = vxpose.xlu0.b32.end [16/16] 0.0, 128
      %v749 = vpop.trf.xlu0
      %v750 = vpop.trf.xlu0
      %v751 = vpop.trf.xlu0
      %v752 = vpop.trf.xlu0
      %v753 = vpop.trf.xlu0
      %v754 = vpop.trf.xlu0
      %v755 = vpop.trf.xlu0
      %v756 = vpop.trf.xlu0
      %v757 = vpop.trf.xlu0
      %v758 = vpop.trf.xlu0
      %v759 = vpop.trf.xlu0
      %v760 = vpop.trf.xlu0
      %v761 = vpop.trf.xlu0
      %v762 = vpop.trf.xlu0
      %v763 = vpop.trf.xlu0
      %v764 = vpop.trf.xlu0
      %v765 = vpack.c.bf16 %v749, %v749
      %766 = vrot.lane.b32.xlu0 %v475, 104
      %v767 = vpop.permute.xlu0 %766
      %v769 = vsel %vm513, %v767, 0
      %v772 = vsel %vm517, %v765, 0
      %774 = vmatprep.subr.bf16.mxu0 0
      %775 = vmatpush1.bf16.msra.mxu0 0
      %776 = vmatprep.subr.bf16.mxu0 0
      %777 = vmatpush1.bf16.msra.mxu0 0
      %778 = vmatprep.subr.bf16.mxu0 0
      %779 = vmatpush1.bf16.msra.mxu0 0
      %780 = vmatprep.subr.bf16.mxu0 0
      %781 = vmatpush1.bf16.msra.mxu0 0
      %782 = vmatprep.subr.bf16.mxu0 0
      %783 = vmatpush1.bf16.msra.mxu0 0
      %784 = vmatprep.subr.bf16.mxu0 0
      %785 = vmatpush1.bf16.msra.mxu0 0
      %786 = vmatprep.subr.bf16.mxu0 0
      %787 = vmatpush1.bf16.msra.mxu0 0
      %788 = vmatprep.subr.bf16.mxu0 0
      %789 = vmatpush1.bf16.msra.mxu0 %v772
      %790 = vmatprep.subr.bf16.mxu0 0
      %791 = vmatpush2.bf16.msra.mxu0 0
      %792 = vmatprep.subr.bf16.mxu0 0
      %793 = vmatpush2.bf16.msra.mxu0 0
      %794 = vmatprep.subr.bf16.mxu0 0
      %795 = vmatpush2.bf16.msra.mxu0 0
      %796 = vmatprep.subr.bf16.mxu0 0
      %797 = vmatpush2.bf16.msra.mxu0 0
      %798 = vmatprep.subr.bf16.mxu0 0
      %799 = vmatpush2.bf16.msra.mxu0 0
      %800 = vmatprep.subr.bf16.mxu0 0
      %801 = vmatpush2.bf16.msra.mxu0 0
      %802 = vmatprep.subr.bf16.mxu0 0
      %803 = vmatpush2.bf16.msra.mxu0 0
      %804 = vmatprep.subr.bf16.mxu0 0
      %805 = vmatpush2.bf16.msra.mxu0 0
      %806 = vmatprep.mubr.bf16.mxu0 0
      %807 = vmatmul.mubr.bf16.gmra.mxu0 %v769
      %v808 = vpop.f32.mrf.mxu0
      %v809 = vadd.f32 0.0, %v808
      %v810 = vpop.f32.mrf.mxu0
      %v811 = vpop.f32.mrf.mxu0
      %v812 = vpop.f32.mrf.mxu0
      %813 = vdwg.mxu0
      %v815 = vlaneseq
      %v816 = vshrl.u32 %v815, 7
      %v817 = vsub.s32 0, %v816
      %v818 = vrot.slane %v409, %v817
      %v820 = vadd.f32 %v556, %v818
      %v821 = vadd.f32 %v641, %v818
      %v822 = vadd.f32 %v725, %v818
      %v823 = vadd.f32 %v809, %v818
      %v824 = vsel %vm513, %v820, -inf
      %825 = vmax.xlane.f32.xlu0 %v824
      %v826 = vpop.xlane.xlu0 %825
      %v827 = vsel %vm513, %v821, -inf
      %828 = vmax.xlane.f32.xlu0 %v827
      %v829 = vpop.xlane.xlu0 %828
      %v830 = vsel %vm513, %v822, -inf
      %831 = vmax.xlane.f32.xlu0 %v830
      %v832 = vpop.xlane.xlu0 %831
      %v833 = vsel %vm513, %v823, -inf
      %834 = vmax.xlane.f32.xlu0 %v833
      %v835 = vpop.xlane.xlu0 %834
      %v836 = vsub.f32 %v820, %v826
      %v837 = vsub.f32 %v821, %v829
      %v838 = vsub.f32 %v822, %v832
      %v839 = vsub.f32 %v823, %v835
      %v840 = vmul.f32 %v836, 1.442695
      %v841 = vpow.pop %v840
      %v842 = vmul.f32 %v837, 1.442695
      %v843 = vpow.pop %v842
      %v844 = vmul.f32 %v838, 1.442695
      %v845 = vpow.pop %v844
      %v846 = vmul.f32 %v839, 1.442695
      %v847 = vpow.pop %v846
      %v848 = vsel %vm513, %v841, 0.0
      %849 = vadd.xlane.f32.xlu0 %v848
      %v850 = vpop.xlane.xlu0 %849
      %v851 = vsel %vm513, %v843, 0.0
      %852 = vadd.xlane.f32.xlu0 %v851
      %v853 = vpop.xlane.xlu0 %852
      %v854 = vsel %vm513, %v845, 0.0
      %855 = vadd.xlane.f32.xlu0 %v854
      %v856 = vpop.xlane.xlu0 %855
      %v857 = vsel %vm513, %v847, 0.0
      %858 = vadd.xlane.f32.xlu0 %v857
      %v859 = vpop.xlane.xlu0 %858
      %v860 = vrcp.pop %v850
      %v861 = vrcp.pop %v853
      %v862 = vrcp.pop %v856
      %v863 = vrcp.pop %v859
      %v864 = vmul.f32 %v841, %v860
      %v865 = vmul.f32 %v843, %v861
      %v866 = vmul.f32 %v845, %v862
      %v867 = vmul.f32 %v847, %v863
      %v868 = vpack.c.bf16 %v864, %v864
      %869 = vrot.lane.b32.xlu0 %v475, 64
      %v870 = vpop.permute.xlu0 %869
      %v872 = vsel %vm513, %v868, 0
      %v875 = vsel %vm517, %v870, 0
      %877 = vmatprep.subr.bf16.mxu0 0
      %878 = vmatpush1.bf16.msra.mxu0 0
      %879 = vmatprep.subr.bf16.mxu0 0
      %880 = vmatpush1.bf16.msra.mxu0 0
      %881 = vmatprep.subr.bf16.mxu0 0
      %882 = vmatpush1.bf16.msra.mxu0 0
      %883 = vmatprep.subr.bf16.mxu0 0
      %884 = vmatpush1.bf16.msra.mxu0 0
      %885 = vmatprep.subr.bf16.mxu0 0
      %886 = vmatpush1.bf16.msra.mxu0 0
      %887 = vmatprep.subr.bf16.mxu0 0
      %888 = vmatpush1.bf16.msra.mxu0 0
      %889 = vmatprep.subr.bf16.mxu0 0
      %890 = vmatpush1.bf16.msra.mxu0 0
      %891 = vmatprep.subr.bf16.mxu0 0
      %892 = vmatpush1.bf16.msra.mxu0 %v875
      %893 = vmatprep.subr.bf16.mxu0 0
      %894 = vmatpush2.bf16.msra.mxu0 0
      %895 = vmatprep.subr.bf16.mxu0 0
      %896 = vmatpush2.bf16.msra.mxu0 0
      %897 = vmatprep.subr.bf16.mxu0 0
      %898 = vmatpush2.bf16.msra.mxu0 0
      %899 = vmatprep.subr.bf16.mxu0 0
      %900 = vmatpush2.bf16.msra.mxu0 0
      %901 = vmatprep.subr.bf16.mxu0 0
      %902 = vmatpush2.bf16.msra.mxu0 0
      %903 = vmatprep.subr.bf16.mxu0 0
      %904 = vmatpush2.bf16.msra.mxu0 0
      %905 = vmatprep.subr.bf16.mxu0 0
      %906 = vmatpush2.bf16.msra.mxu0 0
      %907 = vmatprep.subr.bf16.mxu0 0
      %908 = vmatpush2.bf16.msra.mxu0 0
      %909 = vmatprep.mubr.bf16.mxu0 0
      %910 = vmatmul.mubr.bf16.gmra.mxu0 %v872
      %v911 = vpop.f32.mrf.mxu0
      %v912 = vadd.f32 0.0, %v911
      %v913 = vpop.f32.mrf.mxu0
      %v914 = vpop.f32.mrf.mxu0
      %v915 = vpop.f32.mrf.mxu0
      %916 = vdwg.mxu0
      %v917 = vpack.c.bf16 %v865, %v865
      %918 = vrot.lane.b32.xlu0 %v475, 56
      %v919 = vpop.permute.xlu0 %918
      %v921 = vsel %vm513, %v917, 0
      %v924 = vsel %vm517, %v919, 0
      %926 = vmatprep.subr.bf16.mxu0 0
      %927 = vmatpush1.bf16.msra.mxu0 0
      %928 = vmatprep.subr.bf16.mxu0 0
      %929 = vmatpush1.bf16.msra.mxu0 0
      %930 = vmatprep.subr.bf16.mxu0 0
      %931 = vmatpush1.bf16.msra.mxu0 0
      %932 = vmatprep.subr.bf16.mxu0 0
      %933 = vmatpush1.bf16.msra.mxu0 0
      %934 = vmatprep.subr.bf16.mxu0 0
      %935 = vmatpush1.bf16.msra.mxu0 0
      %936 = vmatprep.subr.bf16.mxu0 0
      %937 = vmatpush1.bf16.msra.mxu0 0
      %938 = vmatprep.subr.bf16.mxu0 0
      %939 = vmatpush1.bf16.msra.mxu0 0
      %940 = vmatprep.subr.bf16.mxu0 0
      %941 = vmatpush1.bf16.msra.mxu0 %v924
      %942 = vmatprep.subr.bf16.mxu0 0
      %943 = vmatpush2.bf16.msra.mxu0 0
      %944 = vmatprep.subr.bf16.mxu0 0
      %945 = vmatpush2.bf16.msra.mxu0 0
      %946 = vmatprep.subr.bf16.mxu0 0
      %947 = vmatpush2.bf16.msra.mxu0 0
      %948 = vmatprep.subr.bf16.mxu0 0
      %949 = vmatpush2.bf16.msra.mxu0 0
      %950 = vmatprep.subr.bf16.mxu0 0
      %951 = vmatpush2.bf16.msra.mxu0 0
      %952 = vmatprep.subr.bf16.mxu0 0
      %953 = vmatpush2.bf16.msra.mxu0 0
      %954 = vmatprep.subr.bf16.mxu0 0
      %955 = vmatpush2.bf16.msra.mxu0 0
      %956 = vmatprep.subr.bf16.mxu0 0
      %957 = vmatpush2.bf16.msra.mxu0 0
      %958 = vmatprep.mubr.bf16.mxu0 0
      %959 = vmatmul.mubr.bf16.gmra.mxu0 %v921
      %v960 = vpop.f32.mrf.mxu0
      %v961 = vadd.f32 0.0, %v960
      %v962 = vpop.f32.mrf.mxu0
      %v963 = vpop.f32.mrf.mxu0
      %v964 = vpop.f32.mrf.mxu0
      %965 = vdwg.mxu0
      %v966 = vpack.c.bf16 %v866, %v866
      %967 = vrot.lane.b32.xlu0 %v475, 48
      %v968 = vpop.permute.xlu0 %967
      %v970 = vsel %vm513, %v966, 0
      %v973 = vsel %vm517, %v968, 0
      %975 = vmatprep.subr.bf16.mxu0 0
      %976 = vmatpush1.bf16.msra.mxu0 0
      %977 = vmatprep.subr.bf16.mxu0 0
      %978 = vmatpush1.bf16.msra.mxu0 0
      %979 = vmatprep.subr.bf16.mxu0 0
      %980 = vmatpush1.bf16.msra.mxu0 0
      %981 = vmatprep.subr.bf16.mxu0 0
      %982 = vmatpush1.bf16.msra.mxu0 0
      %983 = vmatprep.subr.bf16.mxu0 0
      %984 = vmatpush1.bf16.msra.mxu0 0
      %985 = vmatprep.subr.bf16.mxu0 0
      %986 = vmatpush1.bf16.msra.mxu0 0
      %987 = vmatprep.subr.bf16.mxu0 0
      %988 = vmatpush1.bf16.msra.mxu0 0
      %989 = vmatprep.subr.bf16.mxu0 0
      %990 = vmatpush1.bf16.msra.mxu0 %v973
      %991 = vmatprep.subr.bf16.mxu0 0
      %992 = vmatpush2.bf16.msra.mxu0 0
      %993 = vmatprep.subr.bf16.mxu0 0
      %994 = vmatpush2.bf16.msra.mxu0 0
      %995 = vmatprep.subr.bf16.mxu0 0
      %996 = vmatpush2.bf16.msra.mxu0 0
      %997 = vmatprep.subr.bf16.mxu0 0
      %998 = vmatpush2.bf16.msra.mxu0 0
      %999 = vmatprep.subr.bf16.mxu0 0
      %1000 = vmatpush2.bf16.msra.mxu0 0
      %1001 = vmatprep.subr.bf16.mxu0 0
      %1002 = vmatpush2.bf16.msra.mxu0 0
      %1003 = vmatprep.subr.bf16.mxu0 0
      %1004 = vmatpush2.bf16.msra.mxu0 0
      %1005 = vmatprep.subr.bf16.mxu0 0
      %1006 = vmatpush2.bf16.msra.mxu0 0
      %1007 = vmatprep.mubr.bf16.mxu0 0
      %1008 = vmatmul.mubr.bf16.gmra.mxu0 %v970
      %v1009 = vpop.f32.mrf.mxu0
      %v1010 = vadd.f32 0.0, %v1009
      %v1011 = vpop.f32.mrf.mxu0
      %v1012 = vpop.f32.mrf.mxu0
      %v1013 = vpop.f32.mrf.mxu0
      %1014 = vdwg.mxu0
      %v1015 = vpack.c.bf16 %v867, %v867
      %1016 = vrot.lane.b32.xlu0 %v475, 40
      %v1017 = vpop.permute.xlu0 %1016
      %v1019 = vsel %vm513, %v1015, 0
      %v1022 = vsel %vm517, %v1017, 0
      %1024 = vmatprep.subr.bf16.mxu0 0
      %1025 = vmatpush1.bf16.msra.mxu0 0
      %1026 = vmatprep.subr.bf16.mxu0 0
      %1027 = vmatpush1.bf16.msra.mxu0 0
      %1028 = vmatprep.subr.bf16.mxu0 0
      %1029 = vmatpush1.bf16.msra.mxu0 0
      %1030 = vmatprep.subr.bf16.mxu0 0
      %1031 = vmatpush1.bf16.msra.mxu0 0
      %1032 = vmatprep.subr.bf16.mxu0 0
      %1033 = vmatpush1.bf16.msra.mxu0 0
      %1034 = vmatprep.subr.bf16.mxu0 0
      %1035 = vmatpush1.bf16.msra.mxu0 0
      %1036 = vmatprep.subr.bf16.mxu0 0
      %1037 = vmatpush1.bf16.msra.mxu0 0
      %1038 = vmatprep.subr.bf16.mxu0 0
      %1039 = vmatpush1.bf16.msra.mxu0 %v1022
      %1040 = vmatprep.subr.bf16.mxu0 0
      %1041 = vmatpush2.bf16.msra.mxu0 0
      %1042 = vmatprep.subr.bf16.mxu0 0
      %1043 = vmatpush2.bf16.msra.mxu0 0
      %1044 = vmatprep.subr.bf16.mxu0 0
      %1045 = vmatpush2.bf16.msra.mxu0 0
      %1046 = vmatprep.subr.bf16.mxu0 0
      %1047 = vmatpush2.bf16.msra.mxu0 0
      %1048 = vmatprep.subr.bf16.mxu0 0
      %1049 = vmatpush2.bf16.msra.mxu0 0
      %1050 = vmatprep.subr.bf16.mxu0 0
      %1051 = vmatpush2.bf16.msra.mxu0 0
      %1052 = vmatprep.subr.bf16.mxu0 0
      %1053 = vmatpush2.bf16.msra.mxu0 0
      %1054 = vmatprep.subr.bf16.mxu0 0
      %1055 = vmatpush2.bf16.msra.mxu0 0
      %1056 = vmatprep.mubr.bf16.mxu0 0
      %1057 = vmatmul.mubr.bf16.gmra.mxu0 %v1019
      %v1058 = vpop.f32.mrf.mxu0
      %v1059 = vadd.f32 0.0, %v1058
      %v1060 = vpop.f32.mrf.mxu0
      %v1061 = vpop.f32.mrf.mxu0
      %v1062 = vpop.f32.mrf.mxu0
      %1063 = vdwg.mxu0
      %1065 = vrot.lane.b32.xlu0 %v961, 8
      %v1066 = vpop.permute.xlu0 %1065
      %1069 = vrot.lane.b32.xlu0 %v1010, 16
      %v1070 = vpop.permute.xlu0 %1069
      %1073 = vrot.lane.b32.xlu0 %v1059, 24
      %v1074 = vpop.permute.xlu0 %1073
      %v1076 = vsel %vm513, %v912, %v1066
      %vm1077 = vcmask 130048
      %v1078 = vsel %vm1077, %v1076, %v1070
      %vm1079 = vcmask 195584
      %v1080 = vsel %vm1079, %v1078, %v1074
      %v1081 = vld [vmem:[%s378] sm:$0xf]
      %v1082 = vld [vmem:[%s378 + $0x4] sm:$0xf]
      %v1083 = vld [vmem:[%s378 + $0x8] sm:$0xf]
      %v1084 = vld [vmem:[%s378 + $0xc] sm:$0xf]
      %v1085 = vpack.c.bf16 %v1080, %v1080
      %v1090 = vunpack.c.l.b16 %v1081
      %v1091 = vunpack.c.l.b16 %v1082
      %v1092 = vunpack.c.l.b16 %v1083
      %v1093 = vunpack.c.l.b16 %v1084
      %v1094 = vpack.c.b16 %v1091, %v1090
      %v1095 = vpack.c.b16 %v1093, %v1092
      %v1099 = vsel %vm431, %v1085, 0
      %1101 = vmatprep.subr.bf16.mxu0 0
      %1102 = vmatpush1.bf16.msra.mxu0 0
      %1103 = vmatprep.subr.bf16.mxu0 0
      %1104 = vmatpush1.bf16.msra.mxu0 0
      %1105 = vmatprep.subr.bf16.mxu0 0
      %1106 = vmatpush1.bf16.msra.mxu0 0
      %1107 = vmatprep.subr.bf16.mxu0 0
      %1108 = vmatpush1.bf16.msra.mxu0 0
      %1109 = vmatprep.subr.bf16.mxu0 0
      %1110 = vmatpush1.bf16.msra.mxu0 0
      %1111 = vmatprep.subr.bf16.mxu0 0
      %1112 = vmatpush1.bf16.msra.mxu0 0
      %1113 = vmatprep.subr.bf16.mxu0 0
      %1114 = vmatpush1.bf16.msra.mxu0 %v1095
      %1115 = vmatprep.subr.bf16.mxu0 0
      %1116 = vmatpush1.bf16.msra.mxu0 %v1094
      %1117 = vmatprep.subr.bf16.mxu0 0
      %1118 = vmatpush2.bf16.msra.mxu0 0
      %1119 = vmatprep.subr.bf16.mxu0 0
      %1120 = vmatpush2.bf16.msra.mxu0 0
      %1121 = vmatprep.subr.bf16.mxu0 0
      %1122 = vmatpush2.bf16.msra.mxu0 0
      %1123 = vmatprep.subr.bf16.mxu0 0
      %1124 = vmatpush2.bf16.msra.mxu0 0
      %1125 = vmatprep.subr.bf16.mxu0 0
      %1126 = vmatpush2.bf16.msra.mxu0 0
      %1127 = vmatprep.subr.bf16.mxu0 0
      %1128 = vmatpush2.bf16.msra.mxu0 0
      %1129 = vmatprep.subr.bf16.mxu0 0
      %1130 = vmatpush2.bf16.msra.mxu0 0
      %1131 = vmatprep.subr.bf16.mxu0 0
      %1132 = vmatpush2.bf16.msra.mxu0 0
      %1133 = vmatprep.mubr.bf16.mxu0 0
      %1134 = vmatmul.mubr.bf16.gmra.mxu0 %v1099
      %v1135 = vpop.f32.mrf.mxu0
      %v1136 = vadd.f32 0.0, %v1135
      %v1137 = vpop.f32.mrf.mxu0
      %v1138 = vpop.f32.mrf.mxu0
      %v1139 = vpop.f32.mrf.mxu0
      %1140 = vdwg.mxu0
      %v1141 = vadd.f32 %v405, %v1136
      %v1142 = vlaneseq
      %v1143 = vshrl.u32 %v1142, 7
      %v1144 = vsub.s32 1, %v1143
      %v1145 = vrot.slane %v406, %v1144
      %v1146 = vadd.f32 %v1141, %v1145
      %v1147 = vsel %vm431, %v1146, 0.0
      %1148 = vadd.xlane.f32.xlu0 %v1147
      %v1149 = vpop.xlane.xlu0 %1148
      %v1150 = vrcp.pop 32.0
      %v1151 = vmul.f32 %v1149, %v1150
      %v1152 = vsub.f32 %v1146, %v1151
      %v1153 = vmul.f32 %v1152, %v1152
      %v1154 = vsel %vm431, %v1153, 0.0
      %1155 = vadd.xlane.f32.xlu0 %v1154
      %v1156 = vpop.xlane.xlu0 %1155
      %v1157 = vmul.f32 %v1156, %v1150
      %v1158 = vadd.f32 %v1157, 1e-05
      %v1159 = vrsqrt.pop %v1158
      %v1160 = vmul.f32 %v1152, %v1159
      %v1161 = vlaneseq
      %v1162 = vshrl.u32 %v1161, 7
      %v1163 = vsub.s32 2, %v1162
      %v1164 = vrot.slane %v406, %v1163
      %v1165 = vmul.f32 %v1160, %v1164
      %v1166 = vlaneseq
      %v1167 = vshrl.u32 %v1166, 7
      %v1168 = vsub.s32 3, %v1167
      %v1169 = vrot.slane %v406, %v1168
      %v1170 = vadd.f32 %v1165, %v1169
      %v1171 = vld [vmem:[%s383] sm:$0xf]
      %v1172 = vld [vmem:[%s383 + $0x4] sm:$0xf]
      %v1173 = vld [vmem:[%s383 + $0x8] sm:$0xf]
      %v1174 = vld [vmem:[%s383 + $0xc] sm:$0xf]
      %v1175 = vpack.c.bf16 %v1170, %v1170
      %v1176 = vlaneseq
      %v1177 = vshrl.u32 %v1176, 7
      %v1178 = vsub.s32 4, %v1177
      %v1179 = vrot.slane %v406, %v1178
      %v1184 = vunpack.c.l.b16 %v1171
      %v1185 = vunpack.c.l.b16 %v1172
      %v1186 = vunpack.c.l.b16 %v1173
      %v1187 = vunpack.c.l.b16 %v1174
      %v1188 = vpack.c.b16 %v1185, %v1184
      %v1189 = vpack.c.b16 %v1187, %v1186
      %v1193 = vsel %vm431, %v1175, 0
      %1195 = vmatprep.subr.bf16.mxu0 0
      %1196 = vmatpush1.bf16.msra.mxu0 0
      %1197 = vmatprep.subr.bf16.mxu0 0
      %1198 = vmatpush1.bf16.msra.mxu0 0
      %1199 = vmatprep.subr.bf16.mxu0 0
      %1200 = vmatpush1.bf16.msra.mxu0 0
      %1201 = vmatprep.subr.bf16.mxu0 0
      %1202 = vmatpush1.bf16.msra.mxu0 0
      %1203 = vmatprep.subr.bf16.mxu0 0
      %1204 = vmatpush1.bf16.msra.mxu0 0
      %1205 = vmatprep.subr.bf16.mxu0 0
      %1206 = vmatpush1.bf16.msra.mxu0 0
      %1207 = vmatprep.subr.bf16.mxu0 0
      %1208 = vmatpush1.bf16.msra.mxu0 %v1189
      %1209 = vmatprep.subr.bf16.mxu0 0
      %1210 = vmatpush1.bf16.msra.mxu0 %v1188
      %1211 = vmatprep.subr.bf16.mxu0 0
      %1212 = vmatpush2.bf16.msra.mxu0 0
      %1213 = vmatprep.subr.bf16.mxu0 0
      %1214 = vmatpush2.bf16.msra.mxu0 0
      %1215 = vmatprep.subr.bf16.mxu0 0
      %1216 = vmatpush2.bf16.msra.mxu0 0
      %1217 = vmatprep.subr.bf16.mxu0 0
      %1218 = vmatpush2.bf16.msra.mxu0 0
      %1219 = vmatprep.subr.bf16.mxu0 0
      %1220 = vmatpush2.bf16.msra.mxu0 0
      %1221 = vmatprep.subr.bf16.mxu0 0
      %1222 = vmatpush2.bf16.msra.mxu0 0
      %1223 = vmatprep.subr.bf16.mxu0 0
      %1224 = vmatpush2.bf16.msra.mxu0 0
      %1225 = vmatprep.subr.bf16.mxu0 0
      %1226 = vmatpush2.bf16.msra.mxu0 0
      %1227 = vmatprep.mubr.bf16.mxu0 0
      %1228 = vmatmul.mubr.bf16.gmra.mxu0 %v1193
      %v1229 = vpop.f32.mrf.mxu0
      %v1230 = vadd.f32 %v1179, %v1229
      %v1231 = vpop.f32.mrf.mxu0
      %v1232 = vpop.f32.mrf.mxu0
      %v1233 = vpop.f32.mrf.mxu0
      %1234 = vdwg.mxu0
      %vm1235 = vcmp.gt.f32.partialorder %v1230, 0.0
      %v1236 = vmul.f32 %v1230, 0.01
      %v1237 = vsel %vm1235, %v1230, %v1236
      %v1238 = vld [vmem:[%s388] sm:$0xf]
      %v1239 = vld [vmem:[%s388 + $0x4] sm:$0xf]
      %v1240 = vld [vmem:[%s388 + $0x8] sm:$0xf]
      %v1241 = vld [vmem:[%s388 + $0xc] sm:$0xf]
      %v1242 = vld [vmem:[%s388 + $0x10] sm:$0xf]
      %v1243 = vld [vmem:[%s388 + $0x14] sm:$0xf]
      %v1244 = vld [vmem:[%s388 + $0x18] sm:$0xf]
      %v1245 = vld [vmem:[%s388 + $0x1c] sm:$0xf]
      %v1246 = vpack.c.bf16 %v1237, %v1237
      %v1255 = vunpack.c.l.b16 %v1238
      %v1256 = vunpack.c.l.b16 %v1239
      %v1257 = vunpack.c.l.b16 %v1240
      %v1258 = vunpack.c.l.b16 %v1241
      %v1259 = vunpack.c.l.b16 %v1242
      %v1260 = vunpack.c.l.b16 %v1243
      %v1261 = vunpack.c.l.b16 %v1244
      %v1262 = vunpack.c.l.b16 %v1245
      %v1263 = vpack.c.b16 %v1256, %v1255
      %v1264 = vpack.c.b16 %v1258, %v1257
      %v1265 = vpack.c.b16 %v1260, %v1259
      %v1266 = vpack.c.b16 %v1262, %v1261
      %vm1271 = vcmask 523264
      %v1273 = vsel %vm1271, %v1246, 0
      %1275 = vmatprep.subr.bf16.mxu0 0
      %1276 = vmatpush1.bf16.msra.mxu0 0
      %1277 = vmatprep.subr.bf16.mxu0 0
      %1278 = vmatpush1.bf16.msra.mxu0 0
      %1279 = vmatprep.subr.bf16.mxu0 0
      %1280 = vmatpush1.bf16.msra.mxu0 0
      %1281 = vmatprep.subr.bf16.mxu0 0
      %1282 = vmatpush1.bf16.msra.mxu0 0
      %1283 = vmatprep.subr.bf16.mxu0 0
      %1284 = vmatpush1.bf16.msra.mxu0 %v1266
      %1285 = vmatprep.subr.bf16.mxu0 0
      %1286 = vmatpush1.bf16.msra.mxu0 %v1265
      %1287 = vmatprep.subr.bf16.mxu0 0
      %1288 = vmatpush1.bf16.msra.mxu0 %v1264
      %1289 = vmatprep.subr.bf16.mxu0 0
      %1290 = vmatpush1.bf16.msra.mxu0 %v1263
      %1291 = vmatprep.subr.bf16.mxu0 0
      %1292 = vmatpush2.bf16.msra.mxu0 0
      %1293 = vmatprep.subr.bf16.mxu0 0
      %1294 = vmatpush2.bf16.msra.mxu0 0
      %1295 = vmatprep.subr.bf16.mxu0 0
      %1296 = vmatpush2.bf16.msra.mxu0 0
      %1297 = vmatprep.subr.bf16.mxu0 0
      %1298 = vmatpush2.bf16.msra.mxu0 0
      %1299 = vmatprep.subr.bf16.mxu0 0
      %1300 = vmatpush2.bf16.msra.mxu0 0
      %1301 = vmatprep.subr.bf16.mxu0 0
      %1302 = vmatpush2.bf16.msra.mxu0 0
      %1303 = vmatprep.subr.bf16.mxu0 0
      %1304 = vmatpush2.bf16.msra.mxu0 0
      %1305 = vmatprep.subr.bf16.mxu0 0
      %1306 = vmatpush2.bf16.msra.mxu0 0
      %1307 = vmatprep.mubr.bf16.mxu0 0
      %1308 = vmatmul.mubr.bf16.gmra.mxu0 %v1273
      %v1309 = vpop.f32.mrf.mxu0
      %v1310 = vadd.f32 0.0, %v1309
      %v1311 = vpop.f32.mrf.mxu0
      %v1312 = vpop.f32.mrf.mxu0
      %v1313 = vpop.f32.mrf.mxu0
      %1314 = vdwg.mxu0
      %v1315 = vadd.f32 %v1170, %v1310
      %v1316 = vlaneseq
      %v1317 = vshrl.u32 %v1316, 7
      %v1318 = vsub.s32 5, %v1317
      %v1319 = vrot.slane %v406, %v1318
      %v1320 = vadd.f32 %v1315, %v1319
      %v1321 = vsel %vm431, %v1320, 0.0
      %1322 = vadd.xlane.f32.xlu0 %v1321
      %v1323 = vpop.xlane.xlu0 %1322
      %v1324 = vmul.f32 %v1323, %v1150
      %v1325 = vsub.f32 %v1320, %v1324
      %v1326 = vmul.f32 %v1325, %v1325
      %v1327 = vsel %vm431, %v1326, 0.0
      %1328 = vadd.xlane.f32.xlu0 %v1327
      %v1329 = vpop.xlane.xlu0 %1328
      %v1330 = vmul.f32 %v1329, %v1150
      %v1331 = vadd.f32 %v1330, 1e-05
      %v1332 = vrsqrt.pop %v1331
      %v1333 = vmul.f32 %v1325, %v1332
      %v1334 = vlaneseq
      %v1335 = vshrl.u32 %v1334, 7
      %v1336 = vsub.s32 6, %v1335
      %v1337 = vrot.slane %v406, %v1336
      %v1338 = vmul.f32 %v1333, %v1337
      %v1339 = vlaneseq
      %v1340 = vshrl.u32 %v1339, 7
      %v1341 = vsub.s32 7, %v1340
      %v1342 = vrot.slane %v406, %v1341
      %v1343 = vadd.f32 %v1338, %v1342
      %1344 = vst.msk [vmem:[#allocation2] sm:$0xff] %vm431, %v1343
      %p1345 = scmp.eq.s32.totalorder %s23, 1
      // Predicated region
      $region53: #{transformer_forward.2} parent=47 // pred_check
        %p1346 = pneg %p1345
      $region54: #{transformer_forward.2} parent=47 // pred_check_branch
        %1348 = sbr.rel (%p1346) target = $region56
      $region55: #{transformer_forward.2} parent=47 // pred_region
        %1349 = vst.msk [vmem:[%s396] sm:$0xff] %vm431, %v1343
      $region56: #{transformer_forward.2} parent=47 // pred_fallthru
        _
      %p1350 = scmp.lt.s32.totalorder %s22, 1
      %s1351 = scalar_select %p1350, %s22, 1
      %s1352 = smul.addr %s1351, 8
      %s1353 = scalar_lea.vmem %s7, %s1352
      // Predicated region
      $region57: #{transformer_forward.2} parent=47 // pred_check
        %p1354 = pneg %p230
      $region58: #{transformer_forward.2} parent=47 // pred_check_branch
        %1356 = sbr.rel (%p1354) target = $region60
      $region59: #{transformer_forward.2} parent=47 // pred_region
        _
      $region60: #{transformer_forward.2} parent=47 // pred_fallthru
        _
    $region48: #{transformer_forward.2} parent=5 // pred_fallthru
      _
    %p1357 = scmp.le.s32.totalorder 2, %s13
    // Predicated region
    $region61: #{transformer_forward.2} parent=5 // pred_check
      %p1358 = pneg %p1357
    $region62: #{transformer_forward.2} parent=5 // pred_check_branch
      %1360 = sbr.rel (%p1358) target = $region64
    $region63: #{transformer_forward.2} parent=5 // pred_region
      %s1361 = ssub.s32 %s13, 2
      // Predicated region
      $region65: #{transformer_forward.2} parent=63 // pred_check
        %p1362 = pneg %p236
      $region66: #{transformer_forward.2} parent=63 // pred_check_branch
        %1364 = sbr.rel (%p1362) target = $region68
      $region67: #{transformer_forward.2} parent=63 // pred_region
        %p1365 = scmp.lt.s32.totalorder %s24, 1
        %s1366 = scalar_select %p1365, %s24, 1
        %s1367 = smul.addr %s1366, 8
        %s1368 = scalar_lea.vmem %s7, %s1367
      $region68: #{transformer_forward.2} parent=63 // pred_fallthru
        _
    $region64: #{transformer_forward.2} parent=5 // pred_fallthru
      _
  $region6: #{transformer_forward.2} parent=0 // loop_footer
    %s17 = sadd.s32 1, %s13
  $region7: #{transformer_forward.2} parent=0 // loop_footer_branch
    %12 = sbr.rel target = $region3
  $region8: #{transformer_forward.2} parent=0 // loop_exit
    _

// kernel: transformer_forward.3
$region0: #{transformer_forward.3}
  #allocation0 [shape = 'u32[]', space=smem, size = 0x4, offset = 0x4, fixed_abs, tag = 'smem constant byte address 0x4 - core index']
  #allocation1 [shape = 'u32[144,128]{1,0:T(1,128)}', space=vmem, size = 0x12000, scoped, tag = 'internal scratch']
  #allocation2 [shape = 'f32[8,32]{1,0:T(8,128)}', space=vmem, size = 0x1000, scoped, tag = 'scratch operand']
  %s0 = inlined_call_operand.vmem [shape: f32[2,1,8], index: 0, kind: input, shape index: {}]
  %s1 = inlined_call_operand.vmem [shape: f32[2,1,8], index: 1, kind: input, shape index: {}]
  %s2 = inlined_call_operand.vmem [shape: f32[16,32], index: 2, kind: input, shape index: {}]
  %s3 = inlined_call_operand.vmem [shape: f32[16,32], index: 3, kind: input, shape index: {}]
  %s4 = inlined_call_operand.vmem [shape: bf16[2,32,96], index: 4, kind: input, shape index: {}]
  %s5 = inlined_call_operand.vmem [shape: bf16[2,32,32], index: 5, kind: input, shape index: {}]
  %s6 = inlined_call_operand.vmem [shape: bf16[2,32,32], index: 6, kind: input, shape index: {}]
  %s7 = inlined_call_operand.vmem [shape: bf16[2,32,64], index: 7, kind: input, shape index: {}]
  %s8 = inlined_call_operand.vmem [shape: bf16[2,32,32], index: 8, kind: input, shape index: {}]
  %s9 = inlined_call_operand.vmem [shape: bf16[2,32,64], index: 9, kind: input, shape index: {}]
  %s10 = inlined_call_operand.vmem [shape: bf16[2,64,32], index: 10, kind: input, shape index: {}]
  %s11 = inlined_call_operand.vmem [shape: f32[2,16,96], index: 11, kind: input, shape index: {}]
  %s12 = inlined_call_operand.vmem [shape: bf16[32,64], index: 12, kind: input, shape index: {}]
  %s13 = inlined_call_operand.vmem [shape: f32[1,64], index: 13, kind: input, shape index: {}]
  %s14 = inlined_call_operand.vmem [shape: f32[16,64], index: 14, kind: output, shape index: {}]
  %s15 = sld [smem:[#allocation0]]
  $region97: #{transformer_forward.3} parent=0
    _
  %s17 = ssub.s32 1, %s15
  %s18 = scalar_select 0, %s17, %s15
  loop: start=0, step=1, limit=6
  $region2: #{transformer_forward.3} parent=0 // loop_pre_header
    _
  $region3: #{transformer_forward.3} parent=0 // loop_header
    %s20 = sphi 0, %s24
    %p21 = scmp.ge.s32.totalorder %s20, 6
    %s27 = sphi 0, %s39
    %s28 = sphi 0, %s35
    %s29 = sphi 0, %s27
    %s30 = sphi 0, %s28
    %s31 = sphi 0, %s29
    %s32 = sphi 0, %s30
    %s42 = sphi 0, %s44
    %s45 = sphi 0, %s42
    %s46 = sphi 0, %s45
    %s62 = sphi 0, %s46
    %s68 = sphi 0, %s70
    %s71 = sphi 0, %s68
    %s72 = sphi 0, %s71
    %s88 = sphi 0, %s72
    %s94 = sphi 0, %s96
    %s97 = sphi 0, %s94
    %s98 = sphi 0, %s97
    %s114 = sphi 0, %s98
    %s120 = sphi 0, %s122
    %s123 = sphi 0, %s120
    %s124 = sphi 0, %s123
    %s140 = sphi 0, %s124
    %s146 = sphi 0, %s148
    %s149 = sphi 0, %s146
    %s150 = sphi 0, %s149
    %s166 = sphi 0, %s150
    %s172 = sphi 0, %s174
    %s175 = sphi 0, %s172
    %s176 = sphi 0, %s175
    %s192 = sphi 0, %s176
    %s198 = sphi 0, %s200
    %s201 = sphi 0, %s198
    %s202 = sphi 0, %s201
    %s218 = sphi 0, %s202
    %s224 = sphi 0, %s226
    %s227 = sphi 0, %s224
    %s228 = sphi 0, %s227
    %s244 = sphi 0, %s228
    %s250 = sphi 0, %s252
    %s253 = sphi 0, %s250
    %s254 = sphi 0, %s253
    %s270 = sphi 0, %s254
    %s276 = sphi 0, %s278
    %s279 = sphi 0, %s276
    %s280 = sphi 0, %s279
    %s296 = sphi 0, %s280
    %s302 = sphi 0, %s304
    %s305 = sphi 0, %s302
    %s306 = sphi 0, %s305
    %s322 = sphi 0, %s306
    %s328 = sphi 0, %s330
    %s331 = sphi 0, %s328
    %s332 = sphi 0, %s331
    %s348 = sphi 0, %s332
    %s352 = sphi 0, %s352
    %s354 = sphi 0, %s352
    %s355 = sphi 0, %s354
    %s369 = sphi 0, %s355
    %s373 = sphi 0, %s373
    %s375 = sphi 0, %s373
    %s376 = sphi 0, %s375
    %s390 = sphi 0, %s376
    %s396 = sphi 0, %s398
    %s399 = sphi 0, %s396
    %s400 = sphi 0, %s399
    %s416 = sphi 0, %s400
  $region4: #{transformer_forward.3} parent=0 // loop_header_branch
    %23 = sbr.rel (%p21) target = $region8
  $region5: #{transformer_forward.3} parent=0 // loop_body
    %s25 = ssub.s32 %s20, 1
    %s26 = ssub.s32 %s20, 2
    %s33 = sadd.s32 1, %s28
    %p34 = scmp.ge.s32.totalorder %s33, 2
    %s35 = scalar_select %p34, 0, %s33
    %s36 = sadd.s32 1, %s27
    %s37 = scalar_select %p34, %s36, %s27
    %p38 = scmp.ge.s32.totalorder %s37, 2
    %s39 = scalar_select %p38, 0, %s37
    %s40 = ssub.s32 %s27, %s39
    %p41 = scmp.eq.s32.totalorder %s40, 0
    %s43 = sadd.s32 %s42, 1
    %s44 = scalar_select %p41, %s42, %s43
    %p47 = pneg %p41
    %p48 = scmp.eq.s32.totalorder %s20, 3
    %p49 = por %p47, %p48
    %p50 = scmp.ne.s32.totalorder %s42, %s45
    %p51 = scmp.eq.s32.totalorder %s20, 0
    %p52 = por %p50, %p51
    %p53 = scmp.ne.s32.totalorder %s42, %s45
    %p54 = scmp.eq.s32.totalorder %s25, 3
    %p55 = por %p53, %p54
    %p56 = scmp.ne.s32.totalorder %s45, %s46
    %p57 = scmp.eq.s32.totalorder %s25, 0
    %p58 = por %p56, %p57
    %p59 = scmp.ne.s32.totalorder %s45, %s46
    %p60 = scmp.eq.s32.totalorder %s26, 3
    %p61 = por %p59, %p60
    %p63 = scmp.ne.s32.totalorder %s46, %s62
    %p64 = scmp.eq.s32.totalorder %s26, 0
    %p65 = por %p63, %p64
    %s66 = ssub.s32 %s27, %s39
    %p67 = scmp.eq.s32.totalorder %s66, 0
    %s69 = sadd.s32 %s68, 1
    %s70 = scalar_select %p67, %s68, %s69
    %p73 = pneg %p67
    %p74 = scmp.eq.s32.totalorder %s20, 3
    %p75 = por %p73, %p74
    %p76 = scmp.ne.s32.totalorder %s68, %s71
    %p77 = scmp.eq.s32.totalorder %s20, 0
    %p78 = por %p76, %p77
    %p79 = scmp.ne.s32.totalorder %s68, %s71
    %p80 = scmp.eq.s32.totalorder %s25, 3
    %p81 = por %p79, %p80
    %p82 = scmp.ne.s32.totalorder %s71, %s72
    %p83 = scmp.eq.s32.totalorder %s25, 0
    %p84 = por %p82, %p83
    %p85 = scmp.ne.s32.totalorder %s71, %s72
    %p86 = scmp.eq.s32.totalorder %s26, 3
    %p87 = por %p85, %p86
    %p89 = scmp.ne.s32.totalorder %s72, %s88
    %p90 = scmp.eq.s32.totalorder %s26, 0
    %p91 = por %p89, %p90
    %s92 = ssub.s32 %s27, %s39
    %p93 = scmp.eq.s32.totalorder %s92, 0
    %s95 = sadd.s32 %s94, 1
    %s96 = scalar_select %p93, %s94, %s95
    %p99 = pneg %p93
    %p100 = scmp.eq.s32.totalorder %s20, 3
    %p101 = por %p99, %p100
    %p102 = scmp.ne.s32.totalorder %s94, %s97
    %p103 = scmp.eq.s32.totalorder %s20, 0
    %p104 = por %p102, %p103
    %p105 = scmp.ne.s32.totalorder %s94, %s97
    %p106 = scmp.eq.s32.totalorder %s25, 3
    %p107 = por %p105, %p106
    %p108 = scmp.ne.s32.totalorder %s97, %s98
    %p109 = scmp.eq.s32.totalorder %s25, 0
    %p110 = por %p108, %p109
    %p111 = scmp.ne.s32.totalorder %s97, %s98
    %p112 = scmp.eq.s32.totalorder %s26, 3
    %p113 = por %p111, %p112
    %p115 = scmp.ne.s32.totalorder %s98, %s114
    %p116 = scmp.eq.s32.totalorder %s26, 0
    %p117 = por %p115, %p116
    %s118 = ssub.s32 %s27, %s39
    %p119 = scmp.eq.s32.totalorder %s118, 0
    %s121 = sadd.s32 %s120, 1
    %s122 = scalar_select %p119, %s120, %s121
    %p125 = pneg %p119
    %p126 = scmp.eq.s32.totalorder %s20, 3
    %p127 = por %p125, %p126
    %p128 = scmp.ne.s32.totalorder %s120, %s123
    %p129 = scmp.eq.s32.totalorder %s20, 0
    %p130 = por %p128, %p129
    %p131 = scmp.ne.s32.totalorder %s120, %s123
    %p132 = scmp.eq.s32.totalorder %s25, 3
    %p133 = por %p131, %p132
    %p134 = scmp.ne.s32.totalorder %s123, %s124
    %p135 = scmp.eq.s32.totalorder %s25, 0
    %p136 = por %p134, %p135
    %p137 = scmp.ne.s32.totalorder %s123, %s124
    %p138 = scmp.eq.s32.totalorder %s26, 3
    %p139 = por %p137, %p138
    %p141 = scmp.ne.s32.totalorder %s124, %s140
    %p142 = scmp.eq.s32.totalorder %s26, 0
    %p143 = por %p141, %p142
    %s144 = ssub.s32 %s28, %s35
    %p145 = scmp.eq.s32.totalorder %s144, 0
    %s147 = sadd.s32 %s146, 1
    %s148 = scalar_select %p145, %s146, %s147
    %p151 = pneg %p145
    %p152 = scmp.eq.s32.totalorder %s20, 3
    %p153 = por %p151, %p152
    %p154 = scmp.ne.s32.totalorder %s146, %s149
    %p155 = scmp.eq.s32.totalorder %s20, 0
    %p156 = por %p154, %p155
    %p157 = scmp.ne.s32.totalorder %s146, %s149
    %p158 = scmp.eq.s32.totalorder %s25, 3
    %p159 = por %p157, %p158
    %p160 = scmp.ne.s32.totalorder %s149, %s150
    %p161 = scmp.eq.s32.totalorder %s25, 0
    %p162 = por %p160, %p161
    %p163 = scmp.ne.s32.totalorder %s149, %s150
    %p164 = scmp.eq.s32.totalorder %s26, 3
    %p165 = por %p163, %p164
    %p167 = scmp.ne.s32.totalorder %s150, %s166
    %p168 = scmp.eq.s32.totalorder %s26, 0
    %p169 = por %p167, %p168
    %s170 = ssub.s32 %s28, %s35
    %p171 = scmp.eq.s32.totalorder %s170, 0
    %s173 = sadd.s32 %s172, 1
    %s174 = scalar_select %p171, %s172, %s173
    %p177 = pneg %p171
    %p178 = scmp.eq.s32.totalorder %s20, 3
    %p179 = por %p177, %p178
    %p180 = scmp.ne.s32.totalorder %s172, %s175
    %p181 = scmp.eq.s32.totalorder %s20, 0
    %p182 = por %p180, %p181
    %p183 = scmp.ne.s32.totalorder %s172, %s175
    %p184 = scmp.eq.s32.totalorder %s25, 3
    %p185 = por %p183, %p184
    %p186 = scmp.ne.s32.totalorder %s175, %s176
    %p187 = scmp.eq.s32.totalorder %s25, 0
    %p188 = por %p186, %p187
    %p189 = scmp.ne.s32.totalorder %s175, %s176
    %p190 = scmp.eq.s32.totalorder %s26, 3
    %p191 = por %p189, %p190
    %p193 = scmp.ne.s32.totalorder %s176, %s192
    %p194 = scmp.eq.s32.totalorder %s26, 0
    %p195 = por %p193, %p194
    %s196 = ssub.s32 %s28, %s35
    %p197 = scmp.eq.s32.totalorder %s196, 0
    %s199 = sadd.s32 %s198, 1
    %s200 = scalar_select %p197, %s198, %s199
    %p203 = pneg %p197
    %p204 = scmp.eq.s32.totalorder %s20, 3
    %p205 = por %p203, %p204
    %p206 = scmp.ne.s32.totalorder %s198, %s201
    %p207 = scmp.eq.s32.totalorder %s20, 0
    %p208 = por %p206, %p207
    %p209 = scmp.ne.s32.totalorder %s198, %s201
    %p210 = scmp.eq.s32.totalorder %s25, 3
    %p211 = por %p209, %p210
    %p212 = scmp.ne.s32.totalorder %s201, %s202
    %p213 = scmp.eq.s32.totalorder %s25, 0
    %p214 = por %p212, %p213
    %p215 = scmp.ne.s32.totalorder %s201, %s202
    %p216 = scmp.eq.s32.totalorder %s26, 3
    %p217 = por %p215, %p216
    %p219 = scmp.ne.s32.totalorder %s202, %s218
    %p220 = scmp.eq.s32.totalorder %s26, 0
    %p221 = por %p219, %p220
    %s222 = ssub.s32 %s28, %s35
    %p223 = scmp.eq.s32.totalorder %s222, 0
    %s225 = sadd.s32 %s224, 1
    %s226 = scalar_select %p223, %s224, %s225
    %p229 = pneg %p223
    %p230 = scmp.eq.s32.totalorder %s20, 3
    %p231 = por %p229, %p230
    %p232 = scmp.ne.s32.totalorder %s224, %s227
    %p233 = scmp.eq.s32.totalorder %s20, 0
    %p234 = por %p232, %p233
    %p235 = scmp.ne.s32.totalorder %s224, %s227
    %p236 = scmp.eq.s32.totalorder %s25, 3
    %p237 = por %p235, %p236
    %p238 = scmp.ne.s32.totalorder %s227, %s228
    %p239 = scmp.eq.s32.totalorder %s25, 0
    %p240 = por %p238, %p239
    %p241 = scmp.ne.s32.totalorder %s227, %s228
    %p242 = scmp.eq.s32.totalorder %s26, 3
    %p243 = por %p241, %p242
    %p245 = scmp.ne.s32.totalorder %s228, %s244
    %p246 = scmp.eq.s32.totalorder %s26, 0
    %p247 = por %p245, %p246
    %s248 = ssub.s32 %s28, %s35
    %p249 = scmp.eq.s32.totalorder %s248, 0
    %s251 = sadd.s32 %s250, 1
    %s252 = scalar_select %p249, %s250, %s251
    %p255 = pneg %p249
    %p256 = scmp.eq.s32.totalorder %s20, 3
    %p257 = por %p255, %p256
    %p258 = scmp.ne.s32.totalorder %s250, %s253
    %p259 = scmp.eq.s32.totalorder %s20, 0
    %p260 = por %p258, %p259
    %p261 = scmp.ne.s32.totalorder %s250, %s253
    %p262 = scmp.eq.s32.totalorder %s25, 3
    %p263 = por %p261, %p262
    %p264 = scmp.ne.s32.totalorder %s253, %s254
    %p265 = scmp.eq.s32.totalorder %s25, 0
    %p266 = por %p264, %p265
    %p267 = scmp.ne.s32.totalorder %s253, %s254
    %p268 = scmp.eq.s32.totalorder %s26, 3
    %p269 = por %p267, %p268
    %p271 = scmp.ne.s32.totalorder %s254, %s270
    %p272 = scmp.eq.s32.totalorder %s26, 0
    %p273 = por %p271, %p272
    %s274 = ssub.s32 %s28, %s35
    %p275 = scmp.eq.s32.totalorder %s274, 0
    %s277 = sadd.s32 %s276, 1
    %s278 = scalar_select %p275, %s276, %s277
    %p281 = pneg %p275
    %p282 = scmp.eq.s32.totalorder %s20, 3
    %p283 = por %p281, %p282
    %p284 = scmp.ne.s32.totalorder %s276, %s279
    %p285 = scmp.eq.s32.totalorder %s20, 0
    %p286 = por %p284, %p285
    %p287 = scmp.ne.s32.totalorder %s276, %s279
    %p288 = scmp.eq.s32.totalorder %s25, 3
    %p289 = por %p287, %p288
    %p290 = scmp.ne.s32.totalorder %s279, %s280
    %p291 = scmp.eq.s32.totalorder %s25, 0
    %p292 = por %p290, %p291
    %p293 = scmp.ne.s32.totalorder %s279, %s280
    %p294 = scmp.eq.s32.totalorder %s26, 3
    %p295 = por %p293, %p294
    %p297 = scmp.ne.s32.totalorder %s280, %s296
    %p298 = scmp.eq.s32.totalorder %s26, 0
    %p299 = por %p297, %p298
    %s300 = ssub.s32 %s28, %s35
    %p301 = scmp.eq.s32.totalorder %s300, 0
    %s303 = sadd.s32 %s302, 1
    %s304 = scalar_select %p301, %s302, %s303
    %p307 = pneg %p301
    %p308 = scmp.eq.s32.totalorder %s20, 3
    %p309 = por %p307, %p308
    %p310 = scmp.ne.s32.totalorder %s302, %s305
    %p311 = scmp.eq.s32.totalorder %s20, 0
    %p312 = por %p310, %p311
    %p313 = scmp.ne.s32.totalorder %s302, %s305
    %p314 = scmp.eq.s32.totalorder %s25, 3
    %p315 = por %p313, %p314
    %p316 = scmp.ne.s32.totalorder %s305, %s306
    %p317 = scmp.eq.s32.totalorder %s25, 0
    %p318 = por %p316, %p317
    %p319 = scmp.ne.s32.totalorder %s305, %s306
    %p320 = scmp.eq.s32.totalorder %s26, 3
    %p321 = por %p319, %p320
    %p323 = scmp.ne.s32.totalorder %s306, %s322
    %p324 = scmp.eq.s32.totalorder %s26, 0
    %p325 = por %p323, %p324
    %s326 = ssub.s32 %s28, %s35
    %p327 = scmp.eq.s32.totalorder %s326, 0
    %s329 = sadd.s32 %s328, 1
    %s330 = scalar_select %p327, %s328, %s329
    %p333 = pneg %p327
    %p334 = scmp.eq.s32.totalorder %s20, 3
    %p335 = por %p333, %p334
    %p336 = scmp.ne.s32.totalorder %s328, %s331
    %p337 = scmp.eq.s32.totalorder %s20, 0
    %p338 = por %p336, %p337
    %p339 = scmp.ne.s32.totalorder %s328, %s331
    %p340 = scmp.eq.s32.totalorder %s25, 3
    %p341 = por %p339, %p340
    %p342 = scmp.ne.s32.totalorder %s331, %s332
    %p343 = scmp.eq.s32.totalorder %s25, 0
    %p344 = por %p342, %p343
    %p345 = scmp.ne.s32.totalorder %s331, %s332
    %p346 = scmp.eq.s32.totalorder %s26, 3
    %p347 = por %p345, %p346
    %p349 = scmp.ne.s32.totalorder %s332, %s348
    %p350 = scmp.eq.s32.totalorder %s26, 0
    %p351 = por %p349, %p350
    %s353 = sadd.s32 %s352, 1
    %p356 = scmp.eq.s32.totalorder %s20, 3
    %p357 = scmp.ne.s32.totalorder %s352, %s354
    %p358 = scmp.eq.s32.totalorder %s20, 0
    %p359 = por %p357, %p358
    %p360 = scmp.ne.s32.totalorder %s352, %s354
    %p361 = scmp.eq.s32.totalorder %s25, 3
    %p362 = por %p360, %p361
    %p363 = scmp.ne.s32.totalorder %s354, %s355
    %p364 = scmp.eq.s32.totalorder %s25, 0
    %p365 = por %p363, %p364
    %p366 = scmp.ne.s32.totalorder %s354, %s355
    %p367 = scmp.eq.s32.totalorder %s26, 3
    %p368 = por %p366, %p367
    %p370 = scmp.ne.s32.totalorder %s355, %s369
    %p371 = scmp.eq.s32.totalorder %s26, 0
    %p372 = por %p370, %p371
    %s374 = sadd.s32 %s373, 1
    %p377 = scmp.eq.s32.totalorder %s20, 3
    %p378 = scmp.ne.s32.totalorder %s373, %s375
    %p379 = scmp.eq.s32.totalorder %s20, 0
    %p380 = por %p378, %p379
    %p381 = scmp.ne.s32.totalorder %s373, %s375
    %p382 = scmp.eq.s32.totalorder %s25, 3
    %p383 = por %p381, %p382
    %p384 = scmp.ne.s32.totalorder %s375, %s376
    %p385 = scmp.eq.s32.totalorder %s25, 0
    %p386 = por %p384, %p385
    %p387 = scmp.ne.s32.totalorder %s375, %s376
    %p388 = scmp.eq.s32.totalorder %s26, 3
    %p389 = por %p387, %p388
    %p391 = scmp.ne.s32.totalorder %s376, %s390
    %p392 = scmp.eq.s32.totalorder %s26, 0
    %p393 = por %p391, %p392
    %s394 = ssub.s32 %s27, %s39
    %p395 = scmp.eq.s32.totalorder %s394, 0
    %s397 = sadd.s32 %s396, 1
    %s398 = scalar_select %p395, %s396, %s397
    %p401 = pneg %p395
    %p402 = scmp.eq.s32.totalorder %s20, 3
    %p403 = por %p401, %p402
    %p404 = scmp.ne.s32.totalorder %s396, %s399
    %p405 = scmp.eq.s32.totalorder %s20, 0
    %p406 = por %p404, %p405
    %p407 = scmp.ne.s32.totalorder %s396, %s399
    %p408 = scmp.eq.s32.totalorder %s25, 3
    %p409 = por %p407, %p408
    %p410 = scmp.ne.s32.totalorder %s399, %s400
    %p411 = scmp.eq.s32.totalorder %s25, 0
    %p412 = por %p410, %p411
    %p413 = scmp.ne.s32.totalorder %s399, %s400
    %p414 = scmp.eq.s32.totalorder %s26, 3
    %p415 = por %p413, %p414
    %p417 = scmp.ne.s32.totalorder %s400, %s416
    %p418 = scmp.eq.s32.totalorder %s26, 0
    %p419 = por %p417, %p418
    %p420 = scmp.le.s32.totalorder 1, %s20
    %p421 = scmp.lt.s32.totalorder %s20, 5
    %p422 = pnand %p420, %p421
    %p423 = pneg %p422
    // Predicated region
    $region9: #{transformer_forward.3} parent=5 // pred_check
      _
    $region10: #{transformer_forward.3} parent=5 // pred_check_branch
      %425 = sbr.rel (%p422) target = $region12
    $region11: #{transformer_forward.3} parent=5 // pred_region
      %s426 = ssub.s32 %s20, 1
      // Predicated region
      $region13: #{transformer_forward.3} parent=11 // pred_check
        %p427 = pneg %p365
      $region14: #{transformer_forward.3} parent=11 // pred_check_branch
        %429 = sbr.rel (%p427) target = $region16
      $region15: #{transformer_forward.3} parent=11 // pred_region
        _
      $region16: #{transformer_forward.3} parent=11 // pred_fallthru
        _
      // Predicated region
      $region17: #{transformer_forward.3} parent=11 // pred_check
        %p430 = pneg %p386
      $region18: #{transformer_forward.3} parent=11 // pred_check_branch
        %432 = sbr.rel (%p430) target = $region20
      $region19: #{transformer_forward.3} parent=11 // pred_region
        _
      $region20: #{transformer_forward.3} parent=11 // pred_fallthru
        _
    $region12: #{transformer_forward.3} parent=5 // pred_fallthru
      _
    %p433 = scmp.lt.s32.totalorder %s20, 4
    // Predicated region
    $region21: #{transformer_forward.3} parent=5 // pred_check
      %p434 = pneg %p433
    $region22: #{transformer_forward.3} parent=5 // pred_check_branch
      %436 = sbr.rel (%p434) target = $region24
    $region23: #{transformer_forward.3} parent=5 // pred_region
      // Predicated region
      $region25: #{transformer_forward.3} parent=23 // pred_check
        %p437 = pneg %p52
      $region26: #{transformer_forward.3} parent=23 // pred_check_branch
        %439 = sbr.rel (%p437) target = $region28
      $region27: #{transformer_forward.3} parent=23 // pred_region
        %p440 = scmp.lt.s32.totalorder %s27, 1
        %s441 = scalar_select %p440, %s27, 1
        %s442 = scalar_lea.vmem %s0, %s441
      $region28: #{transformer_forward.3} parent=23 // pred_fallthru
        _
      // Predicated region
      $region29: #{transformer_forward.3} parent=23 // pred_check
        %p443 = pneg %p78
      $region30: #{transformer_forward.3} parent=23 // pred_check_branch
        %445 = sbr.rel (%p443) target = $region32
      $region31: #{transformer_forward.3} parent=23 // pred_region
        %p446 = scmp.lt.s32.totalorder %s27, 1
        %s447 = scalar_select %p446, %s27, 1
        %s448 = scalar_lea.vmem %s1, %s447
      $region32: #{transformer_forward.3} parent=23 // pred_fallthru
        _
      // Predicated region
      $region33: #{transformer_forward.3} parent=23 // pred_check
        %p449 = pneg %p104
      $region34: #{transformer_forward.3} parent=23 // pred_check_branch
        %451 = sbr.rel (%p449) target = $region36
      $region35: #{transformer_forward.3} parent=23 // pred_region
        %p452 = scmp.lt.s32.totalorder %s27, 1
        %s453 = scalar_select %p452, %s27, 1
        %s454 = smul.addr %s453, 8
        %s455 = scalar_lea.vmem %s2, %s454
      $region36: #{transformer_forward.3} parent=23 // pred_fallthru
        _
      // Predicated region
      $region37: #{transformer_forward.3} parent=23 // pred_check
        %p456 = pneg %p130
      $region38: #{transformer_forward.3} parent=23 // pred_check_branch
        %458 = sbr.rel (%p456) target = $region40
      $region39: #{transformer_forward.3} parent=23 // pred_region
        %p459 = scmp.lt.s32.totalorder %s27, 1
        %s460 = scalar_select %p459, %s27, 1
        %s461 = smul.addr %s460, 8
        %s462 = scalar_lea.vmem %s3, %s461
      $region40: #{transformer_forward.3} parent=23 // pred_fallthru
        _
      // Predicated region
      $region41: #{transformer_forward.3} parent=23 // pred_check
        %p463 = pneg %p156
      $region42: #{transformer_forward.3} parent=23 // pred_check_branch
        %465 = sbr.rel (%p463) target = $region44
      $region43: #{transformer_forward.3} parent=23 // pred_region
        %p466 = scmp.lt.s32.totalorder %s28, 1
        %s467 = scalar_select %p466, %s28, 1
        %s468 = smul.addr %s467, 4
        %s469 = smul.addr %s468, 4
        %s470 = scalar_lea.vmem %s4, %s469
      $region44: #{transformer_forward.3} parent=23 // pred_fallthru
        _
      // Predicated region
      $region45: #{transformer_forward.3} parent=23 // pred_check
        %p471 = pneg %p182
      $region46: #{transformer_forward.3} parent=23 // pred_check_branch
        %473 = sbr.rel (%p471) target = $region48
      $region47: #{transformer_forward.3} parent=23 // pred_region
        %p474 = scmp.lt.s32.totalorder %s28, 1
        %s475 = scalar_select %p474, %s28, 1
        %s476 = smul.addr %s475, 4
        %s477 = smul.addr %s476, 4
        %s478 = scalar_lea.vmem %s5, %s477
      $region48: #{transformer_forward.3} parent=23 // pred_fallthru
        _
      // Predicated region
      $region49: #{transformer_forward.3} parent=23 // pred_check
        %p479 = pneg %p208
      $region50: #{transformer_forward.3} parent=23 // pred_check_branch
        %481 = sbr.rel (%p479) target = $region52
      $region51: #{transformer_forward.3} parent=23 // pred_region
        %p482 = scmp.lt.s32.totalorder %s28, 1
        %s483 = scalar_select %p482, %s28, 1
        %s484 = smul.addr %s483, 4
        %s485 = smul.addr %s484, 4
        %s486 = scalar_lea.vmem %s6, %s485
      $region52: #{transformer_forward.3} parent=23 // pred_fallthru
        _
      // Predicated region
      $region53: #{transformer_forward.3} parent=23 // pred_check
        %p487 = pneg %p234
      $region54: #{transformer_forward.3} parent=23 // pred_check_branch
        %489 = sbr.rel (%p487) target = $region56
      $region55: #{transformer_forward.3} parent=23 // pred_region
        %p490 = scmp.lt.s32.totalorder %s28, 1
        %s491 = scalar_select %p490, %s28, 1
        %s492 = smul.addr %s491, 4
        %s493 = smul.addr %s492, 4
        %s494 = scalar_lea.vmem %s7, %s493
      $region56: #{transformer_forward.3} parent=23 // pred_fallthru
        _
      // Predicated region
      $region57: #{transformer_forward.3} parent=23 // pred_check
        %p495 = pneg %p260
      $region58: #{transformer_forward.3} parent=23 // pred_check_branch
        %497 = sbr.rel (%p495) target = $region60
      $region59: #{transformer_forward.3} parent=23 // pred_region
        %p498 = scmp.lt.s32.totalorder %s28, 1
        %s499 = scalar_select %p498, %s28, 1
        %s500 = smul.addr %s499, 4
        %s501 = smul.addr %s500, 4
        %s502 = scalar_lea.vmem %s8, %s501
      $region60: #{transformer_forward.3} parent=23 // pred_fallthru
        _
      // Predicated region
      $region61: #{transformer_forward.3} parent=23 // pred_check
        %p503 = pneg %p286
      $region62: #{transformer_forward.3} parent=23 // pred_check_branch
        %505 = sbr.rel (%p503) target = $region64
      $region63: #{transformer_forward.3} parent=23 // pred_region
        %p506 = scmp.lt.s32.totalorder %s28, 1
        %s507 = scalar_select %p506, %s28, 1
        %s508 = smul.addr %s507, 4
        %s509 = smul.addr %s508, 4
        %s510 = scalar_lea.vmem %s9, %s509
      $region64: #{transformer_forward.3} parent=23 // pred_fallthru
        _
      // Predicated region
      $region65: #{transformer_forward.3} parent=23 // pred_check
        %p511 = pneg %p312
      $region66: #{transformer_forward.3} parent=23 // pred_check_branch
        %513 = sbr.rel (%p511) target = $region68
      $region67: #{transformer_forward.3} parent=23 // pred_region
        %p514 = scmp.lt.s32.totalorder %s28, 1
        %s515 = scalar_select %p514, %s28, 1
        %s516 = smul.addr %s515, 8
        %s517 = smul.addr %s516, 4
        %s518 = scalar_lea.vmem %s10, %s517
      $region68: #{transformer_forward.3} parent=23 // pred_fallthru
        _
      // Predicated region
      $region69: #{transformer_forward.3} parent=23 // pred_check
        %p519 = pneg %p338
      $region70: #{transformer_forward.3} parent=23 // pred_check_branch
        %521 = sbr.rel (%p519) target = $region72
      $region71: #{transformer_forward.3} parent=23 // pred_region
        %p522 = scmp.lt.s32.totalorder %s28, 1
        %s523 = scalar_select %p522, %s28, 1
        %s524 = smul.addr %s523, 2
        %s525 = smul.addr %s524, 8
        %s526 = scalar_lea.vmem %s11, %s525
      $region72: #{transformer_forward.3} parent=23 // pred_fallthru
        _
    $region24: #{transformer_forward.3} parent=5 // pred_fallthru
      _
    %p527 = scmp.le.s32.totalorder 1, %s20
    %p528 = scmp.lt.s32.totalorder %s20, 5
    %p529 = pnand %p527, %p528
    %p530 = pneg %p529
    // Predicated region
    $region73: #{transformer_forward.3} parent=5 // pred_check
      _
    $region74: #{transformer_forward.3} parent=5 // pred_check_branch
      %532 = sbr.rel (%p529) target = $region76
    $region75: #{transformer_forward.3} parent=5 // pred_region
      %s533 = ssub.s32 %s20, 1
      %p534 = scmp.lt.s32.totalorder %s29, 1
      %s535 = scalar_select %p534, %s29, 1
      %s536 = scalar_lea.vmem %s0, %s535
      %p537 = pneg %p58
      %p538 = pneg %p55
      %p539 = scmp.lt.s32.totalorder %s29, 1
      %s540 = scalar_select %p539, %s29, 1
      %s541 = scalar_lea.vmem %s1, %s540
      %p542 = pneg %p84
      %p543 = pneg %p81
      %p544 = scmp.lt.s32.totalorder %s29, 1
      %s545 = scalar_select %p544, %s29, 1
      %s546 = smul.addr %s545, 8
      %s547 = scalar_lea.vmem %s2, %s546
      %p548 = pneg %p110
      %p549 = pneg %p107
      %p550 = scmp.lt.s32.totalorder %s29, 1
      %s551 = scalar_select %p550, %s29, 1
      %s552 = smul.addr %s551, 8
      %s553 = scalar_lea.vmem %s3, %s552
      %p554 = pneg %p136
      %p555 = pneg %p133
      %p556 = scmp.lt.s32.totalorder %s30, 1
      %s557 = scalar_select %p556, %s30, 1
      %s558 = smul.addr %s557, 4
      %s559 = smul.addr %s558, 4
      %s560 = scalar_lea.vmem %s4, %s559
      %p561 = pneg %p162
      %p562 = pneg %p159
      %p563 = scmp.lt.s32.totalorder %s30, 1
      %s564 = scalar_select %p563, %s30, 1
      %s565 = smul.addr %s564, 4
      %s566 = smul.addr %s565, 4
      %s567 = scalar_lea.vmem %s5, %s566
      %p568 = pneg %p188
      %p569 = pneg %p185
      %p570 = scmp.lt.s32.totalorder %s30, 1
      %s571 = scalar_select %p570, %s30, 1
      %s572 = smul.addr %s571, 4
      %s573 = smul.addr %s572, 4
      %s574 = scalar_lea.vmem %s6, %s573
      %p575 = pneg %p214
      %p576 = pneg %p211
      %p577 = scmp.lt.s32.totalorder %s30, 1
      %s578 = scalar_select %p577, %s30, 1
      %s579 = smul.addr %s578, 4
      %s580 = smul.addr %s579, 4
      %s581 = scalar_lea.vmem %s7, %s580
      %p582 = pneg %p240
      %p583 = pneg %p237
      %p584 = scmp.lt.s32.totalorder %s30, 1
      %s585 = scalar_select %p584, %s30, 1
      %s586 = smul.addr %s585, 4
      %s587 = smul.addr %s586, 4
      %s588 = scalar_lea.vmem %s8, %s587
      %p589 = pneg %p266
      %p590 = pneg %p263
      %p591 = scmp.lt.s32.totalorder %s30, 1
      %s592 = scalar_select %p591, %s30, 1
      %s593 = smul.addr %s592, 4
      %s594 = smul.addr %s593, 4
      %s595 = scalar_lea.vmem %s9, %s594
      %p596 = pneg %p292
      %p597 = pneg %p289
      %p598 = scmp.lt.s32.totalorder %s30, 1
      %s599 = scalar_select %p598, %s30, 1
      %s600 = smul.addr %s599, 8
      %s601 = smul.addr %s600, 4
      %s602 = scalar_lea.vmem %s10, %s601
      %p603 = pneg %p318
      %p604 = pneg %p315
      %p605 = scmp.lt.s32.totalorder %s30, 1
      %s606 = scalar_select %p605, %s30, 1
      %s607 = smul.addr %s606, 2
      %s608 = smul.addr %s607, 8
      %s609 = scalar_lea.vmem %s11, %s608
      %p610 = pneg %p344
      %p611 = pneg %p341
      %p612 = pneg %p365
      %p613 = pneg %p362
      %p614 = pneg %p386
      %p615 = pneg %p383
      %p616 = pneg %p412
      %p617 = pneg %p409
      %p618 = scmp.lt.s32.totalorder %s29, 1
      %s619 = scalar_select %p618, %s29, 1
      %s620 = smul.addr %s619, 8
      %s621 = scalar_lea.vmem %s14, %s620
      %p622 = scmp.lt.s32.totalorder %s29, 1
      %s623 = scalar_select %p622, %s29, 1
      %s624 = scalar_lea.vmem %s0, %s623
      %p625 = scmp.lt.s32.totalorder %s29, 1
      %s626 = scalar_select %p625, %s29, 1
      %s627 = scalar_lea.vmem %s1, %s626
      %p628 = scmp.lt.s32.totalorder %s29, 1
      %s629 = scalar_select %p628, %s29, 1
      %s630 = smul.addr %s629, 8
      %s631 = scalar_lea.vmem %s2, %s630
      %p632 = scmp.lt.s32.totalorder %s29, 1
      %s633 = scalar_select %p632, %s29, 1
      %s634 = smul.addr %s633, 8
      %s635 = scalar_lea.vmem %s3, %s634
      %p636 = scmp.lt.s32.totalorder %s30, 1
      %s637 = scalar_select %p636, %s30, 1
      %s638 = smul.addr %s637, 4
      %s639 = smul.addr %s638, 4
      %s640 = scalar_lea.vmem %s4, %s639
      %p641 = scmp.lt.s32.totalorder %s30, 1
      %s642 = scalar_select %p641, %s30, 1
      %s643 = smul.addr %s642, 4
      %s644 = smul.addr %s643, 4
      %s645 = scalar_lea.vmem %s5, %s644
      %p646 = scmp.lt.s32.totalorder %s30, 1
      %s647 = scalar_select %p646, %s30, 1
      %s648 = smul.addr %s647, 4
      %s649 = smul.addr %s648, 4
      %s650 = scalar_lea.vmem %s6, %s649
      %p651 = scmp.lt.s32.totalorder %s30, 1
      %s652 = scalar_select %p651, %s30, 1
      %s653 = smul.addr %s652, 4
      %s654 = smul.addr %s653, 4
      %s655 = scalar_lea.vmem %s7, %s654
      %p656 = scmp.lt.s32.totalorder %s30, 1
      %s657 = scalar_select %p656, %s30, 1
      %s658 = smul.addr %s657, 4
      %s659 = smul.addr %s658, 4
      %s660 = scalar_lea.vmem %s8, %s659
      %p661 = scmp.lt.s32.totalorder %s30, 1
      %s662 = scalar_select %p661, %s30, 1
      %s663 = smul.addr %s662, 4
      %s664 = smul.addr %s663, 4
      %s665 = scalar_lea.vmem %s9, %s664
      %p666 = scmp.lt.s32.totalorder %s30, 1
      %s667 = scalar_select %p666, %s30, 1
      %s668 = smul.addr %s667, 8
      %s669 = smul.addr %s668, 4
      %s670 = scalar_lea.vmem %s10, %s669
      %p671 = scmp.lt.s32.totalorder %s30, 1
      %s672 = scalar_select %p671, %s30, 1
      %s673 = smul.addr %s672, 2
      %s674 = smul.addr %s673, 8
      %s675 = scalar_lea.vmem %s11, %s674
      %p676 = scmp.lt.s32.totalorder %s29, 1
      %s677 = scalar_select %p676, %s29, 1
      %s678 = smul.addr %s677, 8
      %s679 = scalar_lea.vmem %s14, %s678
      %p681 = scmp.eq.s32.totalorder %s30, 0
      // Predicated region
      $region77: #{transformer_forward.3} parent=75 // pred_check
        %p682 = pneg %p681
      $region78: #{transformer_forward.3} parent=75 // pred_check_branch
        %684 = sbr.rel (%p682) target = $region80
      $region79: #{transformer_forward.3} parent=75 // pred_region
        %v685 = vld [vmem:[%s631] sm:$0xff]
        %vm686 = vcmask 261120
        %687 = vst.msk [vmem:[#allocation2] sm:$0xff] %vm686, %v685
      $region80: #{transformer_forward.3} parent=75 // pred_fallthru
        _
      %v688 = vld [vmem:[#allocation2] sm:$0xff]
      %v689 = vld [vmem:[%s635] sm:$0xff]
      %v690 = vld [vmem:[%s675] sm:$0xff]
      %v691 = vld [vmem:[%s675 + $0x8] sm:$0xff]
      %v692 = vld [vmem:[%s624] sm:$0x1]
      %vm693 = vcmp.gt.f32.partialorder %v692, 0.5
      %v694 = vlaneseq
      %v695 = vshrl.u32 %v694, 7
      %v696 = vlaneseq
      %v697 = vand.u32 %v696, 127
      %vm698 = vcmp.ge.s32.totalorder %v695, %v697
      %v699 = vsel %vm693, 1, 0
      %v700 = vlaneseq
      %v701 = vshrl.u32 %v700, 7
      %v702 = vsub.s32 0, %v701
      %v703 = vrot.slane %v699, %v702
      %vm704 = vcmp.eq.s32.totalorder %v703, 1
      %vm705 = vmand %vm698, %vm704
      %v706 = vsel %vm705, 0.0, -1e+09
      %v707 = vld [vmem:[%s627] sm:$0x1]
      %vm708 = vcmp.gt.f32.partialorder %v707, 0.5
      %v709 = vsel %vm708, 0.0, -1e+09
      %v710 = vld [vmem:[%s640] sm:$0xf]
      %v711 = vld [vmem:[%s640 + $0x4] sm:$0xf]
      %v712 = vld [vmem:[%s640 + $0x8] sm:$0xf]
      %v713 = vld [vmem:[%s640 + $0xc] sm:$0xf]
      %v714 = vpack.c.bf16 %v688, %v688
      %v715 = vlaneseq
      %v716 = vshrl.u32 %v715, 7
      %v717 = vsub.s32 0, %v716
      %v718 = vrot.slane %v690, %v717
      %v723 = vunpack.c.l.b16 %v710
      %v724 = vunpack.c.l.b16 %v711
      %v725 = vunpack.c.l.b16 %v712
      %v726 = vunpack.c.l.b16 %v713
      %v727 = vpack.c.b16 %v724, %v723
      %v728 = vpack.c.b16 %v726, %v725
      %vm731 = vcmask 261120
      %v733 = vsel %vm731, %v714, 0
      %735 = vmatprep.subr.bf16.mxu0 0
      %736 = vmatpush1.bf16.msra.mxu0 0
      %737 = vmatprep.subr.bf16.mxu0 0
      %738 = vmatpush1.bf16.msra.mxu0 0
      %739 = vmatprep.subr.bf16.mxu0 0
      %740 = vmatpush1.bf16.msra.mxu0 0
      %741 = vmatprep.subr.bf16.mxu0 0
      %742 = vmatpush1.bf16.msra.mxu0 0
      %743 = vmatprep.subr.bf16.mxu0 0
      %744 = vmatpush1.bf16.msra.mxu0 0
      %745 = vmatprep.subr.bf16.mxu0 0
      %746 = vmatpush1.bf16.msra.mxu0 0
      %747 = vmatprep.subr.bf16.mxu0 0
      %748 = vmatpush1.bf16.msra.mxu0 %v728
      %749 = vmatprep.subr.bf16.mxu0 0
      %750 = vmatpush1.bf16.msra.mxu0 %v727
      %751 = vmatprep.subr.bf16.mxu0 0
      %752 = vmatpush2.bf16.msra.mxu0 0
      %753 = vmatprep.subr.bf16.mxu0 0
      %754 = vmatpush2.bf16.msra.mxu0 0
      %755 = vmatprep.subr.bf16.mxu0 0
      %756 = vmatpush2.bf16.msra.mxu0 0
      %757 = vmatprep.subr.bf16.mxu0 0
      %758 = vmatpush2.bf16.msra.mxu0 0
      %759 = vmatprep.subr.bf16.mxu0 0
      %760 = vmatpush2.bf16.msra.mxu0 0
      %761 = vmatprep.subr.bf16.mxu0 0
      %762 = vmatpush2.bf16.msra.mxu0 0
      %763 = vmatprep.subr.bf16.mxu0 0
      %764 = vmatpush2.bf16.msra.mxu0 0
      %765 = vmatprep.subr.bf16.mxu0 0
      %766 = vmatpush2.bf16.msra.mxu0 0
      %767 = vmatprep.mubr.bf16.mxu0 0
      %768 = vmatmul.mubr.bf16.gmra.mxu0 %v733
      %v769 = vpop.f32.mrf.mxu0
      %v770 = vadd.f32 %v718, %v769
      %v771 = vpop.f32.mrf.mxu0
      %v772 = vpop.f32.mrf.mxu0
      %v773 = vpop.f32.mrf.mxu0
      %774 = vdwg.mxu0
      %v775 = vpack.c.bf16 %v770, %v770
      %777 = vrot.lane.b32.xlu0 %v770, 96
      %v778 = vpop.permute.xlu0 %777
      %780 = vxpose.xlu0.b32.start [1/16] %v778, 128
      %781 = vxpose.xlu0.b32.cont [2/16] 0.0, 128
      %782 = vxpose.xlu0.b32.cont [3/16] 0.0, 128
      %783 = vxpose.xlu0.b32.cont [4/16] 0.0, 128
      %784 = vxpose.xlu0.b32.cont [5/16] 0.0, 128
      %785 = vxpose.xlu0.b32.cont [6/16] 0.0, 128
      %786 = vxpose.xlu0.b32.cont [7/16] 0.0, 128
      %787 = vxpose.xlu0.b32.cont [8/16] 0.0, 128
      %788 = vxpose.xlu0.b32.cont [9/16] 0.0, 128
      %789 = vxpose.xlu0.b32.cont [10/16] 0.0, 128
      %790 = vxpose.xlu0.b32.cont [11/16] 0.0, 128
      %791 = vxpose.xlu0.b32.cont [12/16] 0.0, 128
      %792 = vxpose.xlu0.b32.cont [13/16] 0.0, 128
      %793 = vxpose.xlu0.b32.cont [14/16] 0.0, 128
      %794 = vxpose.xlu0.b32.cont [15/16] 0.0, 128
      %795 = vxpose.xlu0.b32.end [16/16] 0.0, 128
      %v796 = vpop.trf.xlu0
      %v797 = vpop.trf.xlu0
      %v798 = vpop.trf.xlu0
      %v799 = vpop.trf.xlu0
      %v800 = vpop.trf.xlu0
      %v801 = vpop.trf.xlu0
      %v802 = vpop.trf.xlu0
      %v803 = vpop.trf.xlu0
      %v804 = vpop.trf.xlu0
      %v805 = vpop.trf.xlu0
      %v806 = vpop.trf.xlu0
      %v807 = vpop.trf.xlu0
      %v808 = vpop.trf.xlu0
      %v809 = vpop.trf.xlu0
      %v810 = vpop.trf.xlu0
      %v811 = vpop.trf.xlu0
      %v812 = vpack.c.bf16 %v796, %v796
      %vm813 = vcmask 64512
      %v815 = vsel %vm813, %v775, 0
      %vm817 = vcmask 1043456
      %v819 = vsel %vm817, %v812, 0
      %821 = vmatprep.subr.bf16.mxu0 0
      %822 = vmatpush1.bf16.msra.mxu0 0
      %823 = vmatprep.subr.bf16.mxu0 0
      %824 = vmatpush1.bf16.msra.mxu0 0
      %825 = vmatprep.subr.bf16.mxu0 0
      %826 = vmatpush1.bf16.msra.mxu0 0
      %827 = vmatprep.subr.bf16.mxu0 0
      %828 = vmatpush1.bf16.msra.mxu0 0
      %829 = vmatprep.subr.bf16.mxu0 0
      %830 = vmatpush1.bf16.msra.mxu0 0
      %831 = vmatprep.subr.bf16.mxu0 0
      %832 = vmatpush1.bf16.msra.mxu0 0
      %833 = vmatprep.subr.bf16.mxu0 0
      %834 = vmatpush1.bf16.msra.mxu0 0
      %835 = vmatprep.subr.bf16.mxu0 0
      %836 = vmatpush1.bf16.msra.mxu0 %v819
      %837 = vmatprep.subr.bf16.mxu0 0
      %838 = vmatpush2.bf16.msra.mxu0 0
      %839 = vmatprep.subr.bf16.mxu0 0
      %840 = vmatpush2.bf16.msra.mxu0 0
      %841 = vmatprep.subr.bf16.mxu0 0
      %842 = vmatpush2.bf16.msra.mxu0 0
      %843 = vmatprep.subr.bf16.mxu0 0
      %844 = vmatpush2.bf16.msra.mxu0 0
      %845 = vmatprep.subr.bf16.mxu0 0
      %846 = vmatpush2.bf16.msra.mxu0 0
      %847 = vmatprep.subr.bf16.mxu0 0
      %848 = vmatpush2.bf16.msra.mxu0 0
      %849 = vmatprep.subr.bf16.mxu0 0
      %850 = vmatpush2.bf16.msra.mxu0 0
      %851 = vmatprep.subr.bf16.mxu0 0
      %852 = vmatpush2.bf16.msra.mxu0 0
      %853 = vmatprep.mubr.bf16.mxu0 0
      %854 = vmatmul.mubr.bf16.gmra.mxu0 %v815
      %v855 = vpop.f32.mrf.mxu0
      %v856 = vadd.f32 0.0, %v855
      %v857 = vpop.f32.mrf.mxu0
      %v858 = vpop.f32.mrf.mxu0
      %v859 = vpop.f32.mrf.mxu0
      %860 = vdwg.mxu0
      %861 = vrot.lane.b32.xlu0 %v770, 88
      %v862 = vpop.permute.xlu0 %861
      %864 = vxpose.xlu0.b32.start [1/16] %v862, 128
      %865 = vxpose.xlu0.b32.cont [2/16] 0.0, 128
      %866 = vxpose.xlu0.b32.cont [3/16] 0.0, 128
      %867 = vxpose.xlu0.b32.cont [4/16] 0.0, 128
      %868 = vxpose.xlu0.b32.cont [5/16] 0.0, 128
      %869 = vxpose.xlu0.b32.cont [6/16] 0.0, 128
      %870 = vxpose.xlu0.b32.cont [7/16] 0.0, 128
      %871 = vxpose.xlu0.b32.cont [8/16] 0.0, 128
      %872 = vxpose.xlu0.b32.cont [9/16] 0.0, 128
      %873 = vxpose.xlu0.b32.cont [10/16] 0.0, 128
      %874 = vxpose.xlu0.b32.cont [11/16] 0.0, 128
      %875 = vxpose.xlu0.b32.cont [12/16] 0.0, 128
      %876 = vxpose.xlu0.b32.cont [13/16] 0.0, 128
      %877 = vxpose.xlu0.b32.cont [14/16] 0.0, 128
      %878 = vxpose.xlu0.b32.cont [15/16] 0.0, 128
      %879 = vxpose.xlu0.b32.end [16/16] 0.0, 128
      %v880 = vpop.trf.xlu0
      %v881 = vpop.trf.xlu0
      %v882 = vpop.trf.xlu0
      %v883 = vpop.trf.xlu0
      %v884 = vpop.trf.xlu0
      %v885 = vpop.trf.xlu0
      %v886 = vpop.trf.xlu0
      %v887 = vpop.trf.xlu0
      %v888 = vpop.trf.xlu0
      %v889 = vpop.trf.xlu0
      %v890 = vpop.trf.xlu0
      %v891 = vpop.trf.xlu0
      %v892 = vpop.trf.xlu0
      %v893 = vpop.trf.xlu0
      %v894 = vpop.trf.xlu0
      %v895 = vpop.trf.xlu0
      %v896 = vpack.c.bf16 %v880, %v880
      %898 = vrot.lane.b32.xlu0 %v775, 120
      %v899 = vpop.permute.xlu0 %898
      %v901 = vsel %vm813, %v899, 0
      %v904 = vsel %vm817, %v896, 0
      %906 = vmatprep.subr.bf16.mxu0 0
      %907 = vmatpush1.bf16.msra.mxu0 0
      %908 = vmatprep.subr.bf16.mxu0 0
      %909 = vmatpush1.bf16.msra.mxu0 0
      %910 = vmatprep.subr.bf16.mxu0 0
      %911 = vmatpush1.bf16.msra.mxu0 0
      %912 = vmatprep.subr.bf16.mxu0 0
      %913 = vmatpush1.bf16.msra.mxu0 0
      %914 = vmatprep.subr.bf16.mxu0 0
      %915 = vmatpush1.bf16.msra.mxu0 0
      %916 = vmatprep.subr.bf16.mxu0 0
      %917 = vmatpush1.bf16.msra.mxu0 0
      %918 = vmatprep.subr.bf16.mxu0 0
      %919 = vmatpush1.bf16.msra.mxu0 0
      %920 = vmatprep.subr.bf16.mxu0 0
      %921 = vmatpush1.bf16.msra.mxu0 %v904
      %922 = vmatprep.subr.bf16.mxu0 0
      %923 = vmatpush2.bf16.msra.mxu0 0
      %924 = vmatprep.subr.bf16.mxu0 0
      %925 = vmatpush2.bf16.msra.mxu0 0
      %926 = vmatprep.subr.bf16.mxu0 0
      %927 = vmatpush2.bf16.msra.mxu0 0
      %928 = vmatprep.subr.bf16.mxu0 0
      %929 = vmatpush2.bf16.msra.mxu0 0
      %930 = vmatprep.subr.bf16.mxu0 0
      %931 = vmatpush2.bf16.msra.mxu0 0
      %932 = vmatprep.subr.bf16.mxu0 0
      %933 = vmatpush2.bf16.msra.mxu0 0
      %934 = vmatprep.subr.bf16.mxu0 0
      %935 = vmatpush2.bf16.msra.mxu0 0
      %936 = vmatprep.subr.bf16.mxu0 0
      %937 = vmatpush2.bf16.msra.mxu0 0
      %938 = vmatprep.mubr.bf16.mxu0 0
      %939 = vmatmul.mubr.bf16.gmra.mxu0 %v901
      %v940 = vpop.f32.mrf.mxu0
      %v941 = vadd.f32 0.0, %v940
      %v942 = vpop.f32.mrf.mxu0
      %v943 = vpop.f32.mrf.mxu0
      %v944 = vpop.f32.mrf.mxu0
      %945 = vdwg.mxu0
      %946 = vrot.lane.b32.xlu0 %v770, 80
      %v947 = vpop.permute.xlu0 %946
      %949 = vxpose.xlu0.b32.start [1/16] %v947, 128
      %950 = vxpose.xlu0.b32.cont [2/16] 0.0, 128
      %951 = vxpose.xlu0.b32.cont [3/16] 0.0, 128
      %952 = vxpose.xlu0.b32.cont [4/16] 0.0, 128
      %953 = vxpose.xlu0.b32.cont [5/16] 0.0, 128
      %954 = vxpose.xlu0.b32.cont [6/16] 0.0, 128
      %955 = vxpose.xlu0.b32.cont [7/16] 0.0, 128
      %956 = vxpose.xlu0.b32.cont [8/16] 0.0, 128
      %957 = vxpose.xlu0.b32.cont [9/16] 0.0, 128
      %958 = vxpose.xlu0.b32.cont [10/16] 0.0, 128
      %959 = vxpose.xlu0.b32.cont [11/16] 0.0, 128
      %960 = vxpose.xlu0.b32.cont [12/16] 0.0, 128
      %961 = vxpose.xlu0.b32.cont [13/16] 0.0, 128
      %962 = vxpose.xlu0.b32.cont [14/16] 0.0, 128
      %963 = vxpose.xlu0.b32.cont [15/16] 0.0, 128
      %964 = vxpose.xlu0.b32.end [16/16] 0.0, 128
      %v965 = vpop.trf.xlu0
      %v966 = vpop.trf.xlu0
      %v967 = vpop.trf.xlu0
      %v968 = vpop.trf.xlu0
      %v969 = vpop.trf.xlu0
      %v970 = vpop.trf.xlu0
      %v971 = vpop.trf.xlu0
      %v972 = vpop.trf.xlu0
      %v973 = vpop.trf.xlu0
      %v974 = vpop.trf.xlu0
      %v975 = vpop.trf.xlu0
      %v976 = vpop.trf.xlu0
      %v977 = vpop.trf.xlu0
      %v978 = vpop.trf.xlu0
      %v979 = vpop.trf.xlu0
      %v980 = vpop.trf.xlu0
      %v981 = vpack.c.bf16 %v965, %v965
      %982 = vrot.lane.b32.xlu0 %v775, 112
      %v983 = vpop.permute.xlu0 %982
      %v985 = vsel %vm813, %v983, 0
      %v988 = vsel %vm817, %v981, 0
      %990 = vmatprep.subr.bf16.mxu0 0
      %991 = vmatpush1.bf16.msra.mxu0 0
      %992 = vmatprep.subr.bf16.mxu0 0
      %993 = vmatpush1.bf16.msra.mxu0 0
      %994 = vmatprep.subr.bf16.mxu0 0
      %995 = vmatpush1.bf16.msra.mxu0 0
      %996 = vmatprep.subr.bf16.mxu0 0
      %997 = vmatpush1.bf16.msra.mxu0 0
      %998 = vmatprep.subr.bf16.mxu0 0
      %999 = vmatpush1.bf16.msra.mxu0 0
      %1000 = vmatprep.subr.bf16.mxu0 0
      %1001 = vmatpush1.bf16.msra.mxu0 0
      %1002 = vmatprep.subr.bf16.mxu0 0
      %1003 = vmatpush1.bf16.msra.mxu0 0
      %1004 = vmatprep.subr.bf16.mxu0 0
      %1005 = vmatpush1.bf16.msra.mxu0 %v988
      %1006 = vmatprep.subr.bf16.mxu0 0
      %1007 = vmatpush2.bf16.msra.mxu0 0
      %1008 = vmatprep.subr.bf16.mxu0 0
      %1009 = vmatpush2.bf16.msra.mxu0 0
      %1010 = vmatprep.subr.bf16.mxu0 0
      %1011 = vmatpush2.bf16.msra.mxu0 0
      %1012 = vmatprep.subr.bf16.mxu0 0
      %1013 = vmatpush2.bf16.msra.mxu0 0
      %1014 = vmatprep.subr.bf16.mxu0 0
      %1015 = vmatpush2.bf16.msra.mxu0 0
      %1016 = vmatprep.subr.bf16.mxu0 0
      %1017 = vmatpush2.bf16.msra.mxu0 0
      %1018 = vmatprep.subr.bf16.mxu0 0
      %1019 = vmatpush2.bf16.msra.mxu0 0
      %1020 = vmatprep.subr.bf16.mxu0 0
      %1021 = vmatpush2.bf16.msra.mxu0 0
      %1022 = vmatprep.mubr.bf16.mxu0 0
      %1023 = vmatmul.mubr.bf16.gmra.mxu0 %v985
      %v1024 = vpop.f32.mrf.mxu0
      %v1025 = vadd.f32 0.0, %v1024
      %v1026 = vpop.f32.mrf.mxu0
      %v1027 = vpop.f32.mrf.mxu0
      %v1028 = vpop.f32.mrf.mxu0
      %1029 = vdwg.mxu0
      %1030 = vrot.lane.b32.xlu0 %v770, 72
      %v1031 = vpop.permute.xlu0 %1030
      %1033 = vxpose.xlu0.b32.start [1/16] %v1031, 128
      %1034 = vxpose.xlu0.b32.cont [2/16] 0.0, 128
      %1035 = vxpose.xlu0.b32.cont [3/16] 0.0, 128
      %1036 = vxpose.xlu0.b32.cont [4/16] 0.0, 128
      %1037 = vxpose.xlu0.b32.cont [5/16] 0.0, 128
      %1038 = vxpose.xlu0.b32.cont [6/16] 0.0, 128
      %1039 = vxpose.xlu0.b32.cont [7/16] 0.0, 128
      %1040 = vxpose.xlu0.b32.cont [8/16] 0.0, 128
      %1041 = vxpose.xlu0.b32.cont [9/16] 0.0, 128
      %1042 = vxpose.xlu0.b32.cont [10/16] 0.0, 128
      %1043 = vxpose.xlu0.b32.cont [11/16] 0.0, 128
      %1044 = vxpose.xlu0.b32.cont [12/16] 0.0, 128
      %1045 = vxpose.xlu0.b32.cont [13/16] 0.0, 128
      %1046 = vxpose.xlu0.b32.cont [14/16] 0.0, 128
      %1047 = vxpose.xlu0.b32.cont [15/16] 0.0, 128
      %1048 = vxpose.xlu0.b32.end [16/16] 0.0, 128
      %v1049 = vpop.trf.xlu0
      %v1050 = vpop.trf.xlu0
      %v1051 = vpop.trf.xlu0
      %v1052 = vpop.trf.xlu0
      %v1053 = vpop.trf.xlu0
      %v1054 = vpop.trf.xlu0
      %v1055 = vpop.trf.xlu0
      %v1056 = vpop.trf.xlu0
      %v1057 = vpop.trf.xlu0
      %v1058 = vpop.trf.xlu0
      %v1059 = vpop.trf.xlu0
      %v1060 = vpop.trf.xlu0
      %v1061 = vpop.trf.xlu0
      %v1062 = vpop.trf.xlu0
      %v1063 = vpop.trf.xlu0
      %v1064 = vpop.trf.xlu0
      %v1065 = vpack.c.bf16 %v1049, %v1049
      %1066 = vrot.lane.b32.xlu0 %v775, 104
      %v1067 = vpop.permute.xlu0 %1066
      %v1069 = vsel %vm813, %v1067, 0
      %v1072 = vsel %vm817, %v1065, 0
      %1074 = vmatprep.subr.bf16.mxu0 0
      %1075 = vmatpush1.bf16.msra.mxu0 0
      %1076 = vmatprep.subr.bf16.mxu0 0
      %1077 = vmatpush1.bf16.msra.mxu0 0
      %1078 = vmatprep.subr.bf16.mxu0 0
      %1079 = vmatpush1.bf16.msra.mxu0 0
      %1080 = vmatprep.subr.bf16.mxu0 0
      %1081 = vmatpush1.bf16.msra.mxu0 0
      %1082 = vmatprep.subr.bf16.mxu0 0
      %1083 = vmatpush1.bf16.msra.mxu0 0
      %1084 = vmatprep.subr.bf16.mxu0 0
      %1085 = vmatpush1.bf16.msra.mxu0 0
      %1086 = vmatprep.subr.bf16.mxu0 0
      %1087 = vmatpush1.bf16.msra.mxu0 0
      %1088 = vmatprep.subr.bf16.mxu0 0
      %1089 = vmatpush1.bf16.msra.mxu0 %v1072
      %1090 = vmatprep.subr.bf16.mxu0 0
      %1091 = vmatpush2.bf16.msra.mxu0 0
      %1092 = vmatprep.subr.bf16.mxu0 0
      %1093 = vmatpush2.bf16.msra.mxu0 0
      %1094 = vmatprep.subr.bf16.mxu0 0
      %1095 = vmatpush2.bf16.msra.mxu0 0
      %1096 = vmatprep.subr.bf16.mxu0 0
      %1097 = vmatpush2.bf16.msra.mxu0 0
      %1098 = vmatprep.subr.bf16.mxu0 0
      %1099 = vmatpush2.bf16.msra.mxu0 0
      %1100 = vmatprep.subr.bf16.mxu0 0
      %1101 = vmatpush2.bf16.msra.mxu0 0
      %1102 = vmatprep.subr.bf16.mxu0 0
      %1103 = vmatpush2.bf16.msra.mxu0 0
      %1104 = vmatprep.subr.bf16.mxu0 0
      %1105 = vmatpush2.bf16.msra.mxu0 0
      %1106 = vmatprep.mubr.bf16.mxu0 0
      %1107 = vmatmul.mubr.bf16.gmra.mxu0 %v1069
      %v1108 = vpop.f32.mrf.mxu0
      %v1109 = vadd.f32 0.0, %v1108
      %v1110 = vpop.f32.mrf.mxu0
      %v1111 = vpop.f32.mrf.mxu0
      %v1112 = vpop.f32.mrf.mxu0
      %1113 = vdwg.mxu0
      %v1114 = vadd.f32 %v856, %v706
      %v1115 = vadd.f32 %v941, %v706
      %v1116 = vadd.f32 %v1025, %v706
      %v1117 = vadd.f32 %v1109, %v706
      %v1118 = vsel %vm813, %v1114, -inf
      %1119 = vmax.xlane.f32.xlu0 %v1118
      %v1120 = vpop.xlane.xlu0 %1119
      %v1121 = vsel %vm813, %v1115, -inf
      %1122 = vmax.xlane.f32.xlu0 %v1121
      %v1123 = vpop.xlane.xlu0 %1122
      %v1124 = vsel %vm813, %v1116, -inf
      %1125 = vmax.xlane.f32.xlu0 %v1124
      %v1126 = vpop.xlane.xlu0 %1125
      %v1127 = vsel %vm813, %v1117, -inf
      %1128 = vmax.xlane.f32.xlu0 %v1127
      %v1129 = vpop.xlane.xlu0 %1128
      %v1130 = vsub.f32 %v1114, %v1120
      %v1131 = vsub.f32 %v1115, %v1123
      %v1132 = vsub.f32 %v1116, %v1126
      %v1133 = vsub.f32 %v1117, %v1129
      %v1134 = vmul.f32 %v1130, 1.442695
      %v1135 = vpow.pop %v1134
      %v1136 = vmul.f32 %v1131, 1.442695
      %v1137 = vpow.pop %v1136
      %v1138 = vmul.f32 %v1132, 1.442695
      %v1139 = vpow.pop %v1138
      %v1140 = vmul.f32 %v1133, 1.442695
      %v1141 = vpow.pop %v1140
      %v1142 = vsel %vm813, %v1135, 0.0
      %1143 = vadd.xlane.f32.xlu0 %v1142
      %v1144 = vpop.xlane.xlu0 %1143
      %v1145 = vsel %vm813, %v1137, 0.0
      %1146 = vadd.xlane.f32.xlu0 %v1145
      %v1147 = vpop.xlane.xlu0 %1146
      %v1148 = vsel %vm813, %v1139, 0.0
      %1149 = vadd.xlane.f32.xlu0 %v1148
      %v1150 = vpop.xlane.xlu0 %1149
      %v1151 = vsel %vm813, %v1141, 0.0
      %1152 = vadd.xlane.f32.xlu0 %v1151
      %v1153 = vpop.xlane.xlu0 %1152
      %v1154 = vrcp.pop %v1144
      %v1155 = vrcp.pop %v1147
      %v1156 = vrcp.pop %v1150
      %v1157 = vrcp.pop %v1153
      %v1158 = vmul.f32 %v1135, %v1154
      %v1159 = vmul.f32 %v1137, %v1155
      %v1160 = vmul.f32 %v1139, %v1156
      %v1161 = vmul.f32 %v1141, %v1157
      %v1162 = vpack.c.bf16 %v1158, %v1158
      %1163 = vrot.lane.b32.xlu0 %v775, 64
      %v1164 = vpop.permute.xlu0 %1163
      %v1166 = vsel %vm813, %v1162, 0
      %v1169 = vsel %vm817, %v1164, 0
      %1171 = vmatprep.subr.bf16.mxu0 0
      %1172 = vmatpush1.bf16.msra.mxu0 0
      %1173 = vmatprep.subr.bf16.mxu0 0
      %1174 = vmatpush1.bf16.msra.mxu0 0
      %1175 = vmatprep.subr.bf16.mxu0 0
      %1176 = vmatpush1.bf16.msra.mxu0 0
      %1177 = vmatprep.subr.bf16.mxu0 0
      %1178 = vmatpush1.bf16.msra.mxu0 0
      %1179 = vmatprep.subr.bf16.mxu0 0
      %1180 = vmatpush1.bf16.msra.mxu0 0
      %1181 = vmatprep.subr.bf16.mxu0 0
      %1182 = vmatpush1.bf16.msra.mxu0 0
      %1183 = vmatprep.subr.bf16.mxu0 0
      %1184 = vmatpush1.bf16.msra.mxu0 0
      %1185 = vmatprep.subr.bf16.mxu0 0
      %1186 = vmatpush1.bf16.msra.mxu0 %v1169
      %1187 = vmatprep.subr.bf16.mxu0 0
      %1188 = vmatpush2.bf16.msra.mxu0 0
      %1189 = vmatprep.subr.bf16.mxu0 0
      %1190 = vmatpush2.bf16.msra.mxu0 0
      %1191 = vmatprep.subr.bf16.mxu0 0
      %1192 = vmatpush2.bf16.msra.mxu0 0
      %1193 = vmatprep.subr.bf16.mxu0 0
      %1194 = vmatpush2.bf16.msra.mxu0 0
      %1195 = vmatprep.subr.bf16.mxu0 0
      %1196 = vmatpush2.bf16.msra.mxu0 0
      %1197 = vmatprep.subr.bf16.mxu0 0
      %1198 = vmatpush2.bf16.msra.mxu0 0
      %1199 = vmatprep.subr.bf16.mxu0 0
      %1200 = vmatpush2.bf16.msra.mxu0 0
      %1201 = vmatprep.subr.bf16.mxu0 0
      %1202 = vmatpush2.bf16.msra.mxu0 0
      %1203 = vmatprep.mubr.bf16.mxu0 0
      %1204 = vmatmul.mubr.bf16.gmra.mxu0 %v1166
      %v1205 = vpop.f32.mrf.mxu0
      %v1206 = vadd.f32 0.0, %v1205
      %v1207 = vpop.f32.mrf.mxu0
      %v1208 = vpop.f32.mrf.mxu0
      %v1209 = vpop.f32.mrf.mxu0
      %1210 = vdwg.mxu0
      %v1211 = vpack.c.bf16 %v1159, %v1159
      %1212 = vrot.lane.b32.xlu0 %v775, 56
      %v1213 = vpop.permute.xlu0 %1212
      %v1215 = vsel %vm813, %v1211, 0
      %v1218 = vsel %vm817, %v1213, 0
      %1220 = vmatprep.subr.bf16.mxu0 0
      %1221 = vmatpush1.bf16.msra.mxu0 0
      %1222 = vmatprep.subr.bf16.mxu0 0
      %1223 = vmatpush1.bf16.msra.mxu0 0
      %1224 = vmatprep.subr.bf16.mxu0 0
      %1225 = vmatpush1.bf16.msra.mxu0 0
      %1226 = vmatprep.subr.bf16.mxu0 0
      %1227 = vmatpush1.bf16.msra.mxu0 0
      %1228 = vmatprep.subr.bf16.mxu0 0
      %1229 = vmatpush1.bf16.msra.mxu0 0
      %1230 = vmatprep.subr.bf16.mxu0 0
      %1231 = vmatpush1.bf16.msra.mxu0 0
      %1232 = vmatprep.subr.bf16.mxu0 0
      %1233 = vmatpush1.bf16.msra.mxu0 0
      %1234 = vmatprep.subr.bf16.mxu0 0
      %1235 = vmatpush1.bf16.msra.mxu0 %v1218
      %1236 = vmatprep.subr.bf16.mxu0 0
      %1237 = vmatpush2.bf16.msra.mxu0 0
      %1238 = vmatprep.subr.bf16.mxu0 0
      %1239 = vmatpush2.bf16.msra.mxu0 0
      %1240 = vmatprep.subr.bf16.mxu0 0
      %1241 = vmatpush2.bf16.msra.mxu0 0
      %1242 = vmatprep.subr.bf16.mxu0 0
      %1243 = vmatpush2.bf16.msra.mxu0 0
      %1244 = vmatprep.subr.bf16.mxu0 0
      %1245 = vmatpush2.bf16.msra.mxu0 0
      %1246 = vmatprep.subr.bf16.mxu0 0
      %1247 = vmatpush2.bf16.msra.mxu0 0
      %1248 = vmatprep.subr.bf16.mxu0 0
      %1249 = vmatpush2.bf16.msra.mxu0 0
      %1250 = vmatprep.subr.bf16.mxu0 0
      %1251 = vmatpush2.bf16.msra.mxu0 0
      %1252 = vmatprep.mubr.bf16.mxu0 0
      %1253 = vmatmul.mubr.bf16.gmra.mxu0 %v1215
      %v1254 = vpop.f32.mrf.mxu0
      %v1255 = vadd.f32 0.0, %v1254
      %v1256 = vpop.f32.mrf.mxu0
      %v1257 = vpop.f32.mrf.mxu0
      %v1258 = vpop.f32.mrf.mxu0
      %1259 = vdwg.mxu0
      %v1260 = vpack.c.bf16 %v1160, %v1160
      %1261 = vrot.lane.b32.xlu0 %v775, 48
      %v1262 = vpop.permute.xlu0 %1261
      %v1264 = vsel %vm813, %v1260, 0
      %v1267 = vsel %vm817, %v1262, 0
      %1269 = vmatprep.subr.bf16.mxu0 0
      %1270 = vmatpush1.bf16.msra.mxu0 0
      %1271 = vmatprep.subr.bf16.mxu0 0
      %1272 = vmatpush1.bf16.msra.mxu0 0
      %1273 = vmatprep.subr.bf16.mxu0 0
      %1274 = vmatpush1.bf16.msra.mxu0 0
      %1275 = vmatprep.subr.bf16.mxu0 0
      %1276 = vmatpush1.bf16.msra.mxu0 0
      %1277 = vmatprep.subr.bf16.mxu0 0
      %1278 = vmatpush1.bf16.msra.mxu0 0
      %1279 = vmatprep.subr.bf16.mxu0 0
      %1280 = vmatpush1.bf16.msra.mxu0 0
      %1281 = vmatprep.subr.bf16.mxu0 0
      %1282 = vmatpush1.bf16.msra.mxu0 0
      %1283 = vmatprep.subr.bf16.mxu0 0
      %1284 = vmatpush1.bf16.msra.mxu0 %v1267
      %1285 = vmatprep.subr.bf16.mxu0 0
      %1286 = vmatpush2.bf16.msra.mxu0 0
      %1287 = vmatprep.subr.bf16.mxu0 0
      %1288 = vmatpush2.bf16.msra.mxu0 0
      %1289 = vmatprep.subr.bf16.mxu0 0
      %1290 = vmatpush2.bf16.msra.mxu0 0
      %1291 = vmatprep.subr.bf16.mxu0 0
      %1292 = vmatpush2.bf16.msra.mxu0 0
      %1293 = vmatprep.subr.bf16.mxu0 0
      %1294 = vmatpush2.bf16.msra.mxu0 0
      %1295 = vmatprep.subr.bf16.mxu0 0
      %1296 = vmatpush2.bf16.msra.mxu0 0
      %1297 = vmatprep.subr.bf16.mxu0 0
      %1298 = vmatpush2.bf16.msra.mxu0 0
      %1299 = vmatprep.subr.bf16.mxu0 0
      %1300 = vmatpush2.bf16.msra.mxu0 0
      %1301 = vmatprep.mubr.bf16.mxu0 0
      %1302 = vmatmul.mubr.bf16.gmra.mxu0 %v1264
      %v1303 = vpop.f32.mrf.mxu0
      %v1304 = vadd.f32 0.0, %v1303
      %v1305 = vpop.f32.mrf.mxu0
      %v1306 = vpop.f32.mrf.mxu0
      %v1307 = vpop.f32.mrf.mxu0
      %1308 = vdwg.mxu0
      %v1309 = vpack.c.bf16 %v1161, %v1161
      %1310 = vrot.lane.b32.xlu0 %v775, 40
      %v1311 = vpop.permute.xlu0 %1310
      %v1313 = vsel %vm813, %v1309, 0
      %v1316 = vsel %vm817, %v1311, 0
      %1318 = vmatprep.subr.bf16.mxu0 0
      %1319 = vmatpush1.bf16.msra.mxu0 0
      %1320 = vmatprep.subr.bf16.mxu0 0
      %1321 = vmatpush1.bf16.msra.mxu0 0
      %1322 = vmatprep.subr.bf16.mxu0 0
      %1323 = vmatpush1.bf16.msra.mxu0 0
      %1324 = vmatprep.subr.bf16.mxu0 0
      %1325 = vmatpush1.bf16.msra.mxu0 0
      %1326 = vmatprep.subr.bf16.mxu0 0
      %1327 = vmatpush1.bf16.msra.mxu0 0
      %1328 = vmatprep.subr.bf16.mxu0 0
      %1329 = vmatpush1.bf16.msra.mxu0 0
      %1330 = vmatprep.subr.bf16.mxu0 0
      %1331 = vmatpush1.bf16.msra.mxu0 0
      %1332 = vmatprep.subr.bf16.mxu0 0
      %1333 = vmatpush1.bf16.msra.mxu0 %v1316
      %1334 = vmatprep.subr.bf16.mxu0 0
      %1335 = vmatpush2.bf16.msra.mxu0 0
      %1336 = vmatprep.subr.bf16.mxu0 0
      %1337 = vmatpush2.bf16.msra.mxu0 0
      %1338 = vmatprep.subr.bf16.mxu0 0
      %1339 = vmatpush2.bf16.msra.mxu0 0
      %1340 = vmatprep.subr.bf16.mxu0 0
      %1341 = vmatpush2.bf16.msra.mxu0 0
      %1342 = vmatprep.subr.bf16.mxu0 0
      %1343 = vmatpush2.bf16.msra.mxu0 0
      %1344 = vmatprep.subr.bf16.mxu0 0
      %1345 = vmatpush2.bf16.msra.mxu0 0
      %1346 = vmatprep.subr.bf16.mxu0 0
      %1347 = vmatpush2.bf16.msra.mxu0 0
      %1348 = vmatprep.subr.bf16.mxu0 0
      %1349 = vmatpush2.bf16.msra.mxu0 0
      %1350 = vmatprep.mubr.bf16.mxu0 0
      %1351 = vmatmul.mubr.bf16.gmra.mxu0 %v1313
      %v1352 = vpop.f32.mrf.mxu0
      %v1353 = vadd.f32 0.0, %v1352
      %v1354 = vpop.f32.mrf.mxu0
      %v1355 = vpop.f32.mrf.mxu0
      %v1356 = vpop.f32.mrf.mxu0
      %1357 = vdwg.mxu0
      %1359 = vrot.lane.b32.xlu0 %v1255, 8
      %v1360 = vpop.permute.xlu0 %1359
      %1363 = vrot.lane.b32.xlu0 %v1304, 16
      %v1364 = vpop.permute.xlu0 %1363
      %1367 = vrot.lane.b32.xlu0 %v1353, 24
      %v1368 = vpop.permute.xlu0 %1367
      %v1370 = vsel %vm813, %v1206, %v1360
      %vm1371 = vcmask 130048
      %v1372 = vsel %vm1371, %v1370, %v1364
      %vm1373 = vcmask 195584
      %v1374 = vsel %vm1373, %v1372, %v1368
      %v1375 = vld [vmem:[%s645] sm:$0xf]
      %v1376 = vld [vmem:[%s645 + $0x4] sm:$0xf]
      %v1377 = vld [vmem:[%s645 + $0x8] sm:$0xf]
      %v1378 = vld [vmem:[%s645 + $0xc] sm:$0xf]
      %v1379 = vpack.c.bf16 %v1374, %v1374
      %v1384 = vunpack.c.l.b16 %v1375
      %v1385 = vunpack.c.l.b16 %v1376
      %v1386 = vunpack.c.l.b16 %v1377
      %v1387 = vunpack.c.l.b16 %v1378
      %v1388 = vpack.c.b16 %v1385, %v1384
      %v1389 = vpack.c.b16 %v1387, %v1386
      %v1393 = vsel %vm731, %v1379, 0
      %1395 = vmatprep.subr.bf16.mxu0 0
      %1396 = vmatpush1.bf16.msra.mxu0 0
      %1397 = vmatprep.subr.bf16.mxu0 0
      %1398 = vmatpush1.bf16.msra.mxu0 0
      %1399 = vmatprep.subr.bf16.mxu0 0
      %1400 = vmatpush1.bf16.msra.mxu0 0
      %1401 = vmatprep.subr.bf16.mxu0 0
      %1402 = vmatpush1.bf16.msra.mxu0 0
      %1403 = vmatprep.subr.bf16.mxu0 0
      %1404 = vmatpush1.bf16.msra.mxu0 0
      %1405 = vmatprep.subr.bf16.mxu0 0
      %1406 = vmatpush1.bf16.msra.mxu0 0
      %1407 = vmatprep.subr.bf16.mxu0 0
      %1408 = vmatpush1.bf16.msra.mxu0 %v1389
      %1409 = vmatprep.subr.bf16.mxu0 0
      %1410 = vmatpush1.bf16.msra.mxu0 %v1388
      %1411 = vmatprep.subr.bf16.mxu0 0
      %1412 = vmatpush2.bf16.msra.mxu0 0
      %1413 = vmatprep.subr.bf16.mxu0 0
      %1414 = vmatpush2.bf16.msra.mxu0 0
      %1415 = vmatprep.subr.bf16.mxu0 0
      %1416 = vmatpush2.bf16.msra.mxu0 0
      %1417 = vmatprep.subr.bf16.mxu0 0
      %1418 = vmatpush2.bf16.msra.mxu0 0
      %1419 = vmatprep.subr.bf16.mxu0 0
      %1420 = vmatpush2.bf16.msra.mxu0 0
      %1421 = vmatprep.subr.bf16.mxu0 0
      %1422 = vmatpush2.bf16.msra.mxu0 0
      %1423 = vmatprep.subr.bf16.mxu0 0
      %1424 = vmatpush2.bf16.msra.mxu0 0
      %1425 = vmatprep.subr.bf16.mxu0 0
      %1426 = vmatpush2.bf16.msra.mxu0 0
      %1427 = vmatprep.mubr.bf16.mxu0 0
      %1428 = vmatmul.mubr.bf16.gmra.mxu0 %v1393
      %v1429 = vpop.f32.mrf.mxu0
      %v1430 = vadd.f32 0.0, %v1429
      %v1431 = vpop.f32.mrf.mxu0
      %v1432 = vpop.f32.mrf.mxu0
      %v1433 = vpop.f32.mrf.mxu0
      %1434 = vdwg.mxu0
      %v1435 = vadd.f32 %v688, %v1430
      %v1436 = vlaneseq
      %v1437 = vshrl.u32 %v1436, 7
      %v1438 = vsub.s32 1, %v1437
      %v1439 = vrot.slane %v690, %v1438
      %v1440 = vadd.f32 %v1435, %v1439
      %v1441 = vsel %vm731, %v1440, 0.0
      %1442 = vadd.xlane.f32.xlu0 %v1441
      %v1443 = vpop.xlane.xlu0 %1442
      %v1444 = vrcp.pop 32.0
      %v1445 = vmul.f32 %v1443, %v1444
      %v1446 = vsub.f32 %v1440, %v1445
      %v1447 = vmul.f32 %v1446, %v1446
      %v1448 = vsel %vm731, %v1447, 0.0
      %1449 = vadd.xlane.f32.xlu0 %v1448
      %v1450 = vpop.xlane.xlu0 %1449
      %v1451 = vmul.f32 %v1450, %v1444
      %v1452 = vadd.f32 %v1451, 1e-05
      %v1453 = vrsqrt.pop %v1452
      %v1454 = vmul.f32 %v1446, %v1453
      %v1455 = vlaneseq
      %v1456 = vshrl.u32 %v1455, 7
      %v1457 = vsub.s32 2, %v1456
      %v1458 = vrot.slane %v690, %v1457
      %v1459 = vmul.f32 %v1454, %v1458
      %v1460 = vlaneseq
      %v1461 = vshrl.u32 %v1460, 7
      %v1462 = vsub.s32 3, %v1461
      %v1463 = vrot.slane %v690, %v1462
      %v1464 = vadd.f32 %v1459, %v1463
      %v1465 = vld [vmem:[%s650] sm:$0xf]
      %v1466 = vld [vmem:[%s650 + $0x4] sm:$0xf]
      %v1467 = vld [vmem:[%s650 + $0x8] sm:$0xf]
      %v1468 = vld [vmem:[%s650 + $0xc] sm:$0xf]
      %v1469 = vpack.c.bf16 %v1464, %v1464
      %v1470 = vlaneseq
      %v1471 = vshrl.u32 %v1470, 7
      %v1472 = vsub.s32 4, %v1471
      %v1473 = vrot.slane %v690, %v1472
      %v1478 = vunpack.c.l.b16 %v1465
      %v1479 = vunpack.c.l.b16 %v1466
      %v1480 = vunpack.c.l.b16 %v1467
      %v1481 = vunpack.c.l.b16 %v1468
      %v1482 = vpack.c.b16 %v1479, %v1478
      %v1483 = vpack.c.b16 %v1481, %v1480
      %v1487 = vsel %vm731, %v1469, 0
      %1489 = vmatprep.subr.bf16.mxu0 0
      %1490 = vmatpush1.bf16.msra.mxu0 0
      %1491 = vmatprep.subr.bf16.mxu0 0
      %1492 = vmatpush1.bf16.msra.mxu0 0
      %1493 = vmatprep.subr.bf16.mxu0 0
      %1494 = vmatpush1.bf16.msra.mxu0 0
      %1495 = vmatprep.subr.bf16.mxu0 0
      %1496 = vmatpush1.bf16.msra.mxu0 0
      %1497 = vmatprep.subr.bf16.mxu0 0
      %1498 = vmatpush1.bf16.msra.mxu0 0
      %1499 = vmatprep.subr.bf16.mxu0 0
      %1500 = vmatpush1.bf16.msra.mxu0 0
      %1501 = vmatprep.subr.bf16.mxu0 0
      %1502 = vmatpush1.bf16.msra.mxu0 %v1483
      %1503 = vmatprep.subr.bf16.mxu0 0
      %1504 = vmatpush1.bf16.msra.mxu0 %v1482
      %1505 = vmatprep.subr.bf16.mxu0 0
      %1506 = vmatpush2.bf16.msra.mxu0 0
      %1507 = vmatprep.subr.bf16.mxu0 0
      %1508 = vmatpush2.bf16.msra.mxu0 0
      %1509 = vmatprep.subr.bf16.mxu0 0
      %1510 = vmatpush2.bf16.msra.mxu0 0
      %1511 = vmatprep.subr.bf16.mxu0 0
      %1512 = vmatpush2.bf16.msra.mxu0 0
      %1513 = vmatprep.subr.bf16.mxu0 0
      %1514 = vmatpush2.bf16.msra.mxu0 0
      %1515 = vmatprep.subr.bf16.mxu0 0
      %1516 = vmatpush2.bf16.msra.mxu0 0
      %1517 = vmatprep.subr.bf16.mxu0 0
      %1518 = vmatpush2.bf16.msra.mxu0 0
      %1519 = vmatprep.subr.bf16.mxu0 0
      %1520 = vmatpush2.bf16.msra.mxu0 0
      %1521 = vmatprep.mubr.bf16.mxu0 0
      %1522 = vmatmul.mubr.bf16.gmra.mxu0 %v1487
      %v1523 = vpop.f32.mrf.mxu0
      %v1524 = vadd.f32 %v1473, %v1523
      %v1525 = vpop.f32.mrf.mxu0
      %v1526 = vpop.f32.mrf.mxu0
      %v1527 = vpop.f32.mrf.mxu0
      %1528 = vdwg.mxu0
      %v1529 = vld [vmem:[%s655] sm:$0xf]
      %v1530 = vld [vmem:[%s655 + $0x4] sm:$0xf]
      %v1531 = vld [vmem:[%s655 + $0x8] sm:$0xf]
      %v1532 = vld [vmem:[%s655 + $0xc] sm:$0xf]
      %v1533 = vpack.c.bf16 %v689, %v689
      %v1534 = vlaneseq
      %v1535 = vshrl.u32 %v1534, 7
      %v1536 = vsub.s32 5, %v1535
      %v1537 = vrot.slane %v690, %v1536
      %v1542 = vunpack.c.l.b16 %v1529
      %v1543 = vunpack.c.l.b16 %v1530
      %v1544 = vunpack.c.l.b16 %v1531
      %v1545 = vunpack.c.l.b16 %v1532
      %v1546 = vpack.c.b16 %v1543, %v1542
      %v1547 = vpack.c.b16 %v1545, %v1544
      %v1551 = vsel %vm731, %v1533, 0
      %1553 = vmatprep.subr.bf16.mxu0 0
      %1554 = vmatpush1.bf16.msra.mxu0 0
      %1555 = vmatprep.subr.bf16.mxu0 0
      %1556 = vmatpush1.bf16.msra.mxu0 0
      %1557 = vmatprep.subr.bf16.mxu0 0
      %1558 = vmatpush1.bf16.msra.mxu0 0
      %1559 = vmatprep.subr.bf16.mxu0 0
      %1560 = vmatpush1.bf16.msra.mxu0 0
      %1561 = vmatprep.subr.bf16.mxu0 0
      %1562 = vmatpush1.bf16.msra.mxu0 0
      %1563 = vmatprep.subr.bf16.mxu0 0
      %1564 = vmatpush1.bf16.msra.mxu0 0
      %1565 = vmatprep.subr.bf16.mxu0 0
      %1566 = vmatpush1.bf16.msra.mxu0 %v1547
      %1567 = vmatprep.subr.bf16.mxu0 0
      %1568 = vmatpush1.bf16.msra.mxu0 %v1546
      %1569 = vmatprep.subr.bf16.mxu0 0
      %1570 = vmatpush2.bf16.msra.mxu0 0
      %1571 = vmatprep.subr.bf16.mxu0 0
      %1572 = vmatpush2.bf16.msra.mxu0 0
      %1573 = vmatprep.subr.bf16.mxu0 0
      %1574 = vmatpush2.bf16.msra.mxu0 0
      %1575 = vmatprep.subr.bf16.mxu0 0
      %1576 = vmatpush2.bf16.msra.mxu0 0
      %1577 = vmatprep.subr.bf16.mxu0 0
      %1578 = vmatpush2.bf16.msra.mxu0 0
      %1579 = vmatprep.subr.bf16.mxu0 0
      %1580 = vmatpush2.bf16.msra.mxu0 0
      %1581 = vmatprep.subr.bf16.mxu0 0
      %1582 = vmatpush2.bf16.msra.mxu0 0
      %1583 = vmatprep.subr.bf16.mxu0 0
      %1584 = vmatpush2.bf16.msra.mxu0 0
      %1585 = vmatprep.mubr.bf16.mxu0 0
      %1586 = vmatmul.mubr.bf16.gmra.mxu0 %v1551
      %v1587 = vpop.f32.mrf.mxu0
      %v1588 = vadd.f32 %v1537, %v1587
      %v1589 = vpop.f32.mrf.mxu0
      %v1590 = vpop.f32.mrf.mxu0
      %v1591 = vpop.f32.mrf.mxu0
      %1592 = vdwg.mxu0
      %v1593 = vpack.c.bf16 %v1524, %v1524
      %1594 = vxpose.xlu0.b32.start [1/16] %v1588, 128
      %1595 = vxpose.xlu0.b32.cont [2/16] 0.0, 128
      %1596 = vxpose.xlu0.b32.cont [3/16] 0.0, 128
      %1597 = vxpose.xlu0.b32.cont [4/16] 0.0, 128
      %1598 = vxpose.xlu0.b32.cont [5/16] 0.0, 128
      %1599 = vxpose.xlu0.b32.cont [6/16] 0.0, 128
      %1600 = vxpose.xlu0.b32.cont [7/16] 0.0, 128
      %1601 = vxpose.xlu0.b32.cont [8/16] 0.0, 128
      %1602 = vxpose.xlu0.b32.cont [9/16] 0.0, 128
      %1603 = vxpose.xlu0.b32.cont [10/16] 0.0, 128
      %1604 = vxpose.xlu0.b32.cont [11/16] 0.0, 128
      %1605 = vxpose.xlu0.b32.cont [12/16] 0.0, 128
      %1606 = vxpose.xlu0.b32.cont [13/16] 0.0, 128
      %1607 = vxpose.xlu0.b32.cont [14/16] 0.0, 128
      %1608 = vxpose.xlu0.b32.cont [15/16] 0.0, 128
      %1609 = vxpose.xlu0.b32.end [16/16] 0.0, 128
      %v1610 = vpop.trf.xlu0
      %v1611 = vpop.trf.xlu0
      %v1612 = vpop.trf.xlu0
      %v1613 = vpop.trf.xlu0
      %v1614 = vpop.trf.xlu0
      %v1615 = vpop.trf.xlu0
      %v1616 = vpop.trf.xlu0
      %v1617 = vpop.trf.xlu0
      %v1618 = vpop.trf.xlu0
      %v1619 = vpop.trf.xlu0
      %v1620 = vpop.trf.xlu0
      %v1621 = vpop.trf.xlu0
      %v1622 = vpop.trf.xlu0
      %v1623 = vpop.trf.xlu0
      %v1624 = vpop.trf.xlu0
      %v1625 = vpop.trf.xlu0
      %v1626 = vpack.c.bf16 %v1610, %v1610
      %v1628 = vsel %vm813, %v1593, 0
      %v1631 = vsel %vm817, %v1626, 0
      %1633 = vmatprep.subr.bf16.mxu0 0
      %1634 = vmatpush1.bf16.msra.mxu0 0
      %1635 = vmatprep.subr.bf16.mxu0 0
      %1636 = vmatpush1.bf16.msra.mxu0 0
      %1637 = vmatprep.subr.bf16.mxu0 0
      %1638 = vmatpush1.bf16.msra.mxu0 0
      %1639 = vmatprep.subr.bf16.mxu0 0
      %1640 = vmatpush1.bf16.msra.mxu0 0
      %1641 = vmatprep.subr.bf16.mxu0 0
      %1642 = vmatpush1.bf16.msra.mxu0 0
      %1643 = vmatprep.subr.bf16.mxu0 0
      %1644 = vmatpush1.bf16.msra.mxu0 0
      %1645 = vmatprep.subr.bf16.mxu0 0
      %1646 = vmatpush1.bf16.msra.mxu0 0
      %1647 = vmatprep.subr.bf16.mxu0 0
      %1648 = vmatpush1.bf16.msra.mxu0 %v1631
      %1649 = vmatprep.subr.bf16.mxu0 0
      %1650 = vmatpush2.bf16.msra.mxu0 0
      %1651 = vmatprep.subr.bf16.mxu0 0
      %1652 = vmatpush2.bf16.msra.mxu0 0
      %1653 = vmatprep.subr.bf16.mxu0 0
      %1654 = vmatpush2.bf16.msra.mxu0 0
      %1655 = vmatprep.subr.bf16.mxu0 0
      %1656 = vmatpush2.bf16.msra.mxu0 0
      %1657 = vmatprep.subr.bf16.mxu0 0
      %1658 = vmatpush2.bf16.msra.mxu0 0
      %1659 = vmatprep.subr.bf16.mxu0 0
      %1660 = vmatpush2.bf16.msra.mxu0 0
      %1661 = vmatprep.subr.bf16.mxu0 0
      %1662 = vmatpush2.bf16.msra.mxu0 0
      %1663 = vmatprep.subr.bf16.mxu0 0
      %1664 = vmatpush2.bf16.msra.mxu0 0
      %1665 = vmatprep.mubr.bf16.mxu0 0
      %1666 = vmatmul.mubr.bf16.gmra.mxu0 %v1628
      %v1667 = vpop.f32.mrf.mxu0
      %v1668 = vadd.f32 0.0, %v1667
      %v1669 = vpop.f32.mrf.mxu0
      %v1670 = vpop.f32.mrf.mxu0
      %v1671 = vpop.f32.mrf.mxu0
      %1672 = vdwg.mxu0
      %1674 = vrot.lane.b32.xlu0 %v1588, 120
      %v1675 = vpop.permute.xlu0 %1674
      %1677 = vxpose.xlu0.b32.start [1/16] %v1675, 128
      %1678 = vxpose.xlu0.b32.cont [2/16] 0.0, 128
      %1679 = vxpose.xlu0.b32.cont [3/16] 0.0, 128
      %1680 = vxpose.xlu0.b32.cont [4/16] 0.0, 128
      %1681 = vxpose.xlu0.b32.cont [5/16] 0.0, 128
      %1682 = vxpose.xlu0.b32.cont [6/16] 0.0, 128
      %1683 = vxpose.xlu0.b32.cont [7/16] 0.0, 128
      %1684 = vxpose.xlu0.b32.cont [8/16] 0.0, 128
      %1685 = vxpose.xlu0.b32.cont [9/16] 0.0, 128
      %1686 = vxpose.xlu0.b32.cont [10/16] 0.0, 128
      %1687 = vxpose.xlu0.b32.cont [11/16] 0.0, 128
      %1688 = vxpose.xlu0.b32.cont [12/16] 0.0, 128
      %1689 = vxpose.xlu0.b32.cont [13/16] 0.0, 128
      %1690 = vxpose.xlu0.b32.cont [14/16] 0.0, 128
      %1691 = vxpose.xlu0.b32.cont [15/16] 0.0, 128
      %1692 = vxpose.xlu0.b32.end [16/16] 0.0, 128
      %v1693 = vpop.trf.xlu0
      %v1694 = vpop.trf.xlu0
      %v1695 = vpop.trf.xlu0
      %v1696 = vpop.trf.xlu0
      %v1697 = vpop.trf.xlu0
      %v1698 = vpop.trf.xlu0
      %v1699 = vpop.trf.xlu0
      %v1700 = vpop.trf.xlu0
      %v1701 = vpop.trf.xlu0
      %v1702 = vpop.trf.xlu0
      %v1703 = vpop.trf.xlu0
      %v1704 = vpop.trf.xlu0
      %v1705 = vpop.trf.xlu0
      %v1706 = vpop.trf.xlu0
      %v1707 = vpop.trf.xlu0
      %v1708 = vpop.trf.xlu0
      %v1709 = vpack.c.bf16 %v1693, %v1693
      %1711 = vrot.lane.b32.xlu0 %v1593, 120
      %v1712 = vpop.permute.xlu0 %1711
      %v1714 = vsel %vm813, %v1712, 0
      %v1717 = vsel %vm817, %v1709, 0
      %1719 = vmatprep.subr.bf16.mxu0 0
      %1720 = vmatpush1.bf16.msra.mxu0 0
      %1721 = vmatprep.subr.bf16.mxu0 0
      %1722 = vmatpush1.bf16.msra.mxu0 0
      %1723 = vmatprep.subr.bf16.mxu0 0
      %1724 = vmatpush1.bf16.msra.mxu0 0
      %1725 = vmatprep.subr.bf16.mxu0 0
      %1726 = vmatpush1.bf16.msra.mxu0 0
      %1727 = vmatprep.subr.bf16.mxu0 0
      %1728 = vmatpush1.bf16.msra.mxu0 0
      %1729 = vmatprep.subr.bf16.mxu0 0
      %1730 = vmatpush1.bf16.msra.mxu0 0
      %1731 = vmatprep.subr.bf16.mxu0 0
      %1732 = vmatpush1.bf16.msra.mxu0 0
      %1733 = vmatprep.subr.bf16.mxu0 0
      %1734 = vmatpush1.bf16.msra.mxu0 %v1717
      %1735 = vmatprep.subr.bf16.mxu0 0
      %1736 = vmatpush2.bf16.msra.mxu0 0
      %1737 = vmatprep.subr.bf16.mxu0 0
      %1738 = vmatpush2.bf16.msra.mxu0 0
      %1739 = vmatprep.subr.bf16.mxu0 0
      %1740 = vmatpush2.bf16.msra.mxu0 0
      %1741 = vmatprep.subr.bf16.mxu0 0
      %1742 = vmatpush2.bf16.msra.mxu0 0
      %1743 = vmatprep.subr.bf16.mxu0 0
      %1744 = vmatpush2.bf16.msra.mxu0 0
      %1745 = vmatprep.subr.bf16.mxu0 0
      %1746 = vmatpush2.bf16.msra.mxu0 0
      %1747 = vmatprep.subr.bf16.mxu0 0
      %1748 = vmatpush2.bf16.msra.mxu0 0
      %1749 = vmatprep.subr.bf16.mxu0 0
      %1750 = vmatpush2.bf16.msra.mxu0 0
      %1751 = vmatprep.mubr.bf16.mxu0 0
      %1752 = vmatmul.mubr.bf16.gmra.mxu0 %v1714
      %v1753 = vpop.f32.mrf.mxu0
      %v1754 = vadd.f32 0.0, %v1753
      %v1755 = vpop.f32.mrf.mxu0
      %v1756 = vpop.f32.mrf.mxu0
      %v1757 = vpop.f32.mrf.mxu0
      %1758 = vdwg.mxu0
      %1759 = vrot.lane.b32.xlu0 %v1588, 112
      %v1760 = vpop.permute.xlu0 %1759
      %1762 = vxpose.xlu0.b32.start [1/16] %v1760, 128
      %1763 = vxpose.xlu0.b32.cont [2/16] 0.0, 128
      %1764 = vxpose.xlu0.b32.cont [3/16] 0.0, 128
      %1765 = vxpose.xlu0.b32.cont [4/16] 0.0, 128
      %1766 = vxpose.xlu0.b32.cont [5/16] 0.0, 128
      %1767 = vxpose.xlu0.b32.cont [6/16] 0.0, 128
      %1768 = vxpose.xlu0.b32.cont [7/16] 0.0, 128
      %1769 = vxpose.xlu0.b32.cont [8/16] 0.0, 128
      %1770 = vxpose.xlu0.b32.cont [9/16] 0.0, 128
      %1771 = vxpose.xlu0.b32.cont [10/16] 0.0, 128
      %1772 = vxpose.xlu0.b32.cont [11/16] 0.0, 128
      %1773 = vxpose.xlu0.b32.cont [12/16] 0.0, 128
      %1774 = vxpose.xlu0.b32.cont [13/16] 0.0, 128
      %1775 = vxpose.xlu0.b32.cont [14/16] 0.0, 128
      %1776 = vxpose.xlu0.b32.cont [15/16] 0.0, 128
      %1777 = vxpose.xlu0.b32.end [16/16] 0.0, 128
      %v1778 = vpop.trf.xlu0
      %v1779 = vpop.trf.xlu0
      %v1780 = vpop.trf.xlu0
      %v1781 = vpop.trf.xlu0
      %v1782 = vpop.trf.xlu0
      %v1783 = vpop.trf.xlu0
      %v1784 = vpop.trf.xlu0
      %v1785 = vpop.trf.xlu0
      %v1786 = vpop.trf.xlu0
      %v1787 = vpop.trf.xlu0
      %v1788 = vpop.trf.xlu0
      %v1789 = vpop.trf.xlu0
      %v1790 = vpop.trf.xlu0
      %v1791 = vpop.trf.xlu0
      %v1792 = vpop.trf.xlu0
      %v1793 = vpop.trf.xlu0
      %v1794 = vpack.c.bf16 %v1778, %v1778
      %1795 = vrot.lane.b32.xlu0 %v1593, 112
      %v1796 = vpop.permute.xlu0 %1795
      %v1798 = vsel %vm813, %v1796, 0
      %v1801 = vsel %vm817, %v1794, 0
      %1803 = vmatprep.subr.bf16.mxu0 0
      %1804 = vmatpush1.bf16.msra.mxu0 0
      %1805 = vmatprep.subr.bf16.mxu0 0
      %1806 = vmatpush1.bf16.msra.mxu0 0
      %1807 = vmatprep.subr.bf16.mxu0 0
      %1808 = vmatpush1.bf16.msra.mxu0 0
      %1809 = vmatprep.subr.bf16.mxu0 0
      %1810 = vmatpush1.bf16.msra.mxu0 0
      %1811 = vmatprep.subr.bf16.mxu0 0
      %1812 = vmatpush1.bf16.msra.mxu0 0
      %1813 = vmatprep.subr.bf16.mxu0 0
      %1814 = vmatpush1.bf16.msra.mxu0 0
      %1815 = vmatprep.subr.bf16.mxu0 0
      %1816 = vmatpush1.bf16.msra.mxu0 0
      %1817 = vmatprep.subr.bf16.mxu0 0
      %1818 = vmatpush1.bf16.msra.mxu0 %v1801
      %1819 = vmatprep.subr.bf16.mxu0 0
      %1820 = vmatpush2.bf16.msra.mxu0 0
      %1821 = vmatprep.subr.bf16.mxu0 0
      %1822 = vmatpush2.bf16.msra.mxu0 0
      %1823 = vmatprep.subr.bf16.mxu0 0
      %1824 = vmatpush2.bf16.msra.mxu0 0
      %1825 = vmatprep.subr.bf16.mxu0 0
      %1826 = vmatpush2.bf16.msra.mxu0 0
      %1827 = vmatprep.subr.bf16.mxu0 0
      %1828 = vmatpush2.bf16.msra.mxu0 0
      %1829 = vmatprep.subr.bf16.mxu0 0
      %1830 = vmatpush2.bf16.msra.mxu0 0
      %1831 = vmatprep.subr.bf16.mxu0 0
      %1832 = vmatpush2.bf16.msra.mxu0 0
      %1833 = vmatprep.subr.bf16.mxu0 0
      %1834 = vmatpush2.bf16.msra.mxu0 0
      %1835 = vmatprep.mubr.bf16.mxu0 0
      %1836 = vmatmul.mubr.bf16.gmra.mxu0 %v1798
      %v1837 = vpop.f32.mrf.mxu0
      %v1838 = vadd.f32 0.0, %v1837
      %v1839 = vpop.f32.mrf.mxu0
      %v1840 = vpop.f32.mrf.mxu0
      %v1841 = vpop.f32.mrf.mxu0
      %1842 = vdwg.mxu0
      %1843 = vrot.lane.b32.xlu0 %v1588, 104
      %v1844 = vpop.permute.xlu0 %1843
      %1846 = vxpose.xlu0.b32.start [1/16] %v1844, 128
      %1847 = vxpose.xlu0.b32.cont [2/16] 0.0, 128
      %1848 = vxpose.xlu0.b32.cont [3/16] 0.0, 128
      %1849 = vxpose.xlu0.b32.cont [4/16] 0.0, 128
      %1850 = vxpose.xlu0.b32.cont [5/16] 0.0, 128
      %1851 = vxpose.xlu0.b32.cont [6/16] 0.0, 128
      %1852 = vxpose.xlu0.b32.cont [7/16] 0.0, 128
      %1853 = vxpose.xlu0.b32.cont [8/16] 0.0, 128
      %1854 = vxpose.xlu0.b32.cont [9/16] 0.0, 128
      %1855 = vxpose.xlu0.b32.cont [10/16] 0.0, 128
      %1856 = vxpose.xlu0.b32.cont [11/16] 0.0, 128
      %1857 = vxpose.xlu0.b32.cont [12/16] 0.0, 128
      %1858 = vxpose.xlu0.b32.cont [13/16] 0.0, 128
      %1859 = vxpose.xlu0.b32.cont [14/16] 0.0, 128
      %1860 = vxpose.xlu0.b32.cont [15/16] 0.0, 128
      %1861 = vxpose.xlu0.b32.end [16/16] 0.0, 128
      %v1862 = vpop.trf.xlu0
      %v1863 = vpop.trf.xlu0
      %v1864 = vpop.trf.xlu0
      %v1865 = vpop.trf.xlu0
      %v1866 = vpop.trf.xlu0
      %v1867 = vpop.trf.xlu0
      %v1868 = vpop.trf.xlu0
      %v1869 = vpop.trf.xlu0
      %v1870 = vpop.trf.xlu0
      %v1871 = vpop.trf.xlu0
      %v1872 = vpop.trf.xlu0
      %v1873 = vpop.trf.xlu0
      %v1874 = vpop.trf.xlu0
      %v1875 = vpop.trf.xlu0
      %v1876 = vpop.trf.xlu0
      %v1877 = vpop.trf.xlu0
      %v1878 = vpack.c.bf16 %v1862, %v1862
      %1879 = vrot.lane.b32.xlu0 %v1593, 104
      %v1880 = vpop.permute.xlu0 %1879
      %v1882 = vsel %vm813, %v1880, 0
      %v1885 = vsel %vm817, %v1878, 0
      %1887 = vmatprep.subr.bf16.mxu0 0
      %1888 = vmatpush1.bf16.msra.mxu0 0
      %1889 = vmatprep.subr.bf16.mxu0 0
      %1890 = vmatpush1.bf16.msra.mxu0 0
      %1891 = vmatprep.subr.bf16.mxu0 0
      %1892 = vmatpush1.bf16.msra.mxu0 0
      %1893 = vmatprep.subr.bf16.mxu0 0
      %1894 = vmatpush1.bf16.msra.mxu0 0
      %1895 = vmatprep.subr.bf16.mxu0 0
      %1896 = vmatpush1.bf16.msra.mxu0 0
      %1897 = vmatprep.subr.bf16.mxu0 0
      %1898 = vmatpush1.bf16.msra.mxu0 0
      %1899 = vmatprep.subr.bf16.mxu0 0
      %1900 = vmatpush1.bf16.msra.mxu0 0
      %1901 = vmatprep.subr.bf16.mxu0 0
      %1902 = vmatpush1.bf16.msra.mxu0 %v1885
      %1903 = vmatprep.subr.bf16.mxu0 0
      %1904 = vmatpush2.bf16.msra.mxu0 0
      %1905 = vmatprep.subr.bf16.mxu0 0
      %1906 = vmatpush2.bf16.msra.mxu0 0
      %1907 = vmatprep.subr.bf16.mxu0 0
      %1908 = vmatpush2.bf16.msra.mxu0 0
      %1909 = vmatprep.subr.bf16.mxu0 0
      %1910 = vmatpush2.bf16.msra.mxu0 0
      %1911 = vmatprep.subr.bf16.mxu0 0
      %1912 = vmatpush2.bf16.msra.mxu0 0
      %1913 = vmatprep.subr.bf16.mxu0 0
      %1914 = vmatpush2.bf16.msra.mxu0 0
      %1915 = vmatprep.subr.bf16.mxu0 0
      %1916 = vmatpush2.bf16.msra.mxu0 0
      %1917 = vmatprep.subr.bf16.mxu0 0
      %1918 = vmatpush2.bf16.msra.mxu0 0
      %1919 = vmatprep.mubr.bf16.mxu0 0
      %1920 = vmatmul.mubr.bf16.gmra.mxu0 %v1882
      %v1921 = vpop.f32.mrf.mxu0
      %v1922 = vadd.f32 0.0, %v1921
      %v1923 = vpop.f32.mrf.mxu0
      %v1924 = vpop.f32.mrf.mxu0
      %v1925 = vpop.f32.mrf.mxu0
      %1926 = vdwg.mxu0
      %v1928 = vlaneseq
      %v1929 = vshrl.u32 %v1928, 7
      %v1930 = vsub.s32 0, %v1929
      %v1931 = vrot.slane %v709, %v1930
      %v1933 = vadd.f32 %v1668, %v1931
      %v1934 = vadd.f32 %v1754, %v1931
      %v1935 = vadd.f32 %v1838, %v1931
      %v1936 = vadd.f32 %v1922, %v1931
      %v1937 = vsel %vm813, %v1933, -inf
      %1938 = vmax.xlane.f32.xlu0 %v1937
      %v1939 = vpop.xlane.xlu0 %1938
      %v1940 = vsel %vm813, %v1934, -inf
      %1941 = vmax.xlane.f32.xlu0 %v1940
      %v1942 = vpop.xlane.xlu0 %1941
      %v1943 = vsel %vm813, %v1935, -inf
      %1944 = vmax.xlane.f32.xlu0 %v1943
      %v1945 = vpop.xlane.xlu0 %1944
      %v1946 = vsel %vm813, %v1936, -inf
      %1947 = vmax.xlane.f32.xlu0 %v1946
      %v1948 = vpop.xlane.xlu0 %1947
      %v1949 = vsub.f32 %v1933, %v1939
      %v1950 = vsub.f32 %v1934, %v1942
      %v1951 = vsub.f32 %v1935, %v1945
      %v1952 = vsub.f32 %v1936, %v1948
      %v1953 = vmul.f32 %v1949, 1.442695
      %v1954 = vpow.pop %v1953
      %v1955 = vmul.f32 %v1950, 1.442695
      %v1956 = vpow.pop %v1955
      %v1957 = vmul.f32 %v1951, 1.442695
      %v1958 = vpow.pop %v1957
      %v1959 = vmul.f32 %v1952, 1.442695
      %v1960 = vpow.pop %v1959
      %v1961 = vsel %vm813, %v1954, 0.0
      %1962 = vadd.xlane.f32.xlu0 %v1961
      %v1963 = vpop.xlane.xlu0 %1962
      %v1964 = vsel %vm813, %v1956, 0.0
      %1965 = vadd.xlane.f32.xlu0 %v1964
      %v1966 = vpop.xlane.xlu0 %1965
      %v1967 = vsel %vm813, %v1958, 0.0
      %1968 = vadd.xlane.f32.xlu0 %v1967
      %v1969 = vpop.xlane.xlu0 %1968
      %v1970 = vsel %vm813, %v1960, 0.0
      %1971 = vadd.xlane.f32.xlu0 %v1970
      %v1972 = vpop.xlane.xlu0 %1971
      %v1973 = vrcp.pop %v1963
      %v1974 = vrcp.pop %v1966
      %v1975 = vrcp.pop %v1969
      %v1976 = vrcp.pop %v1972
      %v1977 = vmul.f32 %v1954, %v1973
      %v1978 = vmul.f32 %v1956, %v1974
      %v1979 = vmul.f32 %v1958, %v1975
      %v1980 = vmul.f32 %v1960, %v1976
      %v1981 = vpack.c.bf16 %v1977, %v1977
      %v1982 = vpack.c.bf16 %v1588, %v1588
      %1984 = vrot.lane.b32.xlu0 %v1982, 96
      %v1985 = vpop.permute.xlu0 %1984
      %v1987 = vsel %vm813, %v1981, 0
      %v1990 = vsel %vm817, %v1985, 0
      %1992 = vmatprep.subr.bf16.mxu0 0
      %1993 = vmatpush1.bf16.msra.mxu0 0
      %1994 = vmatprep.subr.bf16.mxu0 0
      %1995 = vmatpush1.bf16.msra.mxu0 0
      %1996 = vmatprep.subr.bf16.mxu0 0
      %1997 = vmatpush1.bf16.msra.mxu0 0
      %1998 = vmatprep.subr.bf16.mxu0 0
      %1999 = vmatpush1.bf16.msra.mxu0 0
      %2000 = vmatprep.subr.bf16.mxu0 0
      %2001 = vmatpush1.bf16.msra.mxu0 0
      %2002 = vmatprep.subr.bf16.mxu0 0
      %2003 = vmatpush1.bf16.msra.mxu0 0
      %2004 = vmatprep.subr.bf16.mxu0 0
      %2005 = vmatpush1.bf16.msra.mxu0 0
      %2006 = vmatprep.subr.bf16.mxu0 0
      %2007 = vmatpush1.bf16.msra.mxu0 %v1990
      %2008 = vmatprep.subr.bf16.mxu0 0
      %2009 = vmatpush2.bf16.msra.mxu0 0
      %2010 = vmatprep.subr.bf16.mxu0 0
      %2011 = vmatpush2.bf16.msra.mxu0 0
      %2012 = vmatprep.subr.bf16.mxu0 0
      %2013 = vmatpush2.bf16.msra.mxu0 0
      %2014 = vmatprep.subr.bf16.mxu0 0
      %2015 = vmatpush2.bf16.msra.mxu0 0
      %2016 = vmatprep.subr.bf16.mxu0 0
      %2017 = vmatpush2.bf16.msra.mxu0 0
      %2018 = vmatprep.subr.bf16.mxu0 0
      %2019 = vmatpush2.bf16.msra.mxu0 0
      %2020 = vmatprep.subr.bf16.mxu0 0
      %2021 = vmatpush2.bf16.msra.mxu0 0
      %2022 = vmatprep.subr.bf16.mxu0 0
      %2023 = vmatpush2.bf16.msra.mxu0 0
      %2024 = vmatprep.mubr.bf16.mxu0 0
      %2025 = vmatmul.mubr.bf16.gmra.mxu0 %v1987
      %v2026 = vpop.f32.mrf.mxu0
      %v2027 = vadd.f32 0.0, %v2026
      %v2028 = vpop.f32.mrf.mxu0
      %v2029 = vpop.f32.mrf.mxu0
      %v2030 = vpop.f32.mrf.mxu0
      %2031 = vdwg.mxu0
      %v2032 = vpack.c.bf16 %v1978, %v1978
      %2033 = vrot.lane.b32.xlu0 %v1982, 88
      %v2034 = vpop.permute.xlu0 %2033
      %v2036 = vsel %vm813, %v2032, 0
      %v2039 = vsel %vm817, %v2034, 0
      %2041 = vmatprep.subr.bf16.mxu0 0
      %2042 = vmatpush1.bf16.msra.mxu0 0
      %2043 = vmatprep.subr.bf16.mxu0 0
      %2044 = vmatpush1.bf16.msra.mxu0 0
      %2045 = vmatprep.subr.bf16.mxu0 0
      %2046 = vmatpush1.bf16.msra.mxu0 0
      %2047 = vmatprep.subr.bf16.mxu0 0
      %2048 = vmatpush1.bf16.msra.mxu0 0
      %2049 = vmatprep.subr.bf16.mxu0 0
      %2050 = vmatpush1.bf16.msra.mxu0 0
      %2051 = vmatprep.subr.bf16.mxu0 0
      %2052 = vmatpush1.bf16.msra.mxu0 0
      %2053 = vmatprep.subr.bf16.mxu0 0
      %2054 = vmatpush1.bf16.msra.mxu0 0
      %2055 = vmatprep.subr.bf16.mxu0 0
      %2056 = vmatpush1.bf16.msra.mxu0 %v2039
      %2057 = vmatprep.subr.bf16.mxu0 0
      %2058 = vmatpush2.bf16.msra.mxu0 0
      %2059 = vmatprep.subr.bf16.mxu0 0
      %2060 = vmatpush2.bf16.msra.mxu0 0
      %2061 = vmatprep.subr.bf16.mxu0 0
      %2062 = vmatpush2.bf16.msra.mxu0 0
      %2063 = vmatprep.subr.bf16.mxu0 0
      %2064 = vmatpush2.bf16.msra.mxu0 0
      %2065 = vmatprep.subr.bf16.mxu0 0
      %2066 = vmatpush2.bf16.msra.mxu0 0
      %2067 = vmatprep.subr.bf16.mxu0 0
      %2068 = vmatpush2.bf16.msra.mxu0 0
      %2069 = vmatprep.subr.bf16.mxu0 0
      %2070 = vmatpush2.bf16.msra.mxu0 0
      %2071 = vmatprep.subr.bf16.mxu0 0
      %2072 = vmatpush2.bf16.msra.mxu0 0
      %2073 = vmatprep.mubr.bf16.mxu0 0
      %2074 = vmatmul.mubr.bf16.gmra.mxu0 %v2036
      %v2075 = vpop.f32.mrf.mxu0
      %v2076 = vadd.f32 0.0, %v2075
      %v2077 = vpop.f32.mrf.mxu0
      %v2078 = vpop.f32.mrf.mxu0
      %v2079 = vpop.f32.mrf.mxu0
      %2080 = vdwg.mxu0
      %v2081 = vpack.c.bf16 %v1979, %v1979
      %2082 = vrot.lane.b32.xlu0 %v1982, 80
      %v2083 = vpop.permute.xlu0 %2082
      %v2085 = vsel %vm813, %v2081, 0
      %v2088 = vsel %vm817, %v2083, 0
      %2090 = vmatprep.subr.bf16.mxu0 0
      %2091 = vmatpush1.bf16.msra.mxu0 0
      %2092 = vmatprep.subr.bf16.mxu0 0
      %2093 = vmatpush1.bf16.msra.mxu0 0
      %2094 = vmatprep.subr.bf16.mxu0 0
      %2095 = vmatpush1.bf16.msra.mxu0 0
      %2096 = vmatprep.subr.bf16.mxu0 0
      %2097 = vmatpush1.bf16.msra.mxu0 0
      %2098 = vmatprep.subr.bf16.mxu0 0
      %2099 = vmatpush1.bf16.msra.mxu0 0
      %2100 = vmatprep.subr.bf16.mxu0 0
      %2101 = vmatpush1.bf16.msra.mxu0 0
      %2102 = vmatprep.subr.bf16.mxu0 0
      %2103 = vmatpush1.bf16.msra.mxu0 0
      %2104 = vmatprep.subr.bf16.mxu0 0
      %2105 = vmatpush1.bf16.msra.mxu0 %v2088
      %2106 = vmatprep.subr.bf16.mxu0 0
      %2107 = vmatpush2.bf16.msra.mxu0 0
      %2108 = vmatprep.subr.bf16.mxu0 0
      %2109 = vmatpush2.bf16.msra.mxu0 0
      %2110 = vmatprep.subr.bf16.mxu0 0
      %2111 = vmatpush2.bf16.msra.mxu0 0
      %2112 = vmatprep.subr.bf16.mxu0 0
      %2113 = vmatpush2.bf16.msra.mxu0 0
      %2114 = vmatprep.subr.bf16.mxu0 0
      %2115 = vmatpush2.bf16.msra.mxu0 0
      %2116 = vmatprep.subr.bf16.mxu0 0
      %2117 = vmatpush2.bf16.msra.mxu0 0
      %2118 = vmatprep.subr.bf16.mxu0 0
      %2119 = vmatpush2.bf16.msra.mxu0 0
      %2120 = vmatprep.subr.bf16.mxu0 0
      %2121 = vmatpush2.bf16.msra.mxu0 0
      %2122 = vmatprep.mubr.bf16.mxu0 0
      %2123 = vmatmul.mubr.bf16.gmra.mxu0 %v2085
      %v2124 = vpop.f32.mrf.mxu0
      %v2125 = vadd.f32 0.0, %v2124
      %v2126 = vpop.f32.mrf.mxu0
      %v2127 = vpop.f32.mrf.mxu0
      %v2128 = vpop.f32.mrf.mxu0
      %2129 = vdwg.mxu0
      %v2130 = vpack.c.bf16 %v1980, %v1980
      %2131 = vrot.lane.b32.xlu0 %v1982, 72
      %v2132 = vpop.permute.xlu0 %2131
      %v2134 = vsel %vm813, %v2130, 0
      %v2137 = vsel %vm817, %v2132, 0
      %2139 = vmatprep.subr.bf16.mxu0 0
      %2140 = vmatpush1.bf16.msra.mxu0 0
      %2141 = vmatprep.subr.bf16.mxu0 0
      %2142 = vmatpush1.bf16.msra.mxu0 0
      %2143 = vmatprep.subr.bf16.mxu0 0
      %2144 = vmatpush1.bf16.msra.mxu0 0
      %2145 = vmatprep.subr.bf16.mxu0 0
      %2146 = vmatpush1.bf16.msra.mxu0 0
      %2147 = vmatprep.subr.bf16.mxu0 0
      %2148 = vmatpush1.bf16.msra.mxu0 0
      %2149 = vmatprep.subr.bf16.mxu0 0
      %2150 = vmatpush1.bf16.msra.mxu0 0
      %2151 = vmatprep.subr.bf16.mxu0 0
      %2152 = vmatpush1.bf16.msra.mxu0 0
      %2153 = vmatprep.subr.bf16.mxu0 0
      %2154 = vmatpush1.bf16.msra.mxu0 %v2137
      %2155 = vmatprep.subr.bf16.mxu0 0
      %2156 = vmatpush2.bf16.msra.mxu0 0
      %2157 = vmatprep.subr.bf16.mxu0 0
      %2158 = vmatpush2.bf16.msra.mxu0 0
      %2159 = vmatprep.subr.bf16.mxu0 0
      %2160 = vmatpush2.bf16.msra.mxu0 0
      %2161 = vmatprep.subr.bf16.mxu0 0
      %2162 = vmatpush2.bf16.msra.mxu0 0
      %2163 = vmatprep.subr.bf16.mxu0 0
      %2164 = vmatpush2.bf16.msra.mxu0 0
      %2165 = vmatprep.subr.bf16.mxu0 0
      %2166 = vmatpush2.bf16.msra.mxu0 0
      %2167 = vmatprep.subr.bf16.mxu0 0
      %2168 = vmatpush2.bf16.msra.mxu0 0
      %2169 = vmatprep.subr.bf16.mxu0 0
      %2170 = vmatpush2.bf16.msra.mxu0 0
      %2171 = vmatprep.mubr.bf16.mxu0 0
      %2172 = vmatmul.mubr.bf16.gmra.mxu0 %v2134
      %v2173 = vpop.f32.mrf.mxu0
      %v2174 = vadd.f32 0.0, %v2173
      %v2175 = vpop.f32.mrf.mxu0
      %v2176 = vpop.f32.mrf.mxu0
      %v2177 = vpop.f32.mrf.mxu0
      %2178 = vdwg.mxu0
      %2180 = vrot.lane.b32.xlu0 %v2076, 8
      %v2181 = vpop.permute.xlu0 %2180
      %2184 = vrot.lane.b32.xlu0 %v2125, 16
      %v2185 = vpop.permute.xlu0 %2184
      %2188 = vrot.lane.b32.xlu0 %v2174, 24
      %v2189 = vpop.permute.xlu0 %2188
      %v2191 = vsel %vm813, %v2027, %v2181
      %v2192 = vsel %vm1371, %v2191, %v2185
      %v2193 = vsel %vm1373, %v2192, %v2189
      %v2194 = vld [vmem:[%s660] sm:$0xf]
      %v2195 = vld [vmem:[%s660 + $0x4] sm:$0xf]
      %v2196 = vld [vmem:[%s660 + $0x8] sm:$0xf]
      %v2197 = vld [vmem:[%s660 + $0xc] sm:$0xf]
      %v2198 = vpack.c.bf16 %v2193, %v2193
      %v2203 = vunpack.c.l.b16 %v2194
      %v2204 = vunpack.c.l.b16 %v2195
      %v2205 = vunpack.c.l.b16 %v2196
      %v2206 = vunpack.c.l.b16 %v2197
      %v2207 = vpack.c.b16 %v2204, %v2203
      %v2208 = vpack.c.b16 %v2206, %v2205
      %v2212 = vsel %vm731, %v2198, 0
      %2214 = vmatprep.subr.bf16.mxu0 0
      %2215 = vmatpush1.bf16.msra.mxu0 0
      %2216 = vmatprep.subr.bf16.mxu0 0
      %2217 = vmatpush1.bf16.msra.mxu0 0
      %2218 = vmatprep.subr.bf16.mxu0 0
      %2219 = vmatpush1.bf16.msra.mxu0 0
      %2220 = vmatprep.subr.bf16.mxu0 0
      %2221 = vmatpush1.bf16.msra.mxu0 0
      %2222 = vmatprep.subr.bf16.mxu0 0
      %2223 = vmatpush1.bf16.msra.mxu0 0
      %2224 = vmatprep.subr.bf16.mxu0 0
      %2225 = vmatpush1.bf16.msra.mxu0 0
      %2226 = vmatprep.subr.bf16.mxu0 0
      %2227 = vmatpush1.bf16.msra.mxu0 %v2208
      %2228 = vmatprep.subr.bf16.mxu0 0
      %2229 = vmatpush1.bf16.msra.mxu0 %v2207
      %2230 = vmatprep.subr.bf16.mxu0 0
      %2231 = vmatpush2.bf16.msra.mxu0 0
      %2232 = vmatprep.subr.bf16.mxu0 0
      %2233 = vmatpush2.bf16.msra.mxu0 0
      %2234 = vmatprep.subr.bf16.mxu0 0
      %2235 = vmatpush2.bf16.msra.mxu0 0
      %2236 = vmatprep.subr.bf16.mxu0 0
      %2237 = vmatpush2.bf16.msra.mxu0 0
      %2238 = vmatprep.subr.bf16.mxu0 0
      %2239 = vmatpush2.bf16.msra.mxu0 0
      %2240 = vmatprep.subr.bf16.mxu0 0
      %2241 = vmatpush2.bf16.msra.mxu0 0
      %2242 = vmatprep.subr.bf16.mxu0 0
      %2243 = vmatpush2.bf16.msra.mxu0 0
      %2244 = vmatprep.subr.bf16.mxu0 0
      %2245 = vmatpush2.bf16.msra.mxu0 0
      %2246 = vmatprep.mubr.bf16.mxu0 0
      %2247 = vmatmul.mubr.bf16.gmra.mxu0 %v2212
      %v2248 = vpop.f32.mrf.mxu0
      %v2249 = vadd.f32 0.0, %v2248
      %v2250 = vpop.f32.mrf.mxu0
      %v2251 = vpop.f32.mrf.mxu0
      %v2252 = vpop.f32.mrf.mxu0
      %2253 = vdwg.mxu0
      %v2254 = vadd.f32 %v1464, %v2249
      %v2255 = vlaneseq
      %v2256 = vshrl.u32 %v2255, 7
      %v2257 = vsub.s32 6, %v2256
      %v2258 = vrot.slane %v690, %v2257
      %v2259 = vadd.f32 %v2254, %v2258
      %v2260 = vsel %vm731, %v2259, 0.0
      %2261 = vadd.xlane.f32.xlu0 %v2260
      %v2262 = vpop.xlane.xlu0 %2261
      %v2263 = vmul.f32 %v2262, %v1444
      %v2264 = vsub.f32 %v2259, %v2263
      %v2265 = vmul.f32 %v2264, %v2264
      %v2266 = vsel %vm731, %v2265, 0.0
      %2267 = vadd.xlane.f32.xlu0 %v2266
      %v2268 = vpop.xlane.xlu0 %2267
      %v2269 = vmul.f32 %v2268, %v1444
      %v2270 = vadd.f32 %v2269, 1e-05
      %v2271 = vrsqrt.pop %v2270
      %v2272 = vmul.f32 %v2264, %v2271
      %v2273 = vlaneseq
      %v2274 = vshrl.u32 %v2273, 7
      %v2275 = vsub.s32 7, %v2274
      %v2276 = vrot.slane %v690, %v2275
      %v2277 = vmul.f32 %v2272, %v2276
      %v2278 = vlaneseq
      %v2279 = vshrl.u32 %v2278, 7
      %v2280 = vsub.s32 0, %v2279
      %v2281 = vrot.slane %v691, %v2280
      %v2282 = vadd.f32 %v2277, %v2281
      %v2283 = vld [vmem:[%s665] sm:$0xf]
      %v2284 = vld [vmem:[%s665 + $0x4] sm:$0xf]
      %v2285 = vld [vmem:[%s665 + $0x8] sm:$0xf]
      %v2286 = vld [vmem:[%s665 + $0xc] sm:$0xf]
      %v2287 = vpack.c.bf16 %v2282, %v2282
      %v2288 = vlaneseq
      %v2289 = vshrl.u32 %v2288, 7
      %v2290 = vsub.s32 1, %v2289
      %v2291 = vrot.slane %v691, %v2290
      %v2296 = vunpack.c.l.b16 %v2283
      %v2297 = vunpack.c.l.b16 %v2284
      %v2298 = vunpack.c.l.b16 %v2285
      %v2299 = vunpack.c.l.b16 %v2286
      %v2300 = vpack.c.b16 %v2297, %v2296
      %v2301 = vpack.c.b16 %v2299, %v2298
      %v2305 = vsel %vm731, %v2287, 0
      %2307 = vmatprep.subr.bf16.mxu0 0
      %2308 = vmatpush1.bf16.msra.mxu0 0
      %2309 = vmatprep.subr.bf16.mxu0 0
      %2310 = vmatpush1.bf16.msra.mxu0 0
      %2311 = vmatprep.subr.bf16.mxu0 0
      %2312 = vmatpush1.bf16.msra.mxu0 0
      %2313 = vmatprep.subr.bf16.mxu0 0
      %2314 = vmatpush1.bf16.msra.mxu0 0
      %2315 = vmatprep.subr.bf16.mxu0 0
      %2316 = vmatpush1.bf16.msra.mxu0 0
      %2317 = vmatprep.subr.bf16.mxu0 0
      %2318 = vmatpush1.bf16.msra.mxu0 0
      %2319 = vmatprep.subr.bf16.mxu0 0
      %2320 = vmatpush1.bf16.msra.mxu0 %v2301
      %2321 = vmatprep.subr.bf16.mxu0 0
      %2322 = vmatpush1.bf16.msra.mxu0 %v2300
      %2323 = vmatprep.subr.bf16.mxu0 0
      %2324 = vmatpush2.bf16.msra.mxu0 0
      %2325 = vmatprep.subr.bf16.mxu0 0
      %2326 = vmatpush2.bf16.msra.mxu0 0
      %2327 = vmatprep.subr.bf16.mxu0 0
      %2328 = vmatpush2.bf16.msra.mxu0 0
      %2329 = vmatprep.subr.bf16.mxu0 0
      %2330 = vmatpush2.bf16.msra.mxu0 0
      %2331 = vmatprep.subr.bf16.mxu0 0
      %2332 = vmatpush2.bf16.msra.mxu0 0
      %2333 = vmatprep.subr.bf16.mxu0 0
      %2334 = vmatpush2.bf16.msra.mxu0 0
      %2335 = vmatprep.subr.bf16.mxu0 0
      %2336 = vmatpush2.bf16.msra.mxu0 0
      %2337 = vmatprep.subr.bf16.mxu0 0
      %2338 = vmatpush2.bf16.msra.mxu0 0
      %2339 = vmatprep.mubr.bf16.mxu0 0
      %2340 = vmatmul.mubr.bf16.gmra.mxu0 %v2305
      %v2341 = vpop.f32.mrf.mxu0
      %v2342 = vadd.f32 %v2291, %v2341
      %v2343 = vpop.f32.mrf.mxu0
      %v2344 = vpop.f32.mrf.mxu0
      %v2345 = vpop.f32.mrf.mxu0
      %2346 = vdwg.mxu0
      %vm2347 = vcmp.gt.f32.partialorder %v2342, 0.0
      %v2348 = vmul.f32 %v2342, 0.01
      %v2349 = vsel %vm2347, %v2342, %v2348
      %v2350 = vld [vmem:[%s670] sm:$0xf]
      %v2351 = vld [vmem:[%s670 + $0x4] sm:$0xf]
      %v2352 = vld [vmem:[%s670 + $0x8] sm:$0xf]
      %v2353 = vld [vmem:[%s670 + $0xc] sm:$0xf]
      %v2354 = vld [vmem:[%s670 + $0x10] sm:$0xf]
      %v2355 = vld [vmem:[%s670 + $0x14] sm:$0xf]
      %v2356 = vld [vmem:[%s670 + $0x18] sm:$0xf]
      %v2357 = vld [vmem:[%s670 + $0x1c] sm:$0xf]
      %v2358 = vpack.c.bf16 %v2349, %v2349
      %v2367 = vunpack.c.l.b16 %v2350
      %v2368 = vunpack.c.l.b16 %v2351
      %v2369 = vunpack.c.l.b16 %v2352
      %v2370 = vunpack.c.l.b16 %v2353
      %v2371 = vunpack.c.l.b16 %v2354
      %v2372 = vunpack.c.l.b16 %v2355
      %v2373 = vunpack.c.l.b16 %v2356
      %v2374 = vunpack.c.l.b16 %v2357
      %v2375 = vpack.c.b16 %v2368, %v2367
      %v2376 = vpack.c.b16 %v2370, %v2369
      %v2377 = vpack.c.b16 %v2372, %v2371
      %v2378 = vpack.c.b16 %v2374, %v2373
      %vm2383 = vcmask 523264
      %v2385 = vsel %vm2383, %v2358, 0
      %2387 = vmatprep.subr.bf16.mxu0 0
      %2388 = vmatpush1.bf16.msra.mxu0 0
      %2389 = vmatprep.subr.bf16.mxu0 0
      %2390 = vmatpush1.bf16.msra.mxu0 0
      %2391 = vmatprep.subr.bf16.mxu0 0
      %2392 = vmatpush1.bf16.msra.mxu0 0
      %2393 = vmatprep.subr.bf16.mxu0 0
      %2394 = vmatpush1.bf16.msra.mxu0 0
      %2395 = vmatprep.subr.bf16.mxu0 0
      %2396 = vmatpush1.bf16.msra.mxu0 %v2378
      %2397 = vmatprep.subr.bf16.mxu0 0
      %2398 = vmatpush1.bf16.msra.mxu0 %v2377
      %2399 = vmatprep.subr.bf16.mxu0 0
      %2400 = vmatpush1.bf16.msra.mxu0 %v2376
      %2401 = vmatprep.subr.bf16.mxu0 0
      %2402 = vmatpush1.bf16.msra.mxu0 %v2375
      %2403 = vmatprep.subr.bf16.mxu0 0
      %2404 = vmatpush2.bf16.msra.mxu0 0
      %2405 = vmatprep.subr.bf16.mxu0 0
      %2406 = vmatpush2.bf16.msra.mxu0 0
      %2407 = vmatprep.subr.bf16.mxu0 0
      %2408 = vmatpush2.bf16.msra.mxu0 0
      %2409 = vmatprep.subr.bf16.mxu0 0
      %2410 = vmatpush2.bf16.msra.mxu0 0
      %2411 = vmatprep.subr.bf16.mxu0 0
      %2412 = vmatpush2.bf16.msra.mxu0 0
      %2413 = vmatprep.subr.bf16.mxu0 0
      %2414 = vmatpush2.bf16.msra.mxu0 0
      %2415 = vmatprep.subr.bf16.mxu0 0
      %2416 = vmatpush2.bf16.msra.mxu0 0
      %2417 = vmatprep.subr.bf16.mxu0 0
      %2418 = vmatpush2.bf16.msra.mxu0 0
      %2419 = vmatprep.mubr.bf16.mxu0 0
      %2420 = vmatmul.mubr.bf16.gmra.mxu0 %v2385
      %v2421 = vpop.f32.mrf.mxu0
      %v2422 = vadd.f32 0.0, %v2421
      %v2423 = vpop.f32.mrf.mxu0
      %v2424 = vpop.f32.mrf.mxu0
      %v2425 = vpop.f32.mrf.mxu0
      %2426 = vdwg.mxu0
      %v2427 = vadd.f32 %v2282, %v2422
      %v2428 = vlaneseq
      %v2429 = vshrl.u32 %v2428, 7
      %v2430 = vsub.s32 2, %v2429
      %v2431 = vrot.slane %v691, %v2430
      %v2432 = vadd.f32 %v2427, %v2431
      %v2433 = vsel %vm731, %v2432, 0.0
      %2434 = vadd.xlane.f32.xlu0 %v2433
      %v2435 = vpop.xlane.xlu0 %2434
      %v2436 = vmul.f32 %v2435, %v1444
      %v2437 = vsub.f32 %v2432, %v2436
      %v2438 = vmul.f32 %v2437, %v2437
      %v2439 = vsel %vm731, %v2438, 0.0
      %2440 = vadd.xlane.f32.xlu0 %v2439
      %v2441 = vpop.xlane.xlu0 %2440
      %v2442 = vmul.f32 %v2441, %v1444
      %v2443 = vadd.f32 %v2442, 1e-05
      %v2444 = vrsqrt.pop %v2443
      %v2445 = vmul.f32 %v2437, %v2444
      %v2446 = vlaneseq
      %v2447 = vshrl.u32 %v2446, 7
      %v2448 = vsub.s32 3, %v2447
      %v2449 = vrot.slane %v691, %v2448
      %v2450 = vmul.f32 %v2445, %v2449
      %v2451 = vlaneseq
      %v2452 = vshrl.u32 %v2451, 7
      %v2453 = vsub.s32 4, %v2452
      %v2454 = vrot.slane %v691, %v2453
      %v2455 = vadd.f32 %v2450, %v2454
      %2456 = vst.msk [vmem:[#allocation2] sm:$0xff] %vm731, %v2455
      %p2457 = scmp.eq.s32.totalorder %s30, 1
      // Predicated region
      $region81: #{transformer_forward.3} parent=75 // pred_check
        %p2458 = pneg %p2457
      $region82: #{transformer_forward.3} parent=75 // pred_check_branch
        %2460 = sbr.rel (%p2458) target = $region84
      $region83: #{transformer_forward.3} parent=75 // pred_region
        %v2461 = vld [vmem:[%s12] sm:$0xf]
        %v2462 = vld [vmem:[%s12 + $0x4] sm:$0xf]
        %v2463 = vld [vmem:[%s12 + $0x8] sm:$0xf]
        %v2464 = vld [vmem:[%s12 + $0xc] sm:$0xf]
        %v2465 = vpack.c.bf16 %v2455, %v2455
        %v2466 = vld [vmem:[%s13] sm:$0x1]
        %v2468 = vlaneseq
        %v2469 = vshrl.u32 %v2468, 7
        %v2470 = vsub.s32 0, %v2469
        %v2471 = vrot.slane %v2466, %v2470
        %v2477 = vunpack.c.l.b16 %v2461
        %v2478 = vunpack.c.l.b16 %v2462
        %v2479 = vunpack.c.l.b16 %v2463
        %v2480 = vunpack.c.l.b16 %v2464
        %v2481 = vpack.c.b16 %v2478, %v2477
        %v2482 = vpack.c.b16 %v2480, %v2479
        %v2486 = vsel %vm731, %v2465, 0
        %2488 = vmatprep.subr.bf16.mxu0 0
        %2489 = vmatpush1.bf16.msra.mxu0 0
        %2490 = vmatprep.subr.bf16.mxu0 0
        %2491 = vmatpush1.bf16.msra.mxu0 0
        %2492 = vmatprep.subr.bf16.mxu0 0
        %2493 = vmatpush1.bf16.msra.mxu0 0
        %2494 = vmatprep.subr.bf16.mxu0 0
        %2495 = vmatpush1.bf16.msra.mxu0 0
        %2496 = vmatprep.subr.bf16.mxu0 0
        %2497 = vmatpush1.bf16.msra.mxu0 0
        %2498 = vmatprep.subr.bf16.mxu0 0
        %2499 = vmatpush1.bf16.msra.mxu0 0
        %2500 = vmatprep.subr.bf16.mxu0 0
        %2501 = vmatpush1.bf16.msra.mxu0 %v2482
        %2502 = vmatprep.subr.bf16.mxu0 0
        %2503 = vmatpush1.bf16.msra.mxu0 %v2481
        %2504 = vmatprep.subr.bf16.mxu0 0
        %2505 = vmatpush2.bf16.msra.mxu0 0
        %2506 = vmatprep.subr.bf16.mxu0 0
        %2507 = vmatpush2.bf16.msra.mxu0 0
        %2508 = vmatprep.subr.bf16.mxu0 0
        %2509 = vmatpush2.bf16.msra.mxu0 0
        %2510 = vmatprep.subr.bf16.mxu0 0
        %2511 = vmatpush2.bf16.msra.mxu0 0
        %2512 = vmatprep.subr.bf16.mxu0 0
        %2513 = vmatpush2.bf16.msra.mxu0 0
        %2514 = vmatprep.subr.bf16.mxu0 0
        %2515 = vmatpush2.bf16.msra.mxu0 0
        %2516 = vmatprep.subr.bf16.mxu0 0
        %2517 = vmatpush2.bf16.msra.mxu0 0
        %2518 = vmatprep.subr.bf16.mxu0 0
        %2519 = vmatpush2.bf16.msra.mxu0 0
        %2520 = vmatprep.mubr.bf16.mxu0 0
        %2521 = vmatmul.mubr.bf16.gmra.mxu0 %v2486
        %v2522 = vpop.f32.mrf.mxu0
        %v2523 = vadd.f32 %v2471, %v2522
        %v2524 = vpop.f32.mrf.mxu0
        %v2525 = vpop.f32.mrf.mxu0
        %v2526 = vpop.f32.mrf.mxu0
        %2527 = vdwg.mxu0
        %2528 = vst.msk [vmem:[%s679] sm:$0xff] %vm2383, %v2523
      $region84: #{transformer_forward.3} parent=75 // pred_fallthru
        _
      %p2529 = scmp.lt.s32.totalorder %s29, 1
      %s2530 = scalar_select %p2529, %s29, 1
      %s2531 = smul.addr %s2530, 8
      %s2532 = scalar_lea.vmem %s14, %s2531
      // Predicated region
      $region85: #{transformer_forward.3} parent=75 // pred_check
        %p2533 = pneg %p409
      $region86: #{transformer_forward.3} parent=75 // pred_check_branch
        %2535 = sbr.rel (%p2533) target = $region88
      $region87: #{transformer_forward.3} parent=75 // pred_region
        _
      $region88: #{transformer_forward.3} parent=75 // pred_fallthru
        _
    $region76: #{transformer_forward.3} parent=5 // pred_fallthru
      _
    %p2536 = scmp.le.s32.totalorder 2, %s20
    // Predicated region
    $region89: #{transformer_forward.3} parent=5 // pred_check
      %p2537 = pneg %p2536
    $region90: #{transformer_forward.3} parent=5 // pred_check_branch
      %2539 = sbr.rel (%p2537) target = $region92
    $region91: #{transformer_forward.3} parent=5 // pred_region
      %s2540 = ssub.s32 %s20, 2
      // Predicated region
      $region93: #{transformer_forward.3} parent=91 // pred_check
        %p2541 = pneg %p415
      $region94: #{transformer_forward.3} parent=91 // pred_check_branch
        %2543 = sbr.rel (%p2541) target = $region96
      $region95: #{transformer_forward.3} parent=91 // pred_region
        %p2544 = scmp.lt.s32.totalorder %s31, 1
        %s2545 = scalar_select %p2544, %s31, 1
        %s2546 = smul.addr %s2545, 8
        %s2547 = scalar_lea.vmem %s14, %s2546
      $region96: #{transformer_forward.3} parent=91 // pred_fallthru
        _
    $region92: #{transformer_forward.3} parent=5 // pred_fallthru
      _
  $region6: #{transformer_forward.3} parent=0 // loop_footer
    %s24 = sadd.s32 1, %s20
  $region7: #{transformer_forward.3} parent=0 // loop_footer_branch
    %19 = sbr.rel target = $region3
  $region8: #{transformer_forward.3} parent=0 // loop_exit
    _

</llo_original>
